<compile_context>
chip_gen: v7x
topology: tpu7x:2x2x1
jax: 0.10.0
libtpu: 0.0.40
codegen_flags: <defaults>
</compile_context>

<pallas_src>
import functools

import jax
import jax.numpy as jnp
from jax.experimental import pallas as pl
from jax.experimental.pallas import tpu as pltpu

K = 7                 # TempCNN conv kernel size
PAD = K // 2          # 'same' padding
PADL = 8              # sublane-aligned left margin inside the VMEM scratch
BN_EPS = 1e-5


def _vmem_spec():
    # Small arrays: whole-array blocks resident in VMEM, single grid point.
    return pl.BlockSpec(memory_space=pltpu.MemorySpace.VMEM)


# ----------------------- fused per-branch forward kernel ----------------------
def branch_kernel(xcol_ref,
                  w1_ref, s1_ref, w2_ref, s2_ref, w3_ref, s3_ref,
                  ew1_ref, eb1_ref, ew2_ref, eb2_ref, ew3_ref, eb3_ref,
                  out_ref, p1_ref, p2_ref, *, bsz, t_len):
    """Encoder (3x conv+BN+ReLU, GAP) + expander MLP, all VMEM-resident."""
    hidden = w1_ref.shape[1]

    def conv(xcol2d, w_ref, shift_ref):
        # One im2col matmul per conv; conv bias + BN affine pre-folded.
        y = jnp.dot(xcol2d, w_ref[...], preferred_element_type=jnp.float32)
        return jnp.maximum(y + shift_ref[...], 0.0)       # ReLU (Dropout = id)

    def pad_store(p_ref, h2d):
        # Zero-filled 'same' padding held in VMEM; interior store at a
        # sublane-aligned offset (PADL = 8, 16 rows = 2 full sublane tiles).
        p_ref[...] = jnp.zeros_like(p_ref)
        p_ref[:, PADL:PADL + t_len, :] = h2d.reshape(bsz, t_len, hidden)

    def im2col(p_ref):
        cols = [p_ref[:, PADL - PAD + k:PADL - PAD + k + t_len, :]
                for k in range(K)]
        # concat along lane axis; each piece is lane-dense (hidden = 128)
        return jnp.concatenate(cols, axis=-1).reshape(bsz * t_len, K * hidden)

    h = conv(xcol_ref[...], w1_ref, s1_ref)               # (B*T, H)
    pad_store(p1_ref, h)
    h = conv(im2col(p1_ref), w2_ref, s2_ref)              # (B*T, H)
    pad_store(p2_ref, h)
    h = conv(im2col(p2_ref), w3_ref, s3_ref)              # (B*T, H)

    # fused global average pool over time (AdaptiveAvgPool1d(1) + squeeze()).
    rep = jnp.mean(h.reshape(bsz, t_len, hidden), axis=1)  # (B, H)

    # expander MLP: Lin->BN->ReLU -> Lin->BN->ReLU -> Lin  (BN folded).
    e = jnp.maximum(
        jnp.dot(rep, ew1_ref[...], preferred_element_type=jnp.float32)
        + eb1_ref[...], 0.0)
    e = jnp.maximum(
        jnp.dot(e, ew2_ref[...], preferred_element_type=jnp.float32)
        + eb2_ref[...], 0.0)
    out_ref[...] = (
        jnp.dot(e, ew3_ref[...], preferred_element_type=jnp.float32)
        + eb3_ref[...])


# ------------------------------ wrapper / glue -------------------------------
def _bn_scale_shift(bn):
    scale = bn["gamma"] / jnp.sqrt(bn["rvar"] + BN_EPS)
    shift = bn["beta"] - bn["rmean"] * scale
    return scale, shift


def _fold_conv(p):
    # Conv1d weight (Cout, Cin, K) -> im2col layout (K*Cin, Cout) with the
    # eval-mode BN affine and conv bias folded in.
    scale, shift = _bn_scale_shift(p)
    cout, cin, k = p["w"].shape
    w = jnp.transpose(p["w"], (2, 1, 0)).reshape(k * cin, cout)
    return w * scale[None, :], (p["b"] * scale + shift).reshape(1, cout)


def _fold_linear(lin, bn=None):
    w = lin["w"].T
    b = lin["b"]
    if bn is not None:
        scale, shift = _bn_scale_shift(bn)
        w = w * scale[None, :]
        b = b * scale + shift
    return w, b.reshape(1, -1)


def _input_im2col(x_btc):
    # (B, T, Cin) -> (B*T, K*Cin); tiny, done once in the wrapper.
    bsz, t_len, cin = x_btc.shape
    xpad = jnp.pad(x_btc, ((0, 0), (PAD, PAD), (0, 0)))
    cols = [xpad[:, k:k + t_len, :] for k in range(K)]
    return jnp.concatenate(cols, axis=-1).reshape(bsz * t_len, K * cin)


def branch_forward(enc, exp, x_nct):
    """One VICReg branch (encoder + expander) as a single pallas_call."""
    x = jnp.transpose(x_nct, (0, 2, 1)).astype(jnp.float32)   # NCT -> (B, T, C)
    bsz, t_len, _ = x.shape
    xcol = _input_im2col(x)

    w1, s1 = _fold_conv(enc["conv1"])
    w2, s2 = _fold_conv(enc["conv2"])
    w3, s3 = _fold_conv(enc["conv3"])
    ew1, eb1 = _fold_linear(exp["lin1"], exp["bn1"])
    ew2, eb2 = _fold_linear(exp["lin2"], exp["bn2"])
    ew3, eb3 = _fold_linear(exp["lin3"])
    hidden = w1.shape[1]
    edim = ew3.shape[1]

    args = (xcol, w1, s1, w2, s2, w3, s3, ew1, eb1, ew2, eb2, ew3, eb3)
    return pl.pallas_call(
        functools.partial(branch_kernel, bsz=bsz, t_len=t_len),
        out_shape=jax.ShapeDtypeStruct((bsz, edim), jnp.float32),
        in_specs=[_vmem_spec()] * len(args),
        out_specs=_vmem_spec(),
        scratch_shapes=[
            pltpu.VMEM((bsz, t_len + 2 * PADL, hidden), jnp.float32),
            pltpu.VMEM((bsz, t_len + 2 * PADL, hidden), jnp.float32),
        ],
    )(*args)


@jax.jit
def vicreg_forward(params, s1, s2):
    """s1: (B, 2, T), s2: (B, 10, T) in PyTorch NCT layout."""
    # TODO(synk): on v7x the two independent branches could run concurrently
    # on the two TensorCores (core_map / parallel leading grid dim).
    e1 = branch_forward(params["enc1"], params["exp1"], s1)
    e2 = branch_forward(params["enc2"], params["exp2"], s2)
    return e1, e2


# --------------------------- deterministic init ------------------------------
def _uniform(key, shape, bound):
    return jax.random.uniform(key, shape, jnp.float32, -bound, bound)


def _init_bn_fields(keys, n):
    k1, k2, k3, k4 = keys
    return dict(
        gamma=jax.random.uniform(k1, (n,), jnp.float32, 0.8, 1.2),
        beta=0.1 * jax.random.normal(k2, (n,), jnp.float32),
        rmean=0.1 * jax.random.normal(k3, (n,), jnp.float32),
        rvar=jax.random.uniform(k4, (n,), jnp.float32, 0.5, 1.5),
    )


def init_conv_block(key, cin, cout):
    ks = jax.random.split(key, 6)
    bound = 1.0 / (cin * K) ** 0.5
    p = dict(w=_uniform(ks[0], (cout, cin, K), bound),
             b=_uniform(ks[1], (cout,), bound))
    p.update(_init_bn_fields(ks[2:6], cout))
    return p


def init_linear(key, fin, fout):
    k1, k2 = jax.random.split(key)
    bound = 1.0 / fin ** 0.5
    return dict(w=_uniform(k1, (fout, fin), bound), b=_uniform(k2, (fout,), bound))


def init_encoder(key, cin, hidden):
    k1, k2, k3 = jax.random.split(key, 3)
    return dict(conv1=init_conv_block(k1, cin, hidden),
                conv2=init_conv_block(k2, hidden, hidden),
                conv3=init_conv_block(k3, hidden, hidden))


def init_expander(key, hidden, edim):
    k1, k2, k3, k4, k5 = jax.random.split(key, 5)
    return dict(lin1=init_linear(k1, hidden, edim),
                bn1=_init_bn_fields(jax.random.split(k2, 4), edim),
                lin2=init_linear(k3, edim, edim),
                bn2=_init_bn_fields(jax.random.split(k4, 4), edim),
                lin3=init_linear(k5, edim, edim))


def init_vicreg(key, hidden, edim):
    k1, k2, k3, k4 = jax.random.split(key, 4)
    return dict(enc1=init_encoder(k1, 2, hidden),
                enc2=init_encoder(k2, 10, hidden),
                exp1=init_expander(k3, hidden, edim),
                exp2=init_expander(k4, hidden, edim))


if __name__ == "__main__":
    B, T = 4, 16
    hidden_dim, expander_dim = 128, 256     # module defaults; lane-dense

    root = jax.random.PRNGKey(0)
    kp, kx1, kx2 = jax.random.split(root, 3)
    params = init_vicreg(kp, hidden_dim, expander_dim)

    s1 = jax.random.normal(kx1, (B, 2, T), jnp.float32)    # Sentinel-1: 2 ch
    s2 = jax.random.normal(kx2, (B, 10, T), jnp.float32)   # Sentinel-2: 10 ch

    e1, e2 = vicreg_forward(params, s1, s2)
    jax.block_until_ready((e1, e2))

    assert e1.shape == (B, expander_dim) and e2.shape == (B, expander_dim)
    assert bool(jnp.all(jnp.isfinite(e1))) and bool(jnp.all(jnp.isfinite(e2)))
    print("KERNEL_OK")
</pallas_src>

<mosaic_0001>
module attributes {stable_mosaic.version = 11 : i64} {
  func.func @branch_kernel(%arg0: memref<64x14xf32, #tpu.memory_space<vmem>>, %arg1: memref<14x128xf32, #tpu.memory_space<vmem>>, %arg2: memref<1x128xf32, #tpu.memory_space<vmem>>, %arg3: memref<896x128xf32, #tpu.memory_space<vmem>>, %arg4: memref<1x128xf32, #tpu.memory_space<vmem>>, %arg5: memref<896x128xf32, #tpu.memory_space<vmem>>, %arg6: memref<1x128xf32, #tpu.memory_space<vmem>>, %arg7: memref<128x256xf32, #tpu.memory_space<vmem>>, %arg8: memref<1x256xf32, #tpu.memory_space<vmem>>, %arg9: memref<256x256xf32, #tpu.memory_space<vmem>>, %arg10: memref<1x256xf32, #tpu.memory_space<vmem>>, %arg11: memref<256x256xf32, #tpu.memory_space<vmem>>, %arg12: memref<1x256xf32, #tpu.memory_space<vmem>>, %arg13: memref<4x256xf32, #tpu.memory_space<vmem>>, %arg14: memref<4x32x128xf32, #tpu.memory_space<vmem>>, %arg15: memref<4x32x128xf32, #tpu.memory_space<vmem>>) attributes {dimension_semantics = [], scalar_prefetch = 0 : i64, scratch_operands = 2 : i64, tpu.core_type = #tpu.core_type<tc>} {
    %c0 = arith.constant 0 : index
    %c0_0 = arith.constant 0 : index
    %0 = vector.load %arg0[%c0, %c0_0] : memref<64x14xf32, #tpu.memory_space<vmem>>, vector<64x14xf32>
    %c0_1 = arith.constant 0 : index
    %c0_2 = arith.constant 0 : index
    %1 = vector.load %arg1[%c0_1, %c0_2] : memref<14x128xf32, #tpu.memory_space<vmem>>, vector<14x128xf32>
    %cst = arith.constant dense<0.000000e+00> : vector<64x128xf32>
    %2 = tpu.matmul %0, %1, %cst {dimension_numbers = #tpu.dot_dimension_numbers<[1], [0], [0], [1], [0, 0, 1, 1], [], []>} : vector<64x14xf32>, vector<14x128xf32>, vector<64x128xf32> -> vector<64x128xf32>
    %c0_3 = arith.constant 0 : index
    %c0_4 = arith.constant 0 : index
    %3 = vector.load %arg2[%c0_3, %c0_4] : memref<1x128xf32, #tpu.memory_space<vmem>>, vector<1x128xf32>
    %4 = vector.broadcast %3 : vector<1x128xf32> to vector<64x128xf32>
    %5 = arith.addf %2, %4 : vector<64x128xf32>
    %cst_5 = arith.constant 0.000000e+00 : f32
    %6 = vector.broadcast %cst_5 : f32 to vector<64x128xf32>
    %7 = arith.maximumf %5, %6 : vector<64x128xf32>
    %cst_6 = arith.constant 0.000000e+00 : f32
    %8 = vector.broadcast %cst_6 : f32 to vector<4x32x128xf32>
    %c0_7 = arith.constant 0 : index
    %c0_8 = arith.constant 0 : index
    %c0_9 = arith.constant 0 : index
    %9 = vector.load %arg14[%c0_7, %c0_8, %c0_9] : memref<4x32x128xf32, #tpu.memory_space<vmem>>, vector<4x32x128xf32>
    tpu.vector_store %arg14[%c0_7, %c0_8, %c0_9], %8 {strides = array<i32>} : memref<4x32x128xf32, #tpu.memory_space<vmem>>, vector<4x32x128xf32>,
    %10 = vector.shape_cast %7 : vector<64x128xf32> to vector<4x16x128xf32>
    %c0_10 = arith.constant 0 : index
    %c8 = arith.constant 8 : index
    %c0_11 = arith.constant 0 : index
    %11 = vector.load %arg14[%c0_10, %c8, %c0_11] : memref<4x32x128xf32, #tpu.memory_space<vmem>>, vector<4x16x128xf32>
    tpu.vector_store %arg14[%c0_10, %c8, %c0_11], %10 {strides = array<i32>} : memref<4x32x128xf32, #tpu.memory_space<vmem>>, vector<4x16x128xf32>,
    %c0_12 = arith.constant 0 : index
    %c5 = arith.constant 5 : index
    %c0_13 = arith.constant 0 : index
    %12 = vector.load %arg14[%c0_12, %c5, %c0_13] : memref<4x32x128xf32, #tpu.memory_space<vmem>>, vector<4x16x128xf32>
    %c0_14 = arith.constant 0 : index
    %c6 = arith.constant 6 : index
    %c0_15 = arith.constant 0 : index
    %13 = vector.load %arg14[%c0_14, %c6, %c0_15] : memref<4x32x128xf32, #tpu.memory_space<vmem>>, vector<4x16x128xf32>
    %c0_16 = arith.constant 0 : index
    %c7 = arith.constant 7 : index
    %c0_17 = arith.constant 0 : index
    %14 = vector.load %arg14[%c0_16, %c7, %c0_17] : memref<4x32x128xf32, #tpu.memory_space<vmem>>, vector<4x16x128xf32>
    %c0_18 = arith.constant 0 : index
    %c8_19 = arith.constant 8 : index
    %c0_20 = arith.constant 0 : index
    %15 = vector.load %arg14[%c0_18, %c8_19, %c0_20] : memref<4x32x128xf32, #tpu.memory_space<vmem>>, vector<4x16x128xf32>
    %c0_21 = arith.constant 0 : index
    %c9 = arith.constant 9 : index
    %c0_22 = arith.constant 0 : index
    %16 = vector.load %arg14[%c0_21, %c9, %c0_22] : memref<4x32x128xf32, #tpu.memory_space<vmem>>, vector<4x16x128xf32>
    %c0_23 = arith.constant 0 : index
    %c10 = arith.constant 10 : index
    %c0_24 = arith.constant 0 : index
    %17 = vector.load %arg14[%c0_23, %c10, %c0_24] : memref<4x32x128xf32, #tpu.memory_space<vmem>>, vector<4x16x128xf32>
    %c0_25 = arith.constant 0 : index
    %c11 = arith.constant 11 : index
    %c0_26 = arith.constant 0 : index
    %18 = vector.load %arg14[%c0_25, %c11, %c0_26] : memref<4x32x128xf32, #tpu.memory_space<vmem>>, vector<4x16x128xf32>
    %19 = tpu.concatenate %12, %13, %14, %15, %16, %17, %18 in 2 : vector<4x16x128xf32>, vector<4x16x128xf32>, vector<4x16x128xf32>, vector<4x16x128xf32>, vector<4x16x128xf32>, vector<4x16x128xf32>, vector<4x16x128xf32> -> vector<4x16x896xf32>
    %20 = vector.shape_cast %19 : vector<4x16x896xf32> to vector<64x896xf32>
    %c0_27 = arith.constant 0 : index
    %c0_28 = arith.constant 0 : index
    %21 = vector.load %arg3[%c0_27, %c0_28] : memref<896x128xf32, #tpu.memory_space<vmem>>, vector<896x128xf32>
    %cst_29 = arith.constant dense<0.000000e+00> : vector<64x128xf32>
    %22 = tpu.matmul %20, %21, %cst_29 {dimension_numbers = #tpu.dot_dimension_numbers<[1], [0], [0], [1], [0, 0, 1, 1], [], []>} : vector<64x896xf32>, vector<896x128xf32>, vector<64x128xf32> -> vector<64x128xf32>
    %c0_30 = arith.constant 0 : index
    %c0_31 = arith.constant 0 : index
    %23 = vector.load %arg4[%c0_30, %c0_31] : memref<1x128xf32, #tpu.memory_space<vmem>>, vector<1x128xf32>
    %24 = vector.broadcast %23 : vector<1x128xf32> to vector<64x128xf32>
    %25 = arith.addf %22, %24 : vector<64x128xf32>
    %cst_32 = arith.constant 0.000000e+00 : f32
    %26 = vector.broadcast %cst_32 : f32 to vector<64x128xf32>
    %27 = arith.maximumf %25, %26 : vector<64x128xf32>
    %cst_33 = arith.constant 0.000000e+00 : f32
    %28 = vector.broadcast %cst_33 : f32 to vector<4x32x128xf32>
    %c0_34 = arith.constant 0 : index
    %c0_35 = arith.constant 0 : index
    %c0_36 = arith.constant 0 : index
    %29 = vector.load %arg15[%c0_34, %c0_35, %c0_36] : memref<4x32x128xf32, #tpu.memory_space<vmem>>, vector<4x32x128xf32>
    tpu.vector_store %arg15[%c0_34, %c0_35, %c0_36], %28 {strides = array<i32>} : memref<4x32x128xf32, #tpu.memory_space<vmem>>, vector<4x32x128xf32>,
    %30 = vector.shape_cast %27 : vector<64x128xf32> to vector<4x16x128xf32>
    %c0_37 = arith.constant 0 : index
    %c8_38 = arith.constant 8 : index
    %c0_39 = arith.constant 0 : index
    %31 = vector.load %arg15[%c0_37, %c8_38, %c0_39] : memref<4x32x128xf32, #tpu.memory_space<vmem>>, vector<4x16x128xf32>
    tpu.vector_store %arg15[%c0_37, %c8_38, %c0_39], %30 {strides = array<i32>} : memref<4x32x128xf32, #tpu.memory_space<vmem>>, vector<4x16x128xf32>,
    %c0_40 = arith.constant 0 : index
    %c5_41 = arith.constant 5 : index
    %c0_42 = arith.constant 0 : index
    %32 = vector.load %arg15[%c0_40, %c5_41, %c0_42] : memref<4x32x128xf32, #tpu.memory_space<vmem>>, vector<4x16x128xf32>
    %c0_43 = arith.constant 0 : index
    %c6_44 = arith.constant 6 : index
    %c0_45 = arith.constant 0 : index
    %33 = vector.load %arg15[%c0_43, %c6_44, %c0_45] : memref<4x32x128xf32, #tpu.memory_space<vmem>>, vector<4x16x128xf32>
    %c0_46 = arith.constant 0 : index
    %c7_47 = arith.constant 7 : index
    %c0_48 = arith.constant 0 : index
    %34 = vector.load %arg15[%c0_46, %c7_47, %c0_48] : memref<4x32x128xf32, #tpu.memory_space<vmem>>, vector<4x16x128xf32>
    %c0_49 = arith.constant 0 : index
    %c8_50 = arith.constant 8 : index
    %c0_51 = arith.constant 0 : index
    %35 = vector.load %arg15[%c0_49, %c8_50, %c0_51] : memref<4x32x128xf32, #tpu.memory_space<vmem>>, vector<4x16x128xf32>
    %c0_52 = arith.constant 0 : index
    %c9_53 = arith.constant 9 : index
    %c0_54 = arith.constant 0 : index
    %36 = vector.load %arg15[%c0_52, %c9_53, %c0_54] : memref<4x32x128xf32, #tpu.memory_space<vmem>>, vector<4x16x128xf32>
    %c0_55 = arith.constant 0 : index
    %c10_56 = arith.constant 10 : index
    %c0_57 = arith.constant 0 : index
    %37 = vector.load %arg15[%c0_55, %c10_56, %c0_57] : memref<4x32x128xf32, #tpu.memory_space<vmem>>, vector<4x16x128xf32>
    %c0_58 = arith.constant 0 : index
    %c11_59 = arith.constant 11 : index
    %c0_60 = arith.constant 0 : index
    %38 = vector.load %arg15[%c0_58, %c11_59, %c0_60] : memref<4x32x128xf32, #tpu.memory_space<vmem>>, vector<4x16x128xf32>
    %39 = tpu.concatenate %32, %33, %34, %35, %36, %37, %38 in 2 : vector<4x16x128xf32>, vector<4x16x128xf32>, vector<4x16x128xf32>, vector<4x16x128xf32>, vector<4x16x128xf32>, vector<4x16x128xf32>, vector<4x16x128xf32> -> vector<4x16x896xf32>
    %40 = vector.shape_cast %39 : vector<4x16x896xf32> to vector<64x896xf32>
    %c0_61 = arith.constant 0 : index
    %c0_62 = arith.constant 0 : index
    %41 = vector.load %arg5[%c0_61, %c0_62] : memref<896x128xf32, #tpu.memory_space<vmem>>, vector<896x128xf32>
    %cst_63 = arith.constant dense<0.000000e+00> : vector<64x128xf32>
    %42 = tpu.matmul %40, %41, %cst_63 {dimension_numbers = #tpu.dot_dimension_numbers<[1], [0], [0], [1], [0, 0, 1, 1], [], []>} : vector<64x896xf32>, vector<896x128xf32>, vector<64x128xf32> -> vector<64x128xf32>
    %c0_64 = arith.constant 0 : index
    %c0_65 = arith.constant 0 : index
    %43 = vector.load %arg6[%c0_64, %c0_65] : memref<1x128xf32, #tpu.memory_space<vmem>>, vector<1x128xf32>
    %44 = vector.broadcast %43 : vector<1x128xf32> to vector<64x128xf32>
    %45 = arith.addf %42, %44 : vector<64x128xf32>
    %cst_66 = arith.constant 0.000000e+00 : f32
    %46 = vector.broadcast %cst_66 : f32 to vector<64x128xf32>
    %47 = arith.maximumf %45, %46 : vector<64x128xf32>
    %48 = vector.shape_cast %47 : vector<64x128xf32> to vector<4x16x128xf32>
    %cst_67 = arith.constant dense<0.000000e+00> : vector<4x128xf32>
    %49 = vector.multi_reduction <add>, %48, %cst_67 [1] : vector<4x16x128xf32> to vector<4x128xf32>
    %cst_68 = arith.constant 1.600000e+01 : f32
    %50 = vector.broadcast %cst_68 : f32 to vector<4x128xf32>
    %51 = arith.divf %49, %50 : vector<4x128xf32>
    %c0_69 = arith.constant 0 : index
    %c0_70 = arith.constant 0 : index
    %52 = vector.load %arg7[%c0_69, %c0_70] : memref<128x256xf32, #tpu.memory_space<vmem>>, vector<128x256xf32>
    %cst_71 = arith.constant dense<0.000000e+00> : vector<4x256xf32>
    %53 = tpu.matmul %51, %52, %cst_71 {dimension_numbers = #tpu.dot_dimension_numbers<[1], [0], [0], [1], [0, 0, 1, 1], [], []>} : vector<4x128xf32>, vector<128x256xf32>, vector<4x256xf32> -> vector<4x256xf32>
    %c0_72 = arith.constant 0 : index
    %c0_73 = arith.constant 0 : index
    %54 = vector.load %arg8[%c0_72, %c0_73] : memref<1x256xf32, #tpu.memory_space<vmem>>, vector<1x256xf32>
    %55 = vector.broadcast %54 : vector<1x256xf32> to vector<4x256xf32>
    %56 = arith.addf %53, %55 : vector<4x256xf32>
    %cst_74 = arith.constant 0.000000e+00 : f32
    %57 = vector.broadcast %cst_74 : f32 to vector<4x256xf32>
    %58 = arith.maximumf %56, %57 : vector<4x256xf32>
    %c0_75 = arith.constant 0 : index
    %c0_76 = arith.constant 0 : index
    %59 = vector.load %arg9[%c0_75, %c0_76] : memref<256x256xf32, #tpu.memory_space<vmem>>, vector<256x256xf32>
    %cst_77 = arith.constant dense<0.000000e+00> : vector<4x256xf32>
    %60 = tpu.matmul %58, %59, %cst_77 {dimension_numbers = #tpu.dot_dimension_numbers<[1], [0], [0], [1], [0, 0, 1, 1], [], []>} : vector<4x256xf32>, vector<256x256xf32>, vector<4x256xf32> -> vector<4x256xf32>
    %c0_78 = arith.constant 0 : index
    %c0_79 = arith.constant 0 : index
    %61 = vector.load %arg10[%c0_78, %c0_79] : memref<1x256xf32, #tpu.memory_space<vmem>>, vector<1x256xf32>
    %62 = vector.broadcast %61 : vector<1x256xf32> to vector<4x256xf32>
    %63 = arith.addf %60, %62 : vector<4x256xf32>
    %cst_80 = arith.constant 0.000000e+00 : f32
    %64 = vector.broadcast %cst_80 : f32 to vector<4x256xf32>
    %65 = arith.maximumf %63, %64 : vector<4x256xf32>
    %c0_81 = arith.constant 0 : index
    %c0_82 = arith.constant 0 : index
    %66 = vector.load %arg11[%c0_81, %c0_82] : memref<256x256xf32, #tpu.memory_space<vmem>>, vector<256x256xf32>
    %cst_83 = arith.constant dense<0.000000e+00> : vector<4x256xf32>
    %67 = tpu.matmul %65, %66, %cst_83 {dimension_numbers = #tpu.dot_dimension_numbers<[1], [0], [0], [1], [0, 0, 1, 1], [], []>} : vector<4x256xf32>, vector<256x256xf32>, vector<4x256xf32> -> vector<4x256xf32>
    %c0_84 = arith.constant 0 : index
    %c0_85 = arith.constant 0 : index
    %68 = vector.load %arg12[%c0_84, %c0_85] : memref<1x256xf32, #tpu.memory_space<vmem>>, vector<1x256xf32>
    %69 = vector.broadcast %68 : vector<1x256xf32> to vector<4x256xf32>
    %70 = arith.addf %67, %69 : vector<4x256xf32>
    %c0_86 = arith.constant 0 : index
    %c0_87 = arith.constant 0 : index
    %71 = vector.load %arg13[%c0_86, %c0_87] : memref<4x256xf32, #tpu.memory_space<vmem>>, vector<4x256xf32>
    tpu.vector_store %arg13[%c0_86, %c0_87], %70 {strides = array<i32>} : memref<4x256xf32, #tpu.memory_space<vmem>>, vector<4x256xf32>,
    return
  }
}

module attributes {stable_mosaic.version = 11 : i64} {
  func.func @branch_kernel(%arg0: memref<64x70xf32, #tpu.memory_space<vmem>>, %arg1: memref<70x128xf32, #tpu.memory_space<vmem>>, %arg2: memref<1x128xf32, #tpu.memory_space<vmem>>, %arg3: memref<896x128xf32, #tpu.memory_space<vmem>>, %arg4: memref<1x128xf32, #tpu.memory_space<vmem>>, %arg5: memref<896x128xf32, #tpu.memory_space<vmem>>, %arg6: memref<1x128xf32, #tpu.memory_space<vmem>>, %arg7: memref<128x256xf32, #tpu.memory_space<vmem>>, %arg8: memref<1x256xf32, #tpu.memory_space<vmem>>, %arg9: memref<256x256xf32, #tpu.memory_space<vmem>>, %arg10: memref<1x256xf32, #tpu.memory_space<vmem>>, %arg11: memref<256x256xf32, #tpu.memory_space<vmem>>, %arg12: memref<1x256xf32, #tpu.memory_space<vmem>>, %arg13: memref<4x256xf32, #tpu.memory_space<vmem>>, %arg14: memref<4x32x128xf32, #tpu.memory_space<vmem>>, %arg15: memref<4x32x128xf32, #tpu.memory_space<vmem>>) attributes {dimension_semantics = [], scalar_prefetch = 0 : i64, scratch_operands = 2 : i64, tpu.core_type = #tpu.core_type<tc>} {
    %c0 = arith.constant 0 : index
    %c0_0 = arith.constant 0 : index
    %0 = vector.load %arg0[%c0, %c0_0] : memref<64x70xf32, #tpu.memory_space<vmem>>, vector<64x70xf32>
    %c0_1 = arith.constant 0 : index
    %c0_2 = arith.constant 0 : index
    %1 = vector.load %arg1[%c0_1, %c0_2] : memref<70x128xf32, #tpu.memory_space<vmem>>, vector<70x128xf32>
    %cst = arith.constant dense<0.000000e+00> : vector<64x128xf32>
    %2 = tpu.matmul %0, %1, %cst {dimension_numbers = #tpu.dot_dimension_numbers<[1], [0], [0], [1], [0, 0, 1, 1], [], []>} : vector<64x70xf32>, vector<70x128xf32>, vector<64x128xf32> -> vector<64x128xf32>
    %c0_3 = arith.constant 0 : index
    %c0_4 = arith.constant 0 : index
    %3 = vector.load %arg2[%c0_3, %c0_4] : memref<1x128xf32, #tpu.memory_space<vmem>>, vector<1x128xf32>
    %4 = vector.broadcast %3 : vector<1x128xf32> to vector<64x128xf32>
    %5 = arith.addf %2, %4 : vector<64x128xf32>
    %cst_5 = arith.constant 0.000000e+00 : f32
    %6 = vector.broadcast %cst_5 : f32 to vector<64x128xf32>
    %7 = arith.maximumf %5, %6 : vector<64x128xf32>
    %cst_6 = arith.constant 0.000000e+00 : f32
    %8 = vector.broadcast %cst_6 : f32 to vector<4x32x128xf32>
    %c0_7 = arith.constant 0 : index
    %c0_8 = arith.constant 0 : index
    %c0_9 = arith.constant 0 : index
    %9 = vector.load %arg14[%c0_7, %c0_8, %c0_9] : memref<4x32x128xf32, #tpu.memory_space<vmem>>, vector<4x32x128xf32>
    tpu.vector_store %arg14[%c0_7, %c0_8, %c0_9], %8 {strides = array<i32>} : memref<4x32x128xf32, #tpu.memory_space<vmem>>, vector<4x32x128xf32>,
    %10 = vector.shape_cast %7 : vector<64x128xf32> to vector<4x16x128xf32>
    %c0_10 = arith.constant 0 : index
    %c8 = arith.constant 8 : index
    %c0_11 = arith.constant 0 : index
    %11 = vector.load %arg14[%c0_10, %c8, %c0_11] : memref<4x32x128xf32, #tpu.memory_space<vmem>>, vector<4x16x128xf32>
    tpu.vector_store %arg14[%c0_10, %c8, %c0_11], %10 {strides = array<i32>} : memref<4x32x128xf32, #tpu.memory_space<vmem>>, vector<4x16x128xf32>,
    %c0_12 = arith.constant 0 : index
    %c5 = arith.constant 5 : index
    %c0_13 = arith.constant 0 : index
    %12 = vector.load %arg14[%c0_12, %c5, %c0_13] : memref<4x32x128xf32, #tpu.memory_space<vmem>>, vector<4x16x128xf32>
    %c0_14 = arith.constant 0 : index
    %c6 = arith.constant 6 : index
    %c0_15 = arith.constant 0 : index
    %13 = vector.load %arg14[%c0_14, %c6, %c0_15] : memref<4x32x128xf32, #tpu.memory_space<vmem>>, vector<4x16x128xf32>
    %c0_16 = arith.constant 0 : index
    %c7 = arith.constant 7 : index
    %c0_17 = arith.constant 0 : index
    %14 = vector.load %arg14[%c0_16, %c7, %c0_17] : memref<4x32x128xf32, #tpu.memory_space<vmem>>, vector<4x16x128xf32>
    %c0_18 = arith.constant 0 : index
    %c8_19 = arith.constant 8 : index
    %c0_20 = arith.constant 0 : index
    %15 = vector.load %arg14[%c0_18, %c8_19, %c0_20] : memref<4x32x128xf32, #tpu.memory_space<vmem>>, vector<4x16x128xf32>
    %c0_21 = arith.constant 0 : index
    %c9 = arith.constant 9 : index
    %c0_22 = arith.constant 0 : index
    %16 = vector.load %arg14[%c0_21, %c9, %c0_22] : memref<4x32x128xf32, #tpu.memory_space<vmem>>, vector<4x16x128xf32>
    %c0_23 = arith.constant 0 : index
    %c10 = arith.constant 10 : index
    %c0_24 = arith.constant 0 : index
    %17 = vector.load %arg14[%c0_23, %c10, %c0_24] : memref<4x32x128xf32, #tpu.memory_space<vmem>>, vector<4x16x128xf32>
    %c0_25 = arith.constant 0 : index
    %c11 = arith.constant 11 : index
    %c0_26 = arith.constant 0 : index
    %18 = vector.load %arg14[%c0_25, %c11, %c0_26] : memref<4x32x128xf32, #tpu.memory_space<vmem>>, vector<4x16x128xf32>
    %19 = tpu.concatenate %12, %13, %14, %15, %16, %17, %18 in 2 : vector<4x16x128xf32>, vector<4x16x128xf32>, vector<4x16x128xf32>, vector<4x16x128xf32>, vector<4x16x128xf32>, vector<4x16x128xf32>, vector<4x16x128xf32> -> vector<4x16x896xf32>
    %20 = vector.shape_cast %19 : vector<4x16x896xf32> to vector<64x896xf32>
    %c0_27 = arith.constant 0 : index
    %c0_28 = arith.constant 0 : index
    %21 = vector.load %arg3[%c0_27, %c0_28] : memref<896x128xf32, #tpu.memory_space<vmem>>, vector<896x128xf32>
    %cst_29 = arith.constant dense<0.000000e+00> : vector<64x128xf32>
    %22 = tpu.matmul %20, %21, %cst_29 {dimension_numbers = #tpu.dot_dimension_numbers<[1], [0], [0], [1], [0, 0, 1, 1], [], []>} : vector<64x896xf32>, vector<896x128xf32>, vector<64x128xf32> -> vector<64x128xf32>
    %c0_30 = arith.constant 0 : index
    %c0_31 = arith.constant 0 : index
    %23 = vector.load %arg4[%c0_30, %c0_31] : memref<1x128xf32, #tpu.memory_space<vmem>>, vector<1x128xf32>
    %24 = vector.broadcast %23 : vector<1x128xf32> to vector<64x128xf32>
    %25 = arith.addf %22, %24 : vector<64x128xf32>
    %cst_32 = arith.constant 0.000000e+00 : f32
    %26 = vector.broadcast %cst_32 : f32 to vector<64x128xf32>
    %27 = arith.maximumf %25, %26 : vector<64x128xf32>
    %cst_33 = arith.constant 0.000000e+00 : f32
    %28 = vector.broadcast %cst_33 : f32 to vector<4x32x128xf32>
    %c0_34 = arith.constant 0 : index
    %c0_35 = arith.constant 0 : index
    %c0_36 = arith.constant 0 : index
    %29 = vector.load %arg15[%c0_34, %c0_35, %c0_36] : memref<4x32x128xf32, #tpu.memory_space<vmem>>, vector<4x32x128xf32>
    tpu.vector_store %arg15[%c0_34, %c0_35, %c0_36], %28 {strides = array<i32>} : memref<4x32x128xf32, #tpu.memory_space<vmem>>, vector<4x32x128xf32>,
    %30 = vector.shape_cast %27 : vector<64x128xf32> to vector<4x16x128xf32>
    %c0_37 = arith.constant 0 : index
    %c8_38 = arith.constant 8 : index
    %c0_39 = arith.constant 0 : index
    %31 = vector.load %arg15[%c0_37, %c8_38, %c0_39] : memref<4x32x128xf32, #tpu.memory_space<vmem>>, vector<4x16x128xf32>
    tpu.vector_store %arg15[%c0_37, %c8_38, %c0_39], %30 {strides = array<i32>} : memref<4x32x128xf32, #tpu.memory_space<vmem>>, vector<4x16x128xf32>,
    %c0_40 = arith.constant 0 : index
    %c5_41 = arith.constant 5 : index
    %c0_42 = arith.constant 0 : index
    %32 = vector.load %arg15[%c0_40, %c5_41, %c0_42] : memref<4x32x128xf32, #tpu.memory_space<vmem>>, vector<4x16x128xf32>
    %c0_43 = arith.constant 0 : index
    %c6_44 = arith.constant 6 : index
    %c0_45 = arith.constant 0 : index
    %33 = vector.load %arg15[%c0_43, %c6_44, %c0_45] : memref<4x32x128xf32, #tpu.memory_space<vmem>>, vector<4x16x128xf32>
    %c0_46 = arith.constant 0 : index
    %c7_47 = arith.constant 7 : index
    %c0_48 = arith.constant 0 : index
    %34 = vector.load %arg15[%c0_46, %c7_47, %c0_48] : memref<4x32x128xf32, #tpu.memory_space<vmem>>, vector<4x16x128xf32>
    %c0_49 = arith.constant 0 : index
    %c8_50 = arith.constant 8 : index
    %c0_51 = arith.constant 0 : index
    %35 = vector.load %arg15[%c0_49, %c8_50, %c0_51] : memref<4x32x128xf32, #tpu.memory_space<vmem>>, vector<4x16x128xf32>
    %c0_52 = arith.constant 0 : index
    %c9_53 = arith.constant 9 : index
    %c0_54 = arith.constant 0 : index
    %36 = vector.load %arg15[%c0_52, %c9_53, %c0_54] : memref<4x32x128xf32, #tpu.memory_space<vmem>>, vector<4x16x128xf32>
    %c0_55 = arith.constant 0 : index
    %c10_56 = arith.constant 10 : index
    %c0_57 = arith.constant 0 : index
    %37 = vector.load %arg15[%c0_55, %c10_56, %c0_57] : memref<4x32x128xf32, #tpu.memory_space<vmem>>, vector<4x16x128xf32>
    %c0_58 = arith.constant 0 : index
    %c11_59 = arith.constant 11 : index
    %c0_60 = arith.constant 0 : index
    %38 = vector.load %arg15[%c0_58, %c11_59, %c0_60] : memref<4x32x128xf32, #tpu.memory_space<vmem>>, vector<4x16x128xf32>
    %39 = tpu.concatenate %32, %33, %34, %35, %36, %37, %38 in 2 : vector<4x16x128xf32>, vector<4x16x128xf32>, vector<4x16x128xf32>, vector<4x16x128xf32>, vector<4x16x128xf32>, vector<4x16x128xf32>, vector<4x16x128xf32> -> vector<4x16x896xf32>
    %40 = vector.shape_cast %39 : vector<4x16x896xf32> to vector<64x896xf32>
    %c0_61 = arith.constant 0 : index
    %c0_62 = arith.constant 0 : index
    %41 = vector.load %arg5[%c0_61, %c0_62] : memref<896x128xf32, #tpu.memory_space<vmem>>, vector<896x128xf32>
    %cst_63 = arith.constant dense<0.000000e+00> : vector<64x128xf32>
    %42 = tpu.matmul %40, %41, %cst_63 {dimension_numbers = #tpu.dot_dimension_numbers<[1], [0], [0], [1], [0, 0, 1, 1], [], []>} : vector<64x896xf32>, vector<896x128xf32>, vector<64x128xf32> -> vector<64x128xf32>
    %c0_64 = arith.constant 0 : index
    %c0_65 = arith.constant 0 : index
    %43 = vector.load %arg6[%c0_64, %c0_65] : memref<1x128xf32, #tpu.memory_space<vmem>>, vector<1x128xf32>
    %44 = vector.broadcast %43 : vector<1x128xf32> to vector<64x128xf32>
    %45 = arith.addf %42, %44 : vector<64x128xf32>
    %cst_66 = arith.constant 0.000000e+00 : f32
    %46 = vector.broadcast %cst_66 : f32 to vector<64x128xf32>
    %47 = arith.maximumf %45, %46 : vector<64x128xf32>
    %48 = vector.shape_cast %47 : vector<64x128xf32> to vector<4x16x128xf32>
    %cst_67 = arith.constant dense<0.000000e+00> : vector<4x128xf32>
    %49 = vector.multi_reduction <add>, %48, %cst_67 [1] : vector<4x16x128xf32> to vector<4x128xf32>
    %cst_68 = arith.constant 1.600000e+01 : f32
    %50 = vector.broadcast %cst_68 : f32 to vector<4x128xf32>
    %51 = arith.divf %49, %50 : vector<4x128xf32>
    %c0_69 = arith.constant 0 : index
    %c0_70 = arith.constant 0 : index
    %52 = vector.load %arg7[%c0_69, %c0_70] : memref<128x256xf32, #tpu.memory_space<vmem>>, vector<128x256xf32>
    %cst_71 = arith.constant dense<0.000000e+00> : vector<4x256xf32>
    %53 = tpu.matmul %51, %52, %cst_71 {dimension_numbers = #tpu.dot_dimension_numbers<[1], [0], [0], [1], [0, 0, 1, 1], [], []>} : vector<4x128xf32>, vector<128x256xf32>, vector<4x256xf32> -> vector<4x256xf32>
    %c0_72 = arith.constant 0 : index
    %c0_73 = arith.constant 0 : index
    %54 = vector.load %arg8[%c0_72, %c0_73] : memref<1x256xf32, #tpu.memory_space<vmem>>, vector<1x256xf32>
    %55 = vector.broadcast %54 : vector<1x256xf32> to vector<4x256xf32>
    %56 = arith.addf %53, %55 : vector<4x256xf32>
    %cst_74 = arith.constant 0.000000e+00 : f32
    %57 = vector.broadcast %cst_74 : f32 to vector<4x256xf32>
    %58 = arith.maximumf %56, %57 : vector<4x256xf32>
    %c0_75 = arith.constant 0 : index
    %c0_76 = arith.constant 0 : index
    %59 = vector.load %arg9[%c0_75, %c0_76] : memref<256x256xf32, #tpu.memory_space<vmem>>, vector<256x256xf32>
    %cst_77 = arith.constant dense<0.000000e+00> : vector<4x256xf32>
    %60 = tpu.matmul %58, %59, %cst_77 {dimension_numbers = #tpu.dot_dimension_numbers<[1], [0], [0], [1], [0, 0, 1, 1], [], []>} : vector<4x256xf32>, vector<256x256xf32>, vector<4x256xf32> -> vector<4x256xf32>
    %c0_78 = arith.constant 0 : index
    %c0_79 = arith.constant 0 : index
    %61 = vector.load %arg10[%c0_78, %c0_79] : memref<1x256xf32, #tpu.memory_space<vmem>>, vector<1x256xf32>
    %62 = vector.broadcast %61 : vector<1x256xf32> to vector<4x256xf32>
    %63 = arith.addf %60, %62 : vector<4x256xf32>
    %cst_80 = arith.constant 0.000000e+00 : f32
    %64 = vector.broadcast %cst_80 : f32 to vector<4x256xf32>
    %65 = arith.maximumf %63, %64 : vector<4x256xf32>
    %c0_81 = arith.constant 0 : index
    %c0_82 = arith.constant 0 : index
    %66 = vector.load %arg11[%c0_81, %c0_82] : memref<256x256xf32, #tpu.memory_space<vmem>>, vector<256x256xf32>
    %cst_83 = arith.constant dense<0.000000e+00> : vector<4x256xf32>
    %67 = tpu.matmul %65, %66, %cst_83 {dimension_numbers = #tpu.dot_dimension_numbers<[1], [0], [0], [1], [0, 0, 1, 1], [], []>} : vector<4x256xf32>, vector<256x256xf32>, vector<4x256xf32> -> vector<4x256xf32>
    %c0_84 = arith.constant 0 : index
    %c0_85 = arith.constant 0 : index
    %68 = vector.load %arg12[%c0_84, %c0_85] : memref<1x256xf32, #tpu.memory_space<vmem>>, vector<1x256xf32>
    %69 = vector.broadcast %68 : vector<1x256xf32> to vector<4x256xf32>
    %70 = arith.addf %67, %69 : vector<4x256xf32>
    %c0_86 = arith.constant 0 : index
    %c0_87 = arith.constant 0 : index
    %71 = vector.load %arg13[%c0_86, %c0_87] : memref<4x256xf32, #tpu.memory_space<vmem>>, vector<4x256xf32>
    tpu.vector_store %arg13[%c0_86, %c0_87], %70 {strides = array<i32>} : memref<4x256xf32, #tpu.memory_space<vmem>>, vector<4x256xf32>,
    return
  }
}

</mosaic_0001>

<llo_original>
// kernel: vicreg_forward.2
$region0: #{vicreg_forward.2}
  #allocation0 [shape = 'u32[]', space=smem, size = 0x4, offset = 0x4, fixed_abs, tag = 'smem constant byte address 0x4 - core index']
  #allocation1 [shape = 'u32[144,128]{1,0:T(1,128)}', space=vmem, size = 0x12000, scoped, tag = 'internal scratch']
  #allocation2 [shape = 'f32[4,32,128]{2,1,0:T(8,128)}', space=vmem, size = 0x10000, scoped, tag = 'scratch operand']
  #allocation3 [shape = 'f32[4,32,128]{2,1,0:T(8,128)}', space=vmem, size = 0x10000, scoped, tag = 'scratch operand']
  %s0 = inlined_call_operand.vmem [shape: f32[64,14], index: 0, kind: input, shape index: {}]
  %s1 = inlined_call_operand.vmem [shape: f32[14,128], index: 1, kind: input, shape index: {}]
  %s2 = inlined_call_operand.vmem [shape: f32[1,128], index: 2, kind: input, shape index: {}]
  %s3 = inlined_call_operand.vmem [shape: f32[896,128], index: 3, kind: input, shape index: {}]
  %s4 = inlined_call_operand.vmem [shape: f32[1,128], index: 4, kind: input, shape index: {}]
  %s5 = inlined_call_operand.vmem [shape: f32[896,128], index: 5, kind: input, shape index: {}]
  %s6 = inlined_call_operand.vmem [shape: f32[1,128], index: 6, kind: input, shape index: {}]
  %s7 = inlined_call_operand.vmem [shape: f32[128,256], index: 7, kind: input, shape index: {}]
  %s8 = inlined_call_operand.vmem [shape: f32[1,256], index: 8, kind: input, shape index: {}]
  %s9 = inlined_call_operand.vmem [shape: f32[256,256], index: 9, kind: input, shape index: {}]
  %s10 = inlined_call_operand.vmem [shape: f32[1,256], index: 10, kind: input, shape index: {}]
  %s11 = inlined_call_operand.vmem [shape: f32[256,256], index: 11, kind: input, shape index: {}]
  %s12 = inlined_call_operand.vmem [shape: f32[1,256], index: 12, kind: input, shape index: {}]
  %s13 = inlined_call_operand.hbm [shape: f32[4,256], index: 13, kind: output, shape index: {}]
  %s14 = sld [smem:[#allocation0]]
  $region62: #{vicreg_forward.2} parent=0
    _
  %s16 = ssub.s32 1, %s14
  %s17 = scalar_select 0, %s16, %s14
  $region1: #{vicreg_forward.2} parent=0
    #allocation4 [shape = 'u8[4096]{0}', space=vmem, size = 0x1000, scoped, tag = 'output window, operand 0, single buffered']
    #allocation5 [shape = 's32[1]{0}', space=sflag, size = 0x4, scoped, tag = 'scoped memory for vicreg_forward.2']
    %18 = vsyncpa [#allocation5], 0
    // Predicated region
    $region2: #{vicreg_forward.2} parent=1 // pred_check
      _
    $region3: #{vicreg_forward.2} parent=1 // pred_check_branch
      %20 = sbr.rel (0) target = $region5
    $region4: #{vicreg_forward.2} parent=1 // pred_region
      _
    $region5: #{vicreg_forward.2} parent=1 // pred_fallthru
      _
    // Predicated region
    $region6: #{vicreg_forward.2} parent=1 // pred_check
      _
    $region7: #{vicreg_forward.2} parent=1 // pred_check_branch
      %22 = sbr.rel (0) target = $region9
    $region8: #{vicreg_forward.2} parent=1 // pred_region
      _
    $region9: #{vicreg_forward.2} parent=1 // pred_fallthru
      _
    // Predicated region
    $region10: #{vicreg_forward.2} parent=1 // pred_check
      _
    $region11: #{vicreg_forward.2} parent=1 // pred_check_branch
      %24 = sbr.rel (0) target = $region13
    $region12: #{vicreg_forward.2} parent=1 // pred_region
      _
    $region13: #{vicreg_forward.2} parent=1 // pred_fallthru
      _
    // Predicated region
    $region14: #{vicreg_forward.2} parent=1 // pred_check
      _
    $region15: #{vicreg_forward.2} parent=1 // pred_check_branch
      %26 = sbr.rel (0) target = $region17
    $region16: #{vicreg_forward.2} parent=1 // pred_region
      _
    $region17: #{vicreg_forward.2} parent=1 // pred_fallthru
      _
    // Predicated region
    $region18: #{vicreg_forward.2} parent=1 // pred_check
      _
    $region19: #{vicreg_forward.2} parent=1 // pred_check_branch
      %28 = sbr.rel (0) target = $region21
    $region20: #{vicreg_forward.2} parent=1 // pred_region
      _
    $region21: #{vicreg_forward.2} parent=1 // pred_fallthru
      _
    // Predicated region
    $region22: #{vicreg_forward.2} parent=1 // pred_check
      _
    $region23: #{vicreg_forward.2} parent=1 // pred_check_branch
      %30 = sbr.rel (0) target = $region25
    $region24: #{vicreg_forward.2} parent=1 // pred_region
      _
    $region25: #{vicreg_forward.2} parent=1 // pred_fallthru
      _
    // Predicated region
    $region26: #{vicreg_forward.2} parent=1 // pred_check
      _
    $region27: #{vicreg_forward.2} parent=1 // pred_check_branch
      %32 = sbr.rel (0) target = $region29
    $region28: #{vicreg_forward.2} parent=1 // pred_region
      _
    $region29: #{vicreg_forward.2} parent=1 // pred_fallthru
      _
    // Predicated region
    $region30: #{vicreg_forward.2} parent=1 // pred_check
      _
    $region31: #{vicreg_forward.2} parent=1 // pred_check_branch
      %34 = sbr.rel (0) target = $region33
    $region32: #{vicreg_forward.2} parent=1 // pred_region
      _
    $region33: #{vicreg_forward.2} parent=1 // pred_fallthru
      _
    // Predicated region
    $region34: #{vicreg_forward.2} parent=1 // pred_check
      _
    $region35: #{vicreg_forward.2} parent=1 // pred_check_branch
      %36 = sbr.rel (0) target = $region37
    $region36: #{vicreg_forward.2} parent=1 // pred_region
      _
    $region37: #{vicreg_forward.2} parent=1 // pred_fallthru
      _
    // Predicated region
    $region38: #{vicreg_forward.2} parent=1 // pred_check
      _
    $region39: #{vicreg_forward.2} parent=1 // pred_check_branch
      %38 = sbr.rel (0) target = $region41
    $region40: #{vicreg_forward.2} parent=1 // pred_region
      _
    $region41: #{vicreg_forward.2} parent=1 // pred_fallthru
      _
    // Predicated region
    $region42: #{vicreg_forward.2} parent=1 // pred_check
      _
    $region43: #{vicreg_forward.2} parent=1 // pred_check_branch
      %40 = sbr.rel (0) target = $region45
    $region44: #{vicreg_forward.2} parent=1 // pred_region
      _
    $region45: #{vicreg_forward.2} parent=1 // pred_fallthru
      _
    // Predicated region
    $region46: #{vicreg_forward.2} parent=1 // pred_check
      _
    $region47: #{vicreg_forward.2} parent=1 // pred_check_branch
      %42 = sbr.rel (0) target = $region49
    $region48: #{vicreg_forward.2} parent=1 // pred_region
      _
    $region49: #{vicreg_forward.2} parent=1 // pred_fallthru
      _
    // Predicated region
    $region50: #{vicreg_forward.2} parent=1 // pred_check
      _
    $region51: #{vicreg_forward.2} parent=1 // pred_check_branch
      %44 = sbr.rel (0) target = $region53
    $region52: #{vicreg_forward.2} parent=1 // pred_region
      _
    $region53: #{vicreg_forward.2} parent=1 // pred_fallthru
      _
    %v45 = vld [vmem:[%s0] sm:$0xff]
    %v46 = vld [vmem:[%s0 + $0x8] sm:$0xff]
    %v47 = vld [vmem:[%s0 + $0x10] sm:$0xff]
    %v48 = vld [vmem:[%s0 + $0x18] sm:$0xff]
    %v49 = vld [vmem:[%s0 + $0x20] sm:$0xff]
    %v50 = vld [vmem:[%s0 + $0x28] sm:$0xff]
    %v51 = vld [vmem:[%s0 + $0x30] sm:$0xff]
    %v52 = vld [vmem:[%s0 + $0x38] sm:$0xff]
    %v53 = vld [vmem:[%s1] sm:$0xff]
    %v54 = vld [vmem:[%s1 + $0x8] sm:$0x3f]
    %v55 = vld [vmem:[%s2] sm:$0x1]
    %v57 = vlaneseq
    %v58 = vshrl.u32 %v57, 7
    %v59 = vsub.s32 0, %v58
    %v60 = vrot.slane %v55, %v59
    %vm62 = vcmask 113664
    %v64 = vsel %vm62, %v45, 0
    %v67 = vsel %vm62, %v46, 0
    %v70 = vsel %vm62, %v47, 0
    %v73 = vsel %vm62, %v48, 0
    %v76 = vsel %vm62, %v49, 0
    %v79 = vsel %vm62, %v50, 0
    %v82 = vsel %vm62, %v51, 0
    %v85 = vsel %vm62, %v52, 0
    %vm87 = vcmask 1045504
    %v89 = vsel %vm87, %v54, 0
    %91 = vmatprep.subr.mxu0 0.0
    %92 = vmatpush1.msra.mxu0 %v53
    %93 = vmatprep.subr.mxu0 0.0
    %94 = vmatpush1.msra.mxu0 %v89
    %95 = vmatprep.subr.mxu0 0.0
    %96 = vmatpush1.msra.mxu0 0.0
    %97 = vmatprep.subr.mxu0 0.0
    %98 = vmatpush1.msra.mxu0 0.0
    %99 = vmatprep.subr.mxu0 0.0
    %100 = vmatpush1.msra.mxu0 0.0
    %101 = vmatprep.subr.mxu0 0.0
    %102 = vmatpush1.msra.mxu0 0.0
    %103 = vmatprep.subr.mxu0 0.0
    %104 = vmatpush1.msra.mxu0 0.0
    %105 = vmatprep.subr.mxu0 0.0
    %106 = vmatpush1.msra.mxu0 0.0
    %107 = vmatprep.subr.mxu0 0.0
    %108 = vmatpush1.msra.mxu0 0.0
    %109 = vmatprep.subr.mxu0 0.0
    %110 = vmatpush1.msra.mxu0 0.0
    %111 = vmatprep.subr.mxu0 0.0
    %112 = vmatpush1.msra.mxu0 0.0
    %113 = vmatprep.subr.mxu0 0.0
    %114 = vmatpush1.msra.mxu0 0.0
    %115 = vmatprep.subr.mxu0 0.0
    %116 = vmatpush1.msra.mxu0 0.0
    %117 = vmatprep.subr.mxu0 0.0
    %118 = vmatpush1.msra.mxu0 0.0
    %119 = vmatprep.subr.mxu0 0.0
    %120 = vmatpush1.msra.mxu0 0.0
    %121 = vmatprep.subr.mxu0 0.0
    %122 = vmatpush1.msra.mxu0 0.0
    %123 = vmatprep.subr.mxu0 0.0
    %124 = vmatpush1.msra.mxu0 0.0
    %125 = vmatprep.subr.mxu0 0.0
    %126 = vmatpush1.msra.mxu0 0.0
    %127 = vmatprep.subr.mxu0 0.0
    %128 = vmatpush1.msra.mxu0 0.0
    %129 = vmatprep.subr.mxu0 0.0
    %130 = vmatpush1.msra.mxu0 0.0
    %131 = vmatprep.subr.mxu0 0.0
    %132 = vmatpush1.msra.mxu0 0.0
    %133 = vmatprep.subr.mxu0 0.0
    %134 = vmatpush1.msra.mxu0 0.0
    %135 = vmatprep.subr.mxu0 0.0
    %136 = vmatpush1.msra.mxu0 0.0
    %137 = vmatprep.subr.mxu0 0.0
    %138 = vmatpush1.msra.mxu0 0.0
    %139 = vmatprep.subr.mxu0 0.0
    %140 = vmatpush1.msra.mxu0 0.0
    %141 = vmatprep.subr.mxu0 0.0
    %142 = vmatpush1.msra.mxu0 0.0
    %143 = vmatprep.subr.mxu0 0.0
    %144 = vmatpush1.msra.mxu0 0.0
    %145 = vmatprep.subr.mxu0 0.0
    %146 = vmatpush1.msra.mxu0 0.0
    %147 = vmatprep.subr.mxu0 0.0
    %148 = vmatpush1.msra.mxu0 0.0
    %149 = vmatprep.subr.mxu0 0.0
    %150 = vmatpush1.msra.mxu0 0.0
    %151 = vmatprep.subr.mxu0 0.0
    %152 = vmatpush1.msra.mxu0 0.0
    %153 = vmatprep.subr.mxu0 0.0
    %154 = vmatpush1.msra.mxu0 0.0
    %155 = vmatprep.mubr.f32.mxu0 0.0
    %156 = vmatmul.mubr.f32.gmra.mrb[0].mxu0 %v64
    %v157 = vpop.f32.mrb[0].mxu0
    %v158 = vadd.f32 %v60, %v157
    %v159 = vpop.f32.mrb[0].mxu0
    %160 = vmatprep.mubr.f32.mxu0 0.0
    %161 = vmatmul.mubr.f32.gmra.mrb[0].mxu0 %v67
    %v162 = vpop.f32.mrb[0].mxu0
    %v163 = vadd.f32 %v60, %v162
    %v164 = vpop.f32.mrb[0].mxu0
    %165 = vmatprep.mubr.f32.mxu0 0.0
    %166 = vmatmul.mubr.f32.gmra.mrb[0].mxu0 %v70
    %v167 = vpop.f32.mrb[0].mxu0
    %v168 = vadd.f32 %v60, %v167
    %v169 = vpop.f32.mrb[0].mxu0
    %170 = vmatprep.mubr.f32.mxu0 0.0
    %171 = vmatmul.mubr.f32.gmra.mrb[0].mxu0 %v73
    %v172 = vpop.f32.mrb[0].mxu0
    %v173 = vadd.f32 %v60, %v172
    %v174 = vpop.f32.mrb[0].mxu0
    %175 = vmatprep.mubr.f32.mxu0 0.0
    %176 = vmatmul.mubr.f32.gmra.mrb[0].mxu0 %v76
    %v177 = vpop.f32.mrb[0].mxu0
    %v178 = vadd.f32 %v60, %v177
    %v179 = vpop.f32.mrb[0].mxu0
    %180 = vmatprep.mubr.f32.mxu0 0.0
    %181 = vmatmul.mubr.f32.gmra.mrb[0].mxu0 %v79
    %v182 = vpop.f32.mrb[0].mxu0
    %v183 = vadd.f32 %v60, %v182
    %v184 = vpop.f32.mrb[0].mxu0
    %185 = vmatprep.mubr.f32.mxu0 0.0
    %186 = vmatmul.mubr.f32.gmra.mrb[0].mxu0 %v82
    %v187 = vpop.f32.mrb[0].mxu0
    %v188 = vadd.f32 %v60, %v187
    %v189 = vpop.f32.mrb[0].mxu0
    %190 = vmatprep.mubr.f32.mxu0 0.0
    %191 = vmatmul.mubr.f32.gmra.mrb[0].mxu0 %v85
    %v192 = vpop.f32.mrb[0].mxu0
    %v193 = vadd.f32 %v60, %v192
    %v194 = vpop.f32.mrb[0].mxu0
    %195 = vdwg.mxu0
    %v196 = vmax.f32 %v158, 0.0
    %v197 = vmax.f32 %v163, 0.0
    %v198 = vmax.f32 %v168, 0.0
    %v199 = vmax.f32 %v173, 0.0
    %v200 = vmax.f32 %v178, 0.0
    %v201 = vmax.f32 %v183, 0.0
    %v202 = vmax.f32 %v188, 0.0
    %v203 = vmax.f32 %v193, 0.0
    %204 = vst [vmem:[#allocation2] sm:$0xff] 0.0
    %205 = vst [vmem:[#allocation2 + $0x8] sm:$0xff] 0.0
    %206 = vst [vmem:[#allocation2 + $0x10] sm:$0xff] 0.0
    %207 = vst [vmem:[#allocation2 + $0x18] sm:$0xff] 0.0
    %208 = vst [vmem:[#allocation2 + $0x20] sm:$0xff] 0.0
    %209 = vst [vmem:[#allocation2 + $0x28] sm:$0xff] 0.0
    %210 = vst [vmem:[#allocation2 + $0x30] sm:$0xff] 0.0
    %211 = vst [vmem:[#allocation2 + $0x38] sm:$0xff] 0.0
    %212 = vst [vmem:[#allocation2 + $0x40] sm:$0xff] 0.0
    %213 = vst [vmem:[#allocation2 + $0x48] sm:$0xff] 0.0
    %214 = vst [vmem:[#allocation2 + $0x50] sm:$0xff] 0.0
    %215 = vst [vmem:[#allocation2 + $0x58] sm:$0xff] 0.0
    %216 = vst [vmem:[#allocation2 + $0x60] sm:$0xff] 0.0
    %217 = vst [vmem:[#allocation2 + $0x68] sm:$0xff] 0.0
    %218 = vst [vmem:[#allocation2 + $0x70] sm:$0xff] 0.0
    %219 = vst [vmem:[#allocation2 + $0x78] sm:$0xff] 0.0
    %220 = vst [vmem:[#allocation2 + $0x8] sm:$0xff] %v196
    %221 = vst [vmem:[#allocation2 + $0x10] sm:$0xff] %v197
    %222 = vst [vmem:[#allocation2 + $0x28] sm:$0xff] %v198
    %223 = vst [vmem:[#allocation2 + $0x30] sm:$0xff] %v199
    %224 = vst [vmem:[#allocation2 + $0x48] sm:$0xff] %v200
    %225 = vst [vmem:[#allocation2 + $0x50] sm:$0xff] %v201
    %226 = vst [vmem:[#allocation2 + $0x68] sm:$0xff] %v202
    %227 = vst [vmem:[#allocation2 + $0x70] sm:$0xff] %v203
    %v228 = vld [vmem:[#allocation2 + $0x5] sm:$0xff]
    %v229 = vld [vmem:[#allocation2 + $0xd] sm:$0xff]
    %v230 = vld [vmem:[#allocation2 + $0x25] sm:$0xff]
    %v231 = vld [vmem:[#allocation2 + $0x2d] sm:$0xff]
    %v232 = vld [vmem:[#allocation2 + $0x45] sm:$0xff]
    %v233 = vld [vmem:[#allocation2 + $0x4d] sm:$0xff]
    %v234 = vld [vmem:[#allocation2 + $0x65] sm:$0xff]
    %v235 = vld [vmem:[#allocation2 + $0x6d] sm:$0xff]
    %v236 = vld [vmem:[#allocation2 + $0x6] sm:$0xff]
    %v237 = vld [vmem:[#allocation2 + $0xe] sm:$0xff]
    %v238 = vld [vmem:[#allocation2 + $0x26] sm:$0xff]
    %v239 = vld [vmem:[#allocation2 + $0x2e] sm:$0xff]
    %v240 = vld [vmem:[#allocation2 + $0x46] sm:$0xff]
    %v241 = vld [vmem:[#allocation2 + $0x4e] sm:$0xff]
    %v242 = vld [vmem:[#allocation2 + $0x66] sm:$0xff]
    %v243 = vld [vmem:[#allocation2 + $0x6e] sm:$0xff]
    %v244 = vld [vmem:[#allocation2 + $0x7] sm:$0xff]
    %v245 = vld [vmem:[#allocation2 + $0xf] sm:$0xff]
    %v246 = vld [vmem:[#allocation2 + $0x27] sm:$0xff]
    %v247 = vld [vmem:[#allocation2 + $0x2f] sm:$0xff]
    %v248 = vld [vmem:[#allocation2 + $0x47] sm:$0xff]
    %v249 = vld [vmem:[#allocation2 + $0x4f] sm:$0xff]
    %v250 = vld [vmem:[#allocation2 + $0x67] sm:$0xff]
    %v251 = vld [vmem:[#allocation2 + $0x6f] sm:$0xff]
    %v252 = vld [vmem:[#allocation2 + $0x8] sm:$0xff]
    %v253 = vld [vmem:[#allocation2 + $0x10] sm:$0xff]
    %v254 = vld [vmem:[#allocation2 + $0x28] sm:$0xff]
    %v255 = vld [vmem:[#allocation2 + $0x30] sm:$0xff]
    %v256 = vld [vmem:[#allocation2 + $0x48] sm:$0xff]
    %v257 = vld [vmem:[#allocation2 + $0x50] sm:$0xff]
    %v258 = vld [vmem:[#allocation2 + $0x68] sm:$0xff]
    %v259 = vld [vmem:[#allocation2 + $0x70] sm:$0xff]
    %v260 = vld [vmem:[#allocation2 + $0x9] sm:$0xff]
    %v261 = vld [vmem:[#allocation2 + $0x11] sm:$0xff]
    %v262 = vld [vmem:[#allocation2 + $0x29] sm:$0xff]
    %v263 = vld [vmem:[#allocation2 + $0x31] sm:$0xff]
    %v264 = vld [vmem:[#allocation2 + $0x49] sm:$0xff]
    %v265 = vld [vmem:[#allocation2 + $0x51] sm:$0xff]
    %v266 = vld [vmem:[#allocation2 + $0x69] sm:$0xff]
    %v267 = vld [vmem:[#allocation2 + $0x71] sm:$0xff]
    %v268 = vld [vmem:[#allocation2 + $0xa] sm:$0xff]
    %v269 = vld [vmem:[#allocation2 + $0x12] sm:$0xff]
    %v270 = vld [vmem:[#allocation2 + $0x2a] sm:$0xff]
    %v271 = vld [vmem:[#allocation2 + $0x32] sm:$0xff]
    %v272 = vld [vmem:[#allocation2 + $0x4a] sm:$0xff]
    %v273 = vld [vmem:[#allocation2 + $0x52] sm:$0xff]
    %v274 = vld [vmem:[#allocation2 + $0x6a] sm:$0xff]
    %v275 = vld [vmem:[#allocation2 + $0x72] sm:$0xff]
    %v276 = vld [vmem:[#allocation2 + $0xb] sm:$0xff]
    %v277 = vld [vmem:[#allocation2 + $0x13] sm:$0xff]
    %v278 = vld [vmem:[#allocation2 + $0x2b] sm:$0xff]
    %v279 = vld [vmem:[#allocation2 + $0x33] sm:$0xff]
    %v280 = vld [vmem:[#allocation2 + $0x4b] sm:$0xff]
    %v281 = vld [vmem:[#allocation2 + $0x53] sm:$0xff]
    %v282 = vld [vmem:[#allocation2 + $0x6b] sm:$0xff]
    %v283 = vld [vmem:[#allocation2 + $0x73] sm:$0xff]
    %v284 = vld [vmem:[%s3] sm:$0xff]
    %v285 = vld [vmem:[%s3 + $0x8] sm:$0xff]
    %v286 = vld [vmem:[%s3 + $0x10] sm:$0xff]
    %v287 = vld [vmem:[%s3 + $0x18] sm:$0xff]
    %v288 = vld [vmem:[%s3 + $0x20] sm:$0xff]
    %v289 = vld [vmem:[%s3 + $0x28] sm:$0xff]
    %v290 = vld [vmem:[%s3 + $0x30] sm:$0xff]
    %v291 = vld [vmem:[%s3 + $0x38] sm:$0xff]
    %v292 = vld [vmem:[%s3 + $0x40] sm:$0xff]
    %v293 = vld [vmem:[%s3 + $0x48] sm:$0xff]
    %v294 = vld [vmem:[%s3 + $0x50] sm:$0xff]
    %v295 = vld [vmem:[%s3 + $0x58] sm:$0xff]
    %v296 = vld [vmem:[%s3 + $0x60] sm:$0xff]
    %v297 = vld [vmem:[%s3 + $0x68] sm:$0xff]
    %v298 = vld [vmem:[%s3 + $0x70] sm:$0xff]
    %v299 = vld [vmem:[%s3 + $0x78] sm:$0xff]
    %v300 = vld [vmem:[%s3 + $0x80] sm:$0xff]
    %v301 = vld [vmem:[%s3 + $0x88] sm:$0xff]
    %v302 = vld [vmem:[%s3 + $0x90] sm:$0xff]
    %v303 = vld [vmem:[%s3 + $0x98] sm:$0xff]
    %v304 = vld [vmem:[%s3 + $0xa0] sm:$0xff]
    %v305 = vld [vmem:[%s3 + $0xa8] sm:$0xff]
    %v306 = vld [vmem:[%s3 + $0xb0] sm:$0xff]
    %v307 = vld [vmem:[%s3 + $0xb8] sm:$0xff]
    %v308 = vld [vmem:[%s3 + $0xc0] sm:$0xff]
    %v309 = vld [vmem:[%s3 + $0xc8] sm:$0xff]
    %v310 = vld [vmem:[%s3 + $0xd0] sm:$0xff]
    %v311 = vld [vmem:[%s3 + $0xd8] sm:$0xff]
    %v312 = vld [vmem:[%s3 + $0xe0] sm:$0xff]
    %v313 = vld [vmem:[%s3 + $0xe8] sm:$0xff]
    %v314 = vld [vmem:[%s3 + $0xf0] sm:$0xff]
    %v315 = vld [vmem:[%s3 + $0xf8] sm:$0xff]
    %v316 = vld [vmem:[%s3 + $0x100] sm:$0xff]
    %v317 = vld [vmem:[%s3 + $0x108] sm:$0xff]
    %v318 = vld [vmem:[%s3 + $0x110] sm:$0xff]
    %v319 = vld [vmem:[%s3 + $0x118] sm:$0xff]
    %v320 = vld [vmem:[%s3 + $0x120] sm:$0xff]
    %v321 = vld [vmem:[%s3 + $0x128] sm:$0xff]
    %v322 = vld [vmem:[%s3 + $0x130] sm:$0xff]
    %v323 = vld [vmem:[%s3 + $0x138] sm:$0xff]
    %v324 = vld [vmem:[%s3 + $0x140] sm:$0xff]
    %v325 = vld [vmem:[%s3 + $0x148] sm:$0xff]
    %v326 = vld [vmem:[%s3 + $0x150] sm:$0xff]
    %v327 = vld [vmem:[%s3 + $0x158] sm:$0xff]
    %v328 = vld [vmem:[%s3 + $0x160] sm:$0xff]
    %v329 = vld [vmem:[%s3 + $0x168] sm:$0xff]
    %v330 = vld [vmem:[%s3 + $0x170] sm:$0xff]
    %v331 = vld [vmem:[%s3 + $0x178] sm:$0xff]
    %v332 = vld [vmem:[%s3 + $0x180] sm:$0xff]
    %v333 = vld [vmem:[%s3 + $0x188] sm:$0xff]
    %v334 = vld [vmem:[%s3 + $0x190] sm:$0xff]
    %v335 = vld [vmem:[%s3 + $0x198] sm:$0xff]
    %v336 = vld [vmem:[%s3 + $0x1a0] sm:$0xff]
    %v337 = vld [vmem:[%s3 + $0x1a8] sm:$0xff]
    %v338 = vld [vmem:[%s3 + $0x1b0] sm:$0xff]
    %v339 = vld [vmem:[%s3 + $0x1b8] sm:$0xff]
    %v340 = vld [vmem:[%s3 + $0x1c0] sm:$0xff]
    %v341 = vld [vmem:[%s3 + $0x1c8] sm:$0xff]
    %v342 = vld [vmem:[%s3 + $0x1d0] sm:$0xff]
    %v343 = vld [vmem:[%s3 + $0x1d8] sm:$0xff]
    %v344 = vld [vmem:[%s3 + $0x1e0] sm:$0xff]
    %v345 = vld [vmem:[%s3 + $0x1e8] sm:$0xff]
    %v346 = vld [vmem:[%s3 + $0x1f0] sm:$0xff]
    %v347 = vld [vmem:[%s3 + $0x1f8] sm:$0xff]
    %v348 = vld [vmem:[%s3 + $0x200] sm:$0xff]
    %v349 = vld [vmem:[%s3 + $0x208] sm:$0xff]
    %v350 = vld [vmem:[%s3 + $0x210] sm:$0xff]
    %v351 = vld [vmem:[%s3 + $0x218] sm:$0xff]
    %v352 = vld [vmem:[%s3 + $0x220] sm:$0xff]
    %v353 = vld [vmem:[%s3 + $0x228] sm:$0xff]
    %v354 = vld [vmem:[%s3 + $0x230] sm:$0xff]
    %v355 = vld [vmem:[%s3 + $0x238] sm:$0xff]
    %v356 = vld [vmem:[%s3 + $0x240] sm:$0xff]
    %v357 = vld [vmem:[%s3 + $0x248] sm:$0xff]
    %v358 = vld [vmem:[%s3 + $0x250] sm:$0xff]
    %v359 = vld [vmem:[%s3 + $0x258] sm:$0xff]
    %v360 = vld [vmem:[%s3 + $0x260] sm:$0xff]
    %v361 = vld [vmem:[%s3 + $0x268] sm:$0xff]
    %v362 = vld [vmem:[%s3 + $0x270] sm:$0xff]
    %v363 = vld [vmem:[%s3 + $0x278] sm:$0xff]
    %v364 = vld [vmem:[%s3 + $0x280] sm:$0xff]
    %v365 = vld [vmem:[%s3 + $0x288] sm:$0xff]
    %v366 = vld [vmem:[%s3 + $0x290] sm:$0xff]
    %v367 = vld [vmem:[%s3 + $0x298] sm:$0xff]
    %v368 = vld [vmem:[%s3 + $0x2a0] sm:$0xff]
    %v369 = vld [vmem:[%s3 + $0x2a8] sm:$0xff]
    %v370 = vld [vmem:[%s3 + $0x2b0] sm:$0xff]
    %v371 = vld [vmem:[%s3 + $0x2b8] sm:$0xff]
    %v372 = vld [vmem:[%s3 + $0x2c0] sm:$0xff]
    %v373 = vld [vmem:[%s3 + $0x2c8] sm:$0xff]
    %v374 = vld [vmem:[%s3 + $0x2d0] sm:$0xff]
    %v375 = vld [vmem:[%s3 + $0x2d8] sm:$0xff]
    %v376 = vld [vmem:[%s3 + $0x2e0] sm:$0xff]
    %v377 = vld [vmem:[%s3 + $0x2e8] sm:$0xff]
    %v378 = vld [vmem:[%s3 + $0x2f0] sm:$0xff]
    %v379 = vld [vmem:[%s3 + $0x2f8] sm:$0xff]
    %v380 = vld [vmem:[%s3 + $0x300] sm:$0xff]
    %v381 = vld [vmem:[%s3 + $0x308] sm:$0xff]
    %v382 = vld [vmem:[%s3 + $0x310] sm:$0xff]
    %v383 = vld [vmem:[%s3 + $0x318] sm:$0xff]
    %v384 = vld [vmem:[%s3 + $0x320] sm:$0xff]
    %v385 = vld [vmem:[%s3 + $0x328] sm:$0xff]
    %v386 = vld [vmem:[%s3 + $0x330] sm:$0xff]
    %v387 = vld [vmem:[%s3 + $0x338] sm:$0xff]
    %v388 = vld [vmem:[%s3 + $0x340] sm:$0xff]
    %v389 = vld [vmem:[%s3 + $0x348] sm:$0xff]
    %v390 = vld [vmem:[%s3 + $0x350] sm:$0xff]
    %v391 = vld [vmem:[%s3 + $0x358] sm:$0xff]
    %v392 = vld [vmem:[%s3 + $0x360] sm:$0xff]
    %v393 = vld [vmem:[%s3 + $0x368] sm:$0xff]
    %v394 = vld [vmem:[%s3 + $0x370] sm:$0xff]
    %v395 = vld [vmem:[%s3 + $0x378] sm:$0xff]
    %v396 = vld [vmem:[%s4] sm:$0x1]
    %v398 = vlaneseq
    %v399 = vshrl.u32 %v398, 7
    %v400 = vsub.s32 0, %v399
    %v401 = vrot.slane %v396, %v400
    %403 = vmatprep.subr.mxu0 0.0
    %404 = vmatpush1.msra.mxu0 %v284
    %405 = vmatprep.subr.mxu0 0.0
    %406 = vmatpush1.msra.mxu0 %v285
    %407 = vmatprep.subr.mxu0 0.0
    %408 = vmatpush1.msra.mxu0 %v286
    %409 = vmatprep.subr.mxu0 0.0
    %410 = vmatpush1.msra.mxu0 %v287
    %411 = vmatprep.subr.mxu0 0.0
    %412 = vmatpush1.msra.mxu0 %v288
    %413 = vmatprep.subr.mxu0 0.0
    %414 = vmatpush1.msra.mxu0 %v289
    %415 = vmatprep.subr.mxu0 0.0
    %416 = vmatpush1.msra.mxu0 %v290
    %417 = vmatprep.subr.mxu0 0.0
    %418 = vmatpush1.msra.mxu0 %v291
    %419 = vmatprep.subr.mxu0 0.0
    %420 = vmatpush1.msra.mxu0 %v292
    %421 = vmatprep.subr.mxu0 0.0
    %422 = vmatpush1.msra.mxu0 %v293
    %423 = vmatprep.subr.mxu0 0.0
    %424 = vmatpush1.msra.mxu0 %v294
    %425 = vmatprep.subr.mxu0 0.0
    %426 = vmatpush1.msra.mxu0 %v295
    %427 = vmatprep.subr.mxu0 0.0
    %428 = vmatpush1.msra.mxu0 %v296
    %429 = vmatprep.subr.mxu0 0.0
    %430 = vmatpush1.msra.mxu0 %v297
    %431 = vmatprep.subr.mxu0 0.0
    %432 = vmatpush1.msra.mxu0 %v298
    %433 = vmatprep.subr.mxu0 0.0
    %434 = vmatpush1.msra.mxu0 %v299
    %435 = vmatprep.subr.mxu0 0.0
    %436 = vmatpush1.msra.mxu0 %v300
    %437 = vmatprep.subr.mxu0 0.0
    %438 = vmatpush1.msra.mxu0 %v301
    %439 = vmatprep.subr.mxu0 0.0
    %440 = vmatpush1.msra.mxu0 %v302
    %441 = vmatprep.subr.mxu0 0.0
    %442 = vmatpush1.msra.mxu0 %v303
    %443 = vmatprep.subr.mxu0 0.0
    %444 = vmatpush1.msra.mxu0 %v304
    %445 = vmatprep.subr.mxu0 0.0
    %446 = vmatpush1.msra.mxu0 %v305
    %447 = vmatprep.subr.mxu0 0.0
    %448 = vmatpush1.msra.mxu0 %v306
    %449 = vmatprep.subr.mxu0 0.0
    %450 = vmatpush1.msra.mxu0 %v307
    %451 = vmatprep.subr.mxu0 0.0
    %452 = vmatpush1.msra.mxu0 %v308
    %453 = vmatprep.subr.mxu0 0.0
    %454 = vmatpush1.msra.mxu0 %v309
    %455 = vmatprep.subr.mxu0 0.0
    %456 = vmatpush1.msra.mxu0 %v310
    %457 = vmatprep.subr.mxu0 0.0
    %458 = vmatpush1.msra.mxu0 %v311
    %459 = vmatprep.subr.mxu0 0.0
    %460 = vmatpush1.msra.mxu0 %v312
    %461 = vmatprep.subr.mxu0 0.0
    %462 = vmatpush1.msra.mxu0 %v313
    %463 = vmatprep.subr.mxu0 0.0
    %464 = vmatpush1.msra.mxu0 %v314
    %465 = vmatprep.subr.mxu0 0.0
    %466 = vmatpush1.msra.mxu0 %v315
    %467 = vmatprep.mubr.f32.mxu0 %v236
    %468 = vmatmul.mubr.f32.gmra.mrb[0].mxu0 %v228
    %v469 = vpop.f32.mrb[0].mxu0
    %v470 = vadd.f32 %v401, %v469
    %v471 = vpop.f32.mrb[0].mxu0
    %472 = vmatprep.mubr.f32.mxu0 %v237
    %473 = vmatmul.mubr.f32.gmra.mrb[0].mxu0 %v229
    %v474 = vpop.f32.mrb[0].mxu0
    %v475 = vadd.f32 %v401, %v474
    %v476 = vpop.f32.mrb[0].mxu0
    %477 = vmatprep.mubr.f32.mxu0 %v238
    %478 = vmatmul.mubr.f32.gmra.mrb[0].mxu0 %v230
    %v479 = vpop.f32.mrb[0].mxu0
    %v480 = vadd.f32 %v401, %v479
    %v481 = vpop.f32.mrb[0].mxu0
    %482 = vmatprep.mubr.f32.mxu0 %v239
    %483 = vmatmul.mubr.f32.gmra.mrb[0].mxu0 %v231
    %v484 = vpop.f32.mrb[0].mxu0
    %v485 = vadd.f32 %v401, %v484
    %v486 = vpop.f32.mrb[0].mxu0
    %487 = vmatprep.mubr.f32.mxu0 %v240
    %488 = vmatmul.mubr.f32.gmra.mrb[0].mxu0 %v232
    %v489 = vpop.f32.mrb[0].mxu0
    %v490 = vadd.f32 %v401, %v489
    %v491 = vpop.f32.mrb[0].mxu0
    %492 = vmatprep.mubr.f32.mxu0 %v241
    %493 = vmatmul.mubr.f32.gmra.mrb[0].mxu0 %v233
    %v494 = vpop.f32.mrb[0].mxu0
    %v495 = vadd.f32 %v401, %v494
    %v496 = vpop.f32.mrb[0].mxu0
    %497 = vmatprep.mubr.f32.mxu0 %v242
    %498 = vmatmul.mubr.f32.gmra.mrb[0].mxu0 %v234
    %v499 = vpop.f32.mrb[0].mxu0
    %v500 = vadd.f32 %v401, %v499
    %v501 = vpop.f32.mrb[0].mxu0
    %502 = vmatprep.mubr.f32.mxu0 %v243
    %503 = vmatmul.mubr.f32.gmra.mrb[0].mxu0 %v235
    %v504 = vpop.f32.mrb[0].mxu0
    %v505 = vadd.f32 %v401, %v504
    %v506 = vpop.f32.mrb[0].mxu0
    %507 = vdwg.mxu0
    %508 = vmatprep.subr.mxu0 0.0
    %509 = vmatpush1.msra.mxu0 %v316
    %510 = vmatprep.subr.mxu0 0.0
    %511 = vmatpush1.msra.mxu0 %v317
    %512 = vmatprep.subr.mxu0 0.0
    %513 = vmatpush1.msra.mxu0 %v318
    %514 = vmatprep.subr.mxu0 0.0
    %515 = vmatpush1.msra.mxu0 %v319
    %516 = vmatprep.subr.mxu0 0.0
    %517 = vmatpush1.msra.mxu0 %v320
    %518 = vmatprep.subr.mxu0 0.0
    %519 = vmatpush1.msra.mxu0 %v321
    %520 = vmatprep.subr.mxu0 0.0
    %521 = vmatpush1.msra.mxu0 %v322
    %522 = vmatprep.subr.mxu0 0.0
    %523 = vmatpush1.msra.mxu0 %v323
    %524 = vmatprep.subr.mxu0 0.0
    %525 = vmatpush1.msra.mxu0 %v324
    %526 = vmatprep.subr.mxu0 0.0
    %527 = vmatpush1.msra.mxu0 %v325
    %528 = vmatprep.subr.mxu0 0.0
    %529 = vmatpush1.msra.mxu0 %v326
    %530 = vmatprep.subr.mxu0 0.0
    %531 = vmatpush1.msra.mxu0 %v327
    %532 = vmatprep.subr.mxu0 0.0
    %533 = vmatpush1.msra.mxu0 %v328
    %534 = vmatprep.subr.mxu0 0.0
    %535 = vmatpush1.msra.mxu0 %v329
    %536 = vmatprep.subr.mxu0 0.0
    %537 = vmatpush1.msra.mxu0 %v330
    %538 = vmatprep.subr.mxu0 0.0
    %539 = vmatpush1.msra.mxu0 %v331
    %540 = vmatprep.subr.mxu0 0.0
    %541 = vmatpush1.msra.mxu0 %v332
    %542 = vmatprep.subr.mxu0 0.0
    %543 = vmatpush1.msra.mxu0 %v333
    %544 = vmatprep.subr.mxu0 0.0
    %545 = vmatpush1.msra.mxu0 %v334
    %546 = vmatprep.subr.mxu0 0.0
    %547 = vmatpush1.msra.mxu0 %v335
    %548 = vmatprep.subr.mxu0 0.0
    %549 = vmatpush1.msra.mxu0 %v336
    %550 = vmatprep.subr.mxu0 0.0
    %551 = vmatpush1.msra.mxu0 %v337
    %552 = vmatprep.subr.mxu0 0.0
    %553 = vmatpush1.msra.mxu0 %v338
    %554 = vmatprep.subr.mxu0 0.0
    %555 = vmatpush1.msra.mxu0 %v339
    %556 = vmatprep.subr.mxu0 0.0
    %557 = vmatpush1.msra.mxu0 %v340
    %558 = vmatprep.subr.mxu0 0.0
    %559 = vmatpush1.msra.mxu0 %v341
    %560 = vmatprep.subr.mxu0 0.0
    %561 = vmatpush1.msra.mxu0 %v342
    %562 = vmatprep.subr.mxu0 0.0
    %563 = vmatpush1.msra.mxu0 %v343
    %564 = vmatprep.subr.mxu0 0.0
    %565 = vmatpush1.msra.mxu0 %v344
    %566 = vmatprep.subr.mxu0 0.0
    %567 = vmatpush1.msra.mxu0 %v345
    %568 = vmatprep.subr.mxu0 0.0
    %569 = vmatpush1.msra.mxu0 %v346
    %570 = vmatprep.subr.mxu0 0.0
    %571 = vmatpush1.msra.mxu0 %v347
    %572 = vmatprep.mubr.f32.mxu0 %v252
    %573 = vmatmul.mubr.f32.gmra.mrb[0].mxu0 %v244
    %v574 = vpop.f32.mrb[0].mxu0
    %v575 = vadd.f32 %v470, %v574
    %v576 = vpop.f32.mrb[0].mxu0
    %577 = vmatprep.mubr.f32.mxu0 %v253
    %578 = vmatmul.mubr.f32.gmra.mrb[0].mxu0 %v245
    %v579 = vpop.f32.mrb[0].mxu0
    %v580 = vadd.f32 %v475, %v579
    %v581 = vpop.f32.mrb[0].mxu0
    %582 = vmatprep.mubr.f32.mxu0 %v254
    %583 = vmatmul.mubr.f32.gmra.mrb[0].mxu0 %v246
    %v584 = vpop.f32.mrb[0].mxu0
    %v585 = vadd.f32 %v480, %v584
    %v586 = vpop.f32.mrb[0].mxu0
    %587 = vmatprep.mubr.f32.mxu0 %v255
    %588 = vmatmul.mubr.f32.gmra.mrb[0].mxu0 %v247
    %v589 = vpop.f32.mrb[0].mxu0
    %v590 = vadd.f32 %v485, %v589
    %v591 = vpop.f32.mrb[0].mxu0
    %592 = vmatprep.mubr.f32.mxu0 %v256
    %593 = vmatmul.mubr.f32.gmra.mrb[0].mxu0 %v248
    %v594 = vpop.f32.mrb[0].mxu0
    %v595 = vadd.f32 %v490, %v594
    %v596 = vpop.f32.mrb[0].mxu0
    %597 = vmatprep.mubr.f32.mxu0 %v257
    %598 = vmatmul.mubr.f32.gmra.mrb[0].mxu0 %v249
    %v599 = vpop.f32.mrb[0].mxu0
    %v600 = vadd.f32 %v495, %v599
    %v601 = vpop.f32.mrb[0].mxu0
    %602 = vmatprep.mubr.f32.mxu0 %v258
    %603 = vmatmul.mubr.f32.gmra.mrb[0].mxu0 %v250
    %v604 = vpop.f32.mrb[0].mxu0
    %v605 = vadd.f32 %v500, %v604
    %v606 = vpop.f32.mrb[0].mxu0
    %607 = vmatprep.mubr.f32.mxu0 %v259
    %608 = vmatmul.mubr.f32.gmra.mrb[0].mxu0 %v251
    %v609 = vpop.f32.mrb[0].mxu0
    %v610 = vadd.f32 %v505, %v609
    %v611 = vpop.f32.mrb[0].mxu0
    %612 = vdwg.mxu0
    %613 = vmatprep.subr.mxu0 0.0
    %614 = vmatpush1.msra.mxu0 %v348
    %615 = vmatprep.subr.mxu0 0.0
    %616 = vmatpush1.msra.mxu0 %v349
    %617 = vmatprep.subr.mxu0 0.0
    %618 = vmatpush1.msra.mxu0 %v350
    %619 = vmatprep.subr.mxu0 0.0
    %620 = vmatpush1.msra.mxu0 %v351
    %621 = vmatprep.subr.mxu0 0.0
    %622 = vmatpush1.msra.mxu0 %v352
    %623 = vmatprep.subr.mxu0 0.0
    %624 = vmatpush1.msra.mxu0 %v353
    %625 = vmatprep.subr.mxu0 0.0
    %626 = vmatpush1.msra.mxu0 %v354
    %627 = vmatprep.subr.mxu0 0.0
    %628 = vmatpush1.msra.mxu0 %v355
    %629 = vmatprep.subr.mxu0 0.0
    %630 = vmatpush1.msra.mxu0 %v356
    %631 = vmatprep.subr.mxu0 0.0
    %632 = vmatpush1.msra.mxu0 %v357
    %633 = vmatprep.subr.mxu0 0.0
    %634 = vmatpush1.msra.mxu0 %v358
    %635 = vmatprep.subr.mxu0 0.0
    %636 = vmatpush1.msra.mxu0 %v359
    %637 = vmatprep.subr.mxu0 0.0
    %638 = vmatpush1.msra.mxu0 %v360
    %639 = vmatprep.subr.mxu0 0.0
    %640 = vmatpush1.msra.mxu0 %v361
    %641 = vmatprep.subr.mxu0 0.0
    %642 = vmatpush1.msra.mxu0 %v362
    %643 = vmatprep.subr.mxu0 0.0
    %644 = vmatpush1.msra.mxu0 %v363
    %645 = vmatprep.subr.mxu0 0.0
    %646 = vmatpush1.msra.mxu0 %v364
    %647 = vmatprep.subr.mxu0 0.0
    %648 = vmatpush1.msra.mxu0 %v365
    %649 = vmatprep.subr.mxu0 0.0
    %650 = vmatpush1.msra.mxu0 %v366
    %651 = vmatprep.subr.mxu0 0.0
    %652 = vmatpush1.msra.mxu0 %v367
    %653 = vmatprep.subr.mxu0 0.0
    %654 = vmatpush1.msra.mxu0 %v368
    %655 = vmatprep.subr.mxu0 0.0
    %656 = vmatpush1.msra.mxu0 %v369
    %657 = vmatprep.subr.mxu0 0.0
    %658 = vmatpush1.msra.mxu0 %v370
    %659 = vmatprep.subr.mxu0 0.0
    %660 = vmatpush1.msra.mxu0 %v371
    %661 = vmatprep.subr.mxu0 0.0
    %662 = vmatpush1.msra.mxu0 %v372
    %663 = vmatprep.subr.mxu0 0.0
    %664 = vmatpush1.msra.mxu0 %v373
    %665 = vmatprep.subr.mxu0 0.0
    %666 = vmatpush1.msra.mxu0 %v374
    %667 = vmatprep.subr.mxu0 0.0
    %668 = vmatpush1.msra.mxu0 %v375
    %669 = vmatprep.subr.mxu0 0.0
    %670 = vmatpush1.msra.mxu0 %v376
    %671 = vmatprep.subr.mxu0 0.0
    %672 = vmatpush1.msra.mxu0 %v377
    %673 = vmatprep.subr.mxu0 0.0
    %674 = vmatpush1.msra.mxu0 %v378
    %675 = vmatprep.subr.mxu0 0.0
    %676 = vmatpush1.msra.mxu0 %v379
    %677 = vmatprep.mubr.f32.mxu0 %v268
    %678 = vmatmul.mubr.f32.gmra.mrb[0].mxu0 %v260
    %v679 = vpop.f32.mrb[0].mxu0
    %v680 = vadd.f32 %v575, %v679
    %v681 = vpop.f32.mrb[0].mxu0
    %682 = vmatprep.mubr.f32.mxu0 %v269
    %683 = vmatmul.mubr.f32.gmra.mrb[0].mxu0 %v261
    %v684 = vpop.f32.mrb[0].mxu0
    %v685 = vadd.f32 %v580, %v684
    %v686 = vpop.f32.mrb[0].mxu0
    %687 = vmatprep.mubr.f32.mxu0 %v270
    %688 = vmatmul.mubr.f32.gmra.mrb[0].mxu0 %v262
    %v689 = vpop.f32.mrb[0].mxu0
    %v690 = vadd.f32 %v585, %v689
    %v691 = vpop.f32.mrb[0].mxu0
    %692 = vmatprep.mubr.f32.mxu0 %v271
    %693 = vmatmul.mubr.f32.gmra.mrb[0].mxu0 %v263
    %v694 = vpop.f32.mrb[0].mxu0
    %v695 = vadd.f32 %v590, %v694
    %v696 = vpop.f32.mrb[0].mxu0
    %697 = vmatprep.mubr.f32.mxu0 %v272
    %698 = vmatmul.mubr.f32.gmra.mrb[0].mxu0 %v264
    %v699 = vpop.f32.mrb[0].mxu0
    %v700 = vadd.f32 %v595, %v699
    %v701 = vpop.f32.mrb[0].mxu0
    %702 = vmatprep.mubr.f32.mxu0 %v273
    %703 = vmatmul.mubr.f32.gmra.mrb[0].mxu0 %v265
    %v704 = vpop.f32.mrb[0].mxu0
    %v705 = vadd.f32 %v600, %v704
    %v706 = vpop.f32.mrb[0].mxu0
    %707 = vmatprep.mubr.f32.mxu0 %v274
    %708 = vmatmul.mubr.f32.gmra.mrb[0].mxu0 %v266
    %v709 = vpop.f32.mrb[0].mxu0
    %v710 = vadd.f32 %v605, %v709
    %v711 = vpop.f32.mrb[0].mxu0
    %712 = vmatprep.mubr.f32.mxu0 %v275
    %713 = vmatmul.mubr.f32.gmra.mrb[0].mxu0 %v267
    %v714 = vpop.f32.mrb[0].mxu0
    %v715 = vadd.f32 %v610, %v714
    %v716 = vpop.f32.mrb[0].mxu0
    %717 = vdwg.mxu0
    %718 = vmatprep.subr.mxu0 0.0
    %719 = vmatpush1.msra.mxu0 %v380
    %720 = vmatprep.subr.mxu0 0.0
    %721 = vmatpush1.msra.mxu0 %v381
    %722 = vmatprep.subr.mxu0 0.0
    %723 = vmatpush1.msra.mxu0 %v382
    %724 = vmatprep.subr.mxu0 0.0
    %725 = vmatpush1.msra.mxu0 %v383
    %726 = vmatprep.subr.mxu0 0.0
    %727 = vmatpush1.msra.mxu0 %v384
    %728 = vmatprep.subr.mxu0 0.0
    %729 = vmatpush1.msra.mxu0 %v385
    %730 = vmatprep.subr.mxu0 0.0
    %731 = vmatpush1.msra.mxu0 %v386
    %732 = vmatprep.subr.mxu0 0.0
    %733 = vmatpush1.msra.mxu0 %v387
    %734 = vmatprep.subr.mxu0 0.0
    %735 = vmatpush1.msra.mxu0 %v388
    %736 = vmatprep.subr.mxu0 0.0
    %737 = vmatpush1.msra.mxu0 %v389
    %738 = vmatprep.subr.mxu0 0.0
    %739 = vmatpush1.msra.mxu0 %v390
    %740 = vmatprep.subr.mxu0 0.0
    %741 = vmatpush1.msra.mxu0 %v391
    %742 = vmatprep.subr.mxu0 0.0
    %743 = vmatpush1.msra.mxu0 %v392
    %744 = vmatprep.subr.mxu0 0.0
    %745 = vmatpush1.msra.mxu0 %v393
    %746 = vmatprep.subr.mxu0 0.0
    %747 = vmatpush1.msra.mxu0 %v394
    %748 = vmatprep.subr.mxu0 0.0
    %749 = vmatpush1.msra.mxu0 %v395
    %750 = vmatprep.subr.mxu0 0.0
    %751 = vmatpush1.msra.mxu0 0.0
    %752 = vmatprep.subr.mxu0 0.0
    %753 = vmatpush1.msra.mxu0 0.0
    %754 = vmatprep.subr.mxu0 0.0
    %755 = vmatpush1.msra.mxu0 0.0
    %756 = vmatprep.subr.mxu0 0.0
    %757 = vmatpush1.msra.mxu0 0.0
    %758 = vmatprep.subr.mxu0 0.0
    %759 = vmatpush1.msra.mxu0 0.0
    %760 = vmatprep.subr.mxu0 0.0
    %761 = vmatpush1.msra.mxu0 0.0
    %762 = vmatprep.subr.mxu0 0.0
    %763 = vmatpush1.msra.mxu0 0.0
    %764 = vmatprep.subr.mxu0 0.0
    %765 = vmatpush1.msra.mxu0 0.0
    %766 = vmatprep.subr.mxu0 0.0
    %767 = vmatpush1.msra.mxu0 0.0
    %768 = vmatprep.subr.mxu0 0.0
    %769 = vmatpush1.msra.mxu0 0.0
    %770 = vmatprep.subr.mxu0 0.0
    %771 = vmatpush1.msra.mxu0 0.0
    %772 = vmatprep.subr.mxu0 0.0
    %773 = vmatpush1.msra.mxu0 0.0
    %774 = vmatprep.subr.mxu0 0.0
    %775 = vmatpush1.msra.mxu0 0.0
    %776 = vmatprep.subr.mxu0 0.0
    %777 = vmatpush1.msra.mxu0 0.0
    %778 = vmatprep.subr.mxu0 0.0
    %779 = vmatpush1.msra.mxu0 0.0
    %780 = vmatprep.subr.mxu0 0.0
    %781 = vmatpush1.msra.mxu0 0.0
    %782 = vmatprep.mubr.f32.mxu0 0.0
    %783 = vmatmul.mubr.f32.gmra.mrb[0].mxu0 %v276
    %v784 = vpop.f32.mrb[0].mxu0
    %v785 = vadd.f32 %v680, %v784
    %v786 = vpop.f32.mrb[0].mxu0
    %787 = vmatprep.mubr.f32.mxu0 0.0
    %788 = vmatmul.mubr.f32.gmra.mrb[0].mxu0 %v277
    %v789 = vpop.f32.mrb[0].mxu0
    %v790 = vadd.f32 %v685, %v789
    %v791 = vpop.f32.mrb[0].mxu0
    %792 = vmatprep.mubr.f32.mxu0 0.0
    %793 = vmatmul.mubr.f32.gmra.mrb[0].mxu0 %v278
    %v794 = vpop.f32.mrb[0].mxu0
    %v795 = vadd.f32 %v690, %v794
    %v796 = vpop.f32.mrb[0].mxu0
    %797 = vmatprep.mubr.f32.mxu0 0.0
    %798 = vmatmul.mubr.f32.gmra.mrb[0].mxu0 %v279
    %v799 = vpop.f32.mrb[0].mxu0
    %v800 = vadd.f32 %v695, %v799
    %v801 = vpop.f32.mrb[0].mxu0
    %802 = vmatprep.mubr.f32.mxu0 0.0
    %803 = vmatmul.mubr.f32.gmra.mrb[0].mxu0 %v280
    %v804 = vpop.f32.mrb[0].mxu0
    %v805 = vadd.f32 %v700, %v804
    %v806 = vpop.f32.mrb[0].mxu0
    %807 = vmatprep.mubr.f32.mxu0 0.0
    %808 = vmatmul.mubr.f32.gmra.mrb[0].mxu0 %v281
    %v809 = vpop.f32.mrb[0].mxu0
    %v810 = vadd.f32 %v705, %v809
    %v811 = vpop.f32.mrb[0].mxu0
    %812 = vmatprep.mubr.f32.mxu0 0.0
    %813 = vmatmul.mubr.f32.gmra.mrb[0].mxu0 %v282
    %v814 = vpop.f32.mrb[0].mxu0
    %v815 = vadd.f32 %v710, %v814
    %v816 = vpop.f32.mrb[0].mxu0
    %817 = vmatprep.mubr.f32.mxu0 0.0
    %818 = vmatmul.mubr.f32.gmra.mrb[0].mxu0 %v283
    %v819 = vpop.f32.mrb[0].mxu0
    %v820 = vadd.f32 %v715, %v819
    %v821 = vpop.f32.mrb[0].mxu0
    %822 = vdwg.mxu0
    %v823 = vmax.f32 %v785, 0.0
    %v824 = vmax.f32 %v790, 0.0
    %v825 = vmax.f32 %v795, 0.0
    %v826 = vmax.f32 %v800, 0.0
    %v827 = vmax.f32 %v805, 0.0
    %v828 = vmax.f32 %v810, 0.0
    %v829 = vmax.f32 %v815, 0.0
    %v830 = vmax.f32 %v820, 0.0
    %831 = vst [vmem:[#allocation3] sm:$0xff] 0.0
    %832 = vst [vmem:[#allocation3 + $0x8] sm:$0xff] 0.0
    %833 = vst [vmem:[#allocation3 + $0x10] sm:$0xff] 0.0
    %834 = vst [vmem:[#allocation3 + $0x18] sm:$0xff] 0.0
    %835 = vst [vmem:[#allocation3 + $0x20] sm:$0xff] 0.0
    %836 = vst [vmem:[#allocation3 + $0x28] sm:$0xff] 0.0
    %837 = vst [vmem:[#allocation3 + $0x30] sm:$0xff] 0.0
    %838 = vst [vmem:[#allocation3 + $0x38] sm:$0xff] 0.0
    %839 = vst [vmem:[#allocation3 + $0x40] sm:$0xff] 0.0
    %840 = vst [vmem:[#allocation3 + $0x48] sm:$0xff] 0.0
    %841 = vst [vmem:[#allocation3 + $0x50] sm:$0xff] 0.0
    %842 = vst [vmem:[#allocation3 + $0x58] sm:$0xff] 0.0
    %843 = vst [vmem:[#allocation3 + $0x60] sm:$0xff] 0.0
    %844 = vst [vmem:[#allocation3 + $0x68] sm:$0xff] 0.0
    %845 = vst [vmem:[#allocation3 + $0x70] sm:$0xff] 0.0
    %846 = vst [vmem:[#allocation3 + $0x78] sm:$0xff] 0.0
    %847 = vst [vmem:[#allocation3 + $0x8] sm:$0xff] %v823
    %848 = vst [vmem:[#allocation3 + $0x10] sm:$0xff] %v824
    %849 = vst [vmem:[#allocation3 + $0x28] sm:$0xff] %v825
    %850 = vst [vmem:[#allocation3 + $0x30] sm:$0xff] %v826
    %851 = vst [vmem:[#allocation3 + $0x48] sm:$0xff] %v827
    %852 = vst [vmem:[#allocation3 + $0x50] sm:$0xff] %v828
    %853 = vst [vmem:[#allocation3 + $0x68] sm:$0xff] %v829
    %854 = vst [vmem:[#allocation3 + $0x70] sm:$0xff] %v830
    %v855 = vld [vmem:[#allocation3 + $0x5] sm:$0xff]
    %v856 = vld [vmem:[#allocation3 + $0xd] sm:$0xff]
    %v857 = vld [vmem:[#allocation3 + $0x25] sm:$0xff]
    %v858 = vld [vmem:[#allocation3 + $0x2d] sm:$0xff]
    %v859 = vld [vmem:[#allocation3 + $0x45] sm:$0xff]
    %v860 = vld [vmem:[#allocation3 + $0x4d] sm:$0xff]
    %v861 = vld [vmem:[#allocation3 + $0x65] sm:$0xff]
    %v862 = vld [vmem:[#allocation3 + $0x6d] sm:$0xff]
    %v863 = vld [vmem:[#allocation3 + $0x6] sm:$0xff]
    %v864 = vld [vmem:[#allocation3 + $0xe] sm:$0xff]
    %v865 = vld [vmem:[#allocation3 + $0x26] sm:$0xff]
    %v866 = vld [vmem:[#allocation3 + $0x2e] sm:$0xff]
    %v867 = vld [vmem:[#allocation3 + $0x46] sm:$0xff]
    %v868 = vld [vmem:[#allocation3 + $0x4e] sm:$0xff]
    %v869 = vld [vmem:[#allocation3 + $0x66] sm:$0xff]
    %v870 = vld [vmem:[#allocation3 + $0x6e] sm:$0xff]
    %v871 = vld [vmem:[#allocation3 + $0x7] sm:$0xff]
    %v872 = vld [vmem:[#allocation3 + $0xf] sm:$0xff]
    %v873 = vld [vmem:[#allocation3 + $0x27] sm:$0xff]
    %v874 = vld [vmem:[#allocation3 + $0x2f] sm:$0xff]
    %v875 = vld [vmem:[#allocation3 + $0x47] sm:$0xff]
    %v876 = vld [vmem:[#allocation3 + $0x4f] sm:$0xff]
    %v877 = vld [vmem:[#allocation3 + $0x67] sm:$0xff]
    %v878 = vld [vmem:[#allocation3 + $0x6f] sm:$0xff]
    %v879 = vld [vmem:[#allocation3 + $0x8] sm:$0xff]
    %v880 = vld [vmem:[#allocation3 + $0x10] sm:$0xff]
    %v881 = vld [vmem:[#allocation3 + $0x28] sm:$0xff]
    %v882 = vld [vmem:[#allocation3 + $0x30] sm:$0xff]
    %v883 = vld [vmem:[#allocation3 + $0x48] sm:$0xff]
    %v884 = vld [vmem:[#allocation3 + $0x50] sm:$0xff]
    %v885 = vld [vmem:[#allocation3 + $0x68] sm:$0xff]
    %v886 = vld [vmem:[#allocation3 + $0x70] sm:$0xff]
    %v887 = vld [vmem:[#allocation3 + $0x9] sm:$0xff]
    %v888 = vld [vmem:[#allocation3 + $0x11] sm:$0xff]
    %v889 = vld [vmem:[#allocation3 + $0x29] sm:$0xff]
    %v890 = vld [vmem:[#allocation3 + $0x31] sm:$0xff]
    %v891 = vld [vmem:[#allocation3 + $0x49] sm:$0xff]
    %v892 = vld [vmem:[#allocation3 + $0x51] sm:$0xff]
    %v893 = vld [vmem:[#allocation3 + $0x69] sm:$0xff]
    %v894 = vld [vmem:[#allocation3 + $0x71] sm:$0xff]
    %v895 = vld [vmem:[#allocation3 + $0xa] sm:$0xff]
    %v896 = vld [vmem:[#allocation3 + $0x12] sm:$0xff]
    %v897 = vld [vmem:[#allocation3 + $0x2a] sm:$0xff]
    %v898 = vld [vmem:[#allocation3 + $0x32] sm:$0xff]
    %v899 = vld [vmem:[#allocation3 + $0x4a] sm:$0xff]
    %v900 = vld [vmem:[#allocation3 + $0x52] sm:$0xff]
    %v901 = vld [vmem:[#allocation3 + $0x6a] sm:$0xff]
    %v902 = vld [vmem:[#allocation3 + $0x72] sm:$0xff]
    %v903 = vld [vmem:[#allocation3 + $0xb] sm:$0xff]
    %v904 = vld [vmem:[#allocation3 + $0x13] sm:$0xff]
    %v905 = vld [vmem:[#allocation3 + $0x2b] sm:$0xff]
    %v906 = vld [vmem:[#allocation3 + $0x33] sm:$0xff]
    %v907 = vld [vmem:[#allocation3 + $0x4b] sm:$0xff]
    %v908 = vld [vmem:[#allocation3 + $0x53] sm:$0xff]
    %v909 = vld [vmem:[#allocation3 + $0x6b] sm:$0xff]
    %v910 = vld [vmem:[#allocation3 + $0x73] sm:$0xff]
    %v911 = vld [vmem:[%s5] sm:$0xff]
    %v912 = vld [vmem:[%s5 + $0x8] sm:$0xff]
    %v913 = vld [vmem:[%s5 + $0x10] sm:$0xff]
    %v914 = vld [vmem:[%s5 + $0x18] sm:$0xff]
    %v915 = vld [vmem:[%s5 + $0x20] sm:$0xff]
    %v916 = vld [vmem:[%s5 + $0x28] sm:$0xff]
    %v917 = vld [vmem:[%s5 + $0x30] sm:$0xff]
    %v918 = vld [vmem:[%s5 + $0x38] sm:$0xff]
    %v919 = vld [vmem:[%s5 + $0x40] sm:$0xff]
    %v920 = vld [vmem:[%s5 + $0x48] sm:$0xff]
    %v921 = vld [vmem:[%s5 + $0x50] sm:$0xff]
    %v922 = vld [vmem:[%s5 + $0x58] sm:$0xff]
    %v923 = vld [vmem:[%s5 + $0x60] sm:$0xff]
    %v924 = vld [vmem:[%s5 + $0x68] sm:$0xff]
    %v925 = vld [vmem:[%s5 + $0x70] sm:$0xff]
    %v926 = vld [vmem:[%s5 + $0x78] sm:$0xff]
    %v927 = vld [vmem:[%s5 + $0x80] sm:$0xff]
    %v928 = vld [vmem:[%s5 + $0x88] sm:$0xff]
    %v929 = vld [vmem:[%s5 + $0x90] sm:$0xff]
    %v930 = vld [vmem:[%s5 + $0x98] sm:$0xff]
    %v931 = vld [vmem:[%s5 + $0xa0] sm:$0xff]
    %v932 = vld [vmem:[%s5 + $0xa8] sm:$0xff]
    %v933 = vld [vmem:[%s5 + $0xb0] sm:$0xff]
    %v934 = vld [vmem:[%s5 + $0xb8] sm:$0xff]
    %v935 = vld [vmem:[%s5 + $0xc0] sm:$0xff]
    %v936 = vld [vmem:[%s5 + $0xc8] sm:$0xff]
    %v937 = vld [vmem:[%s5 + $0xd0] sm:$0xff]
    %v938 = vld [vmem:[%s5 + $0xd8] sm:$0xff]
    %v939 = vld [vmem:[%s5 + $0xe0] sm:$0xff]
    %v940 = vld [vmem:[%s5 + $0xe8] sm:$0xff]
    %v941 = vld [vmem:[%s5 + $0xf0] sm:$0xff]
    %v942 = vld [vmem:[%s5 + $0xf8] sm:$0xff]
    %v943 = vld [vmem:[%s5 + $0x100] sm:$0xff]
    %v944 = vld [vmem:[%s5 + $0x108] sm:$0xff]
    %v945 = vld [vmem:[%s5 + $0x110] sm:$0xff]
    %v946 = vld [vmem:[%s5 + $0x118] sm:$0xff]
    %v947 = vld [vmem:[%s5 + $0x120] sm:$0xff]
    %v948 = vld [vmem:[%s5 + $0x128] sm:$0xff]
    %v949 = vld [vmem:[%s5 + $0x130] sm:$0xff]
    %v950 = vld [vmem:[%s5 + $0x138] sm:$0xff]
    %v951 = vld [vmem:[%s5 + $0x140] sm:$0xff]
    %v952 = vld [vmem:[%s5 + $0x148] sm:$0xff]
    %v953 = vld [vmem:[%s5 + $0x150] sm:$0xff]
    %v954 = vld [vmem:[%s5 + $0x158] sm:$0xff]
    %v955 = vld [vmem:[%s5 + $0x160] sm:$0xff]
    %v956 = vld [vmem:[%s5 + $0x168] sm:$0xff]
    %v957 = vld [vmem:[%s5 + $0x170] sm:$0xff]
    %v958 = vld [vmem:[%s5 + $0x178] sm:$0xff]
    %v959 = vld [vmem:[%s5 + $0x180] sm:$0xff]
    %v960 = vld [vmem:[%s5 + $0x188] sm:$0xff]
    %v961 = vld [vmem:[%s5 + $0x190] sm:$0xff]
    %v962 = vld [vmem:[%s5 + $0x198] sm:$0xff]
    %v963 = vld [vmem:[%s5 + $0x1a0] sm:$0xff]
    %v964 = vld [vmem:[%s5 + $0x1a8] sm:$0xff]
    %v965 = vld [vmem:[%s5 + $0x1b0] sm:$0xff]
    %v966 = vld [vmem:[%s5 + $0x1b8] sm:$0xff]
    %v967 = vld [vmem:[%s5 + $0x1c0] sm:$0xff]
    %v968 = vld [vmem:[%s5 + $0x1c8] sm:$0xff]
    %v969 = vld [vmem:[%s5 + $0x1d0] sm:$0xff]
    %v970 = vld [vmem:[%s5 + $0x1d8] sm:$0xff]
    %v971 = vld [vmem:[%s5 + $0x1e0] sm:$0xff]
    %v972 = vld [vmem:[%s5 + $0x1e8] sm:$0xff]
    %v973 = vld [vmem:[%s5 + $0x1f0] sm:$0xff]
    %v974 = vld [vmem:[%s5 + $0x1f8] sm:$0xff]
    %v975 = vld [vmem:[%s5 + $0x200] sm:$0xff]
    %v976 = vld [vmem:[%s5 + $0x208] sm:$0xff]
    %v977 = vld [vmem:[%s5 + $0x210] sm:$0xff]
    %v978 = vld [vmem:[%s5 + $0x218] sm:$0xff]
    %v979 = vld [vmem:[%s5 + $0x220] sm:$0xff]
    %v980 = vld [vmem:[%s5 + $0x228] sm:$0xff]
    %v981 = vld [vmem:[%s5 + $0x230] sm:$0xff]
    %v982 = vld [vmem:[%s5 + $0x238] sm:$0xff]
    %v983 = vld [vmem:[%s5 + $0x240] sm:$0xff]
    %v984 = vld [vmem:[%s5 + $0x248] sm:$0xff]
    %v985 = vld [vmem:[%s5 + $0x250] sm:$0xff]
    %v986 = vld [vmem:[%s5 + $0x258] sm:$0xff]
    %v987 = vld [vmem:[%s5 + $0x260] sm:$0xff]
    %v988 = vld [vmem:[%s5 + $0x268] sm:$0xff]
    %v989 = vld [vmem:[%s5 + $0x270] sm:$0xff]
    %v990 = vld [vmem:[%s5 + $0x278] sm:$0xff]
    %v991 = vld [vmem:[%s5 + $0x280] sm:$0xff]
    %v992 = vld [vmem:[%s5 + $0x288] sm:$0xff]
    %v993 = vld [vmem:[%s5 + $0x290] sm:$0xff]
    %v994 = vld [vmem:[%s5 + $0x298] sm:$0xff]
    %v995 = vld [vmem:[%s5 + $0x2a0] sm:$0xff]
    %v996 = vld [vmem:[%s5 + $0x2a8] sm:$0xff]
    %v997 = vld [vmem:[%s5 + $0x2b0] sm:$0xff]
    %v998 = vld [vmem:[%s5 + $0x2b8] sm:$0xff]
    %v999 = vld [vmem:[%s5 + $0x2c0] sm:$0xff]
    %v1000 = vld [vmem:[%s5 + $0x2c8] sm:$0xff]
    %v1001 = vld [vmem:[%s5 + $0x2d0] sm:$0xff]
    %v1002 = vld [vmem:[%s5 + $0x2d8] sm:$0xff]
    %v1003 = vld [vmem:[%s5 + $0x2e0] sm:$0xff]
    %v1004 = vld [vmem:[%s5 + $0x2e8] sm:$0xff]
    %v1005 = vld [vmem:[%s5 + $0x2f0] sm:$0xff]
    %v1006 = vld [vmem:[%s5 + $0x2f8] sm:$0xff]
    %v1007 = vld [vmem:[%s5 + $0x300] sm:$0xff]
    %v1008 = vld [vmem:[%s5 + $0x308] sm:$0xff]
    %v1009 = vld [vmem:[%s5 + $0x310] sm:$0xff]
    %v1010 = vld [vmem:[%s5 + $0x318] sm:$0xff]
    %v1011 = vld [vmem:[%s5 + $0x320] sm:$0xff]
    %v1012 = vld [vmem:[%s5 + $0x328] sm:$0xff]
    %v1013 = vld [vmem:[%s5 + $0x330] sm:$0xff]
    %v1014 = vld [vmem:[%s5 + $0x338] sm:$0xff]
    %v1015 = vld [vmem:[%s5 + $0x340] sm:$0xff]
    %v1016 = vld [vmem:[%s5 + $0x348] sm:$0xff]
    %v1017 = vld [vmem:[%s5 + $0x350] sm:$0xff]
    %v1018 = vld [vmem:[%s5 + $0x358] sm:$0xff]
    %v1019 = vld [vmem:[%s5 + $0x360] sm:$0xff]
    %v1020 = vld [vmem:[%s5 + $0x368] sm:$0xff]
    %v1021 = vld [vmem:[%s5 + $0x370] sm:$0xff]
    %v1022 = vld [vmem:[%s5 + $0x378] sm:$0xff]
    %v1023 = vld [vmem:[%s6] sm:$0x1]
    %v1025 = vlaneseq
    %v1026 = vshrl.u32 %v1025, 7
    %v1027 = vsub.s32 0, %v1026
    %v1028 = vrot.slane %v1023, %v1027
    %1030 = vmatprep.subr.mxu0 0.0
    %1031 = vmatpush1.msra.mxu0 %v911
    %1032 = vmatprep.subr.mxu0 0.0
    %1033 = vmatpush1.msra.mxu0 %v912
    %1034 = vmatprep.subr.mxu0 0.0
    %1035 = vmatpush1.msra.mxu0 %v913
    %1036 = vmatprep.subr.mxu0 0.0
    %1037 = vmatpush1.msra.mxu0 %v914
    %1038 = vmatprep.subr.mxu0 0.0
    %1039 = vmatpush1.msra.mxu0 %v915
    %1040 = vmatprep.subr.mxu0 0.0
    %1041 = vmatpush1.msra.mxu0 %v916
    %1042 = vmatprep.subr.mxu0 0.0
    %1043 = vmatpush1.msra.mxu0 %v917
    %1044 = vmatprep.subr.mxu0 0.0
    %1045 = vmatpush1.msra.mxu0 %v918
    %1046 = vmatprep.subr.mxu0 0.0
    %1047 = vmatpush1.msra.mxu0 %v919
    %1048 = vmatprep.subr.mxu0 0.0
    %1049 = vmatpush1.msra.mxu0 %v920
    %1050 = vmatprep.subr.mxu0 0.0
    %1051 = vmatpush1.msra.mxu0 %v921
    %1052 = vmatprep.subr.mxu0 0.0
    %1053 = vmatpush1.msra.mxu0 %v922
    %1054 = vmatprep.subr.mxu0 0.0
    %1055 = vmatpush1.msra.mxu0 %v923
    %1056 = vmatprep.subr.mxu0 0.0
    %1057 = vmatpush1.msra.mxu0 %v924
    %1058 = vmatprep.subr.mxu0 0.0
    %1059 = vmatpush1.msra.mxu0 %v925
    %1060 = vmatprep.subr.mxu0 0.0
    %1061 = vmatpush1.msra.mxu0 %v926
    %1062 = vmatprep.subr.mxu0 0.0
    %1063 = vmatpush1.msra.mxu0 %v927
    %1064 = vmatprep.subr.mxu0 0.0
    %1065 = vmatpush1.msra.mxu0 %v928
    %1066 = vmatprep.subr.mxu0 0.0
    %1067 = vmatpush1.msra.mxu0 %v929
    %1068 = vmatprep.subr.mxu0 0.0
    %1069 = vmatpush1.msra.mxu0 %v930
    %1070 = vmatprep.subr.mxu0 0.0
    %1071 = vmatpush1.msra.mxu0 %v931
    %1072 = vmatprep.subr.mxu0 0.0
    %1073 = vmatpush1.msra.mxu0 %v932
    %1074 = vmatprep.subr.mxu0 0.0
    %1075 = vmatpush1.msra.mxu0 %v933
    %1076 = vmatprep.subr.mxu0 0.0
    %1077 = vmatpush1.msra.mxu0 %v934
    %1078 = vmatprep.subr.mxu0 0.0
    %1079 = vmatpush1.msra.mxu0 %v935
    %1080 = vmatprep.subr.mxu0 0.0
    %1081 = vmatpush1.msra.mxu0 %v936
    %1082 = vmatprep.subr.mxu0 0.0
    %1083 = vmatpush1.msra.mxu0 %v937
    %1084 = vmatprep.subr.mxu0 0.0
    %1085 = vmatpush1.msra.mxu0 %v938
    %1086 = vmatprep.subr.mxu0 0.0
    %1087 = vmatpush1.msra.mxu0 %v939
    %1088 = vmatprep.subr.mxu0 0.0
    %1089 = vmatpush1.msra.mxu0 %v940
    %1090 = vmatprep.subr.mxu0 0.0
    %1091 = vmatpush1.msra.mxu0 %v941
    %1092 = vmatprep.subr.mxu0 0.0
    %1093 = vmatpush1.msra.mxu0 %v942
    %1094 = vmatprep.mubr.f32.mxu0 %v863
    %1095 = vmatmul.mubr.f32.gmra.mrb[0].mxu0 %v855
    %v1096 = vpop.f32.mrb[0].mxu0
    %v1097 = vadd.f32 %v1028, %v1096
    %v1098 = vpop.f32.mrb[0].mxu0
    %1099 = vmatprep.mubr.f32.mxu0 %v864
    %1100 = vmatmul.mubr.f32.gmra.mrb[0].mxu0 %v856
    %v1101 = vpop.f32.mrb[0].mxu0
    %v1102 = vadd.f32 %v1028, %v1101
    %v1103 = vpop.f32.mrb[0].mxu0
    %1104 = vmatprep.mubr.f32.mxu0 %v865
    %1105 = vmatmul.mubr.f32.gmra.mrb[0].mxu0 %v857
    %v1106 = vpop.f32.mrb[0].mxu0
    %v1107 = vadd.f32 %v1028, %v1106
    %v1108 = vpop.f32.mrb[0].mxu0
    %1109 = vmatprep.mubr.f32.mxu0 %v866
    %1110 = vmatmul.mubr.f32.gmra.mrb[0].mxu0 %v858
    %v1111 = vpop.f32.mrb[0].mxu0
    %v1112 = vadd.f32 %v1028, %v1111
    %v1113 = vpop.f32.mrb[0].mxu0
    %1114 = vmatprep.mubr.f32.mxu0 %v867
    %1115 = vmatmul.mubr.f32.gmra.mrb[0].mxu0 %v859
    %v1116 = vpop.f32.mrb[0].mxu0
    %v1117 = vadd.f32 %v1028, %v1116
    %v1118 = vpop.f32.mrb[0].mxu0
    %1119 = vmatprep.mubr.f32.mxu0 %v868
    %1120 = vmatmul.mubr.f32.gmra.mrb[0].mxu0 %v860
    %v1121 = vpop.f32.mrb[0].mxu0
    %v1122 = vadd.f32 %v1028, %v1121
    %v1123 = vpop.f32.mrb[0].mxu0
    %1124 = vmatprep.mubr.f32.mxu0 %v869
    %1125 = vmatmul.mubr.f32.gmra.mrb[0].mxu0 %v861
    %v1126 = vpop.f32.mrb[0].mxu0
    %v1127 = vadd.f32 %v1028, %v1126
    %v1128 = vpop.f32.mrb[0].mxu0
    %1129 = vmatprep.mubr.f32.mxu0 %v870
    %1130 = vmatmul.mubr.f32.gmra.mrb[0].mxu0 %v862
    %v1131 = vpop.f32.mrb[0].mxu0
    %v1132 = vadd.f32 %v1028, %v1131
    %v1133 = vpop.f32.mrb[0].mxu0
    %1134 = vdwg.mxu0
    %1135 = vmatprep.subr.mxu0 0.0
    %1136 = vmatpush1.msra.mxu0 %v943
    %1137 = vmatprep.subr.mxu0 0.0
    %1138 = vmatpush1.msra.mxu0 %v944
    %1139 = vmatprep.subr.mxu0 0.0
    %1140 = vmatpush1.msra.mxu0 %v945
    %1141 = vmatprep.subr.mxu0 0.0
    %1142 = vmatpush1.msra.mxu0 %v946
    %1143 = vmatprep.subr.mxu0 0.0
    %1144 = vmatpush1.msra.mxu0 %v947
    %1145 = vmatprep.subr.mxu0 0.0
    %1146 = vmatpush1.msra.mxu0 %v948
    %1147 = vmatprep.subr.mxu0 0.0
    %1148 = vmatpush1.msra.mxu0 %v949
    %1149 = vmatprep.subr.mxu0 0.0
    %1150 = vmatpush1.msra.mxu0 %v950
    %1151 = vmatprep.subr.mxu0 0.0
    %1152 = vmatpush1.msra.mxu0 %v951
    %1153 = vmatprep.subr.mxu0 0.0
    %1154 = vmatpush1.msra.mxu0 %v952
    %1155 = vmatprep.subr.mxu0 0.0
    %1156 = vmatpush1.msra.mxu0 %v953
    %1157 = vmatprep.subr.mxu0 0.0
    %1158 = vmatpush1.msra.mxu0 %v954
    %1159 = vmatprep.subr.mxu0 0.0
    %1160 = vmatpush1.msra.mxu0 %v955
    %1161 = vmatprep.subr.mxu0 0.0
    %1162 = vmatpush1.msra.mxu0 %v956
    %1163 = vmatprep.subr.mxu0 0.0
    %1164 = vmatpush1.msra.mxu0 %v957
    %1165 = vmatprep.subr.mxu0 0.0
    %1166 = vmatpush1.msra.mxu0 %v958
    %1167 = vmatprep.subr.mxu0 0.0
    %1168 = vmatpush1.msra.mxu0 %v959
    %1169 = vmatprep.subr.mxu0 0.0
    %1170 = vmatpush1.msra.mxu0 %v960
    %1171 = vmatprep.subr.mxu0 0.0
    %1172 = vmatpush1.msra.mxu0 %v961
    %1173 = vmatprep.subr.mxu0 0.0
    %1174 = vmatpush1.msra.mxu0 %v962
    %1175 = vmatprep.subr.mxu0 0.0
    %1176 = vmatpush1.msra.mxu0 %v963
    %1177 = vmatprep.subr.mxu0 0.0
    %1178 = vmatpush1.msra.mxu0 %v964
    %1179 = vmatprep.subr.mxu0 0.0
    %1180 = vmatpush1.msra.mxu0 %v965
    %1181 = vmatprep.subr.mxu0 0.0
    %1182 = vmatpush1.msra.mxu0 %v966
    %1183 = vmatprep.subr.mxu0 0.0
    %1184 = vmatpush1.msra.mxu0 %v967
    %1185 = vmatprep.subr.mxu0 0.0
    %1186 = vmatpush1.msra.mxu0 %v968
    %1187 = vmatprep.subr.mxu0 0.0
    %1188 = vmatpush1.msra.mxu0 %v969
    %1189 = vmatprep.subr.mxu0 0.0
    %1190 = vmatpush1.msra.mxu0 %v970
    %1191 = vmatprep.subr.mxu0 0.0
    %1192 = vmatpush1.msra.mxu0 %v971
    %1193 = vmatprep.subr.mxu0 0.0
    %1194 = vmatpush1.msra.mxu0 %v972
    %1195 = vmatprep.subr.mxu0 0.0
    %1196 = vmatpush1.msra.mxu0 %v973
    %1197 = vmatprep.subr.mxu0 0.0
    %1198 = vmatpush1.msra.mxu0 %v974
    %1199 = vmatprep.mubr.f32.mxu0 %v879
    %1200 = vmatmul.mubr.f32.gmra.mrb[0].mxu0 %v871
    %v1201 = vpop.f32.mrb[0].mxu0
    %v1202 = vadd.f32 %v1097, %v1201
    %v1203 = vpop.f32.mrb[0].mxu0
    %1204 = vmatprep.mubr.f32.mxu0 %v880
    %1205 = vmatmul.mubr.f32.gmra.mrb[0].mxu0 %v872
    %v1206 = vpop.f32.mrb[0].mxu0
    %v1207 = vadd.f32 %v1102, %v1206
    %v1208 = vpop.f32.mrb[0].mxu0
    %1209 = vmatprep.mubr.f32.mxu0 %v881
    %1210 = vmatmul.mubr.f32.gmra.mrb[0].mxu0 %v873
    %v1211 = vpop.f32.mrb[0].mxu0
    %v1212 = vadd.f32 %v1107, %v1211
    %v1213 = vpop.f32.mrb[0].mxu0
    %1214 = vmatprep.mubr.f32.mxu0 %v882
    %1215 = vmatmul.mubr.f32.gmra.mrb[0].mxu0 %v874
    %v1216 = vpop.f32.mrb[0].mxu0
    %v1217 = vadd.f32 %v1112, %v1216
    %v1218 = vpop.f32.mrb[0].mxu0
    %1219 = vmatprep.mubr.f32.mxu0 %v883
    %1220 = vmatmul.mubr.f32.gmra.mrb[0].mxu0 %v875
    %v1221 = vpop.f32.mrb[0].mxu0
    %v1222 = vadd.f32 %v1117, %v1221
    %v1223 = vpop.f32.mrb[0].mxu0
    %1224 = vmatprep.mubr.f32.mxu0 %v884
    %1225 = vmatmul.mubr.f32.gmra.mrb[0].mxu0 %v876
    %v1226 = vpop.f32.mrb[0].mxu0
    %v1227 = vadd.f32 %v1122, %v1226
    %v1228 = vpop.f32.mrb[0].mxu0
    %1229 = vmatprep.mubr.f32.mxu0 %v885
    %1230 = vmatmul.mubr.f32.gmra.mrb[0].mxu0 %v877
    %v1231 = vpop.f32.mrb[0].mxu0
    %v1232 = vadd.f32 %v1127, %v1231
    %v1233 = vpop.f32.mrb[0].mxu0
    %1234 = vmatprep.mubr.f32.mxu0 %v886
    %1235 = vmatmul.mubr.f32.gmra.mrb[0].mxu0 %v878
    %v1236 = vpop.f32.mrb[0].mxu0
    %v1237 = vadd.f32 %v1132, %v1236
    %v1238 = vpop.f32.mrb[0].mxu0
    %1239 = vdwg.mxu0
    %1240 = vmatprep.subr.mxu0 0.0
    %1241 = vmatpush1.msra.mxu0 %v975
    %1242 = vmatprep.subr.mxu0 0.0
    %1243 = vmatpush1.msra.mxu0 %v976
    %1244 = vmatprep.subr.mxu0 0.0
    %1245 = vmatpush1.msra.mxu0 %v977
    %1246 = vmatprep.subr.mxu0 0.0
    %1247 = vmatpush1.msra.mxu0 %v978
    %1248 = vmatprep.subr.mxu0 0.0
    %1249 = vmatpush1.msra.mxu0 %v979
    %1250 = vmatprep.subr.mxu0 0.0
    %1251 = vmatpush1.msra.mxu0 %v980
    %1252 = vmatprep.subr.mxu0 0.0
    %1253 = vmatpush1.msra.mxu0 %v981
    %1254 = vmatprep.subr.mxu0 0.0
    %1255 = vmatpush1.msra.mxu0 %v982
    %1256 = vmatprep.subr.mxu0 0.0
    %1257 = vmatpush1.msra.mxu0 %v983
    %1258 = vmatprep.subr.mxu0 0.0
    %1259 = vmatpush1.msra.mxu0 %v984
    %1260 = vmatprep.subr.mxu0 0.0
    %1261 = vmatpush1.msra.mxu0 %v985
    %1262 = vmatprep.subr.mxu0 0.0
    %1263 = vmatpush1.msra.mxu0 %v986
    %1264 = vmatprep.subr.mxu0 0.0
    %1265 = vmatpush1.msra.mxu0 %v987
    %1266 = vmatprep.subr.mxu0 0.0
    %1267 = vmatpush1.msra.mxu0 %v988
    %1268 = vmatprep.subr.mxu0 0.0
    %1269 = vmatpush1.msra.mxu0 %v989
    %1270 = vmatprep.subr.mxu0 0.0
    %1271 = vmatpush1.msra.mxu0 %v990
    %1272 = vmatprep.subr.mxu0 0.0
    %1273 = vmatpush1.msra.mxu0 %v991
    %1274 = vmatprep.subr.mxu0 0.0
    %1275 = vmatpush1.msra.mxu0 %v992
    %1276 = vmatprep.subr.mxu0 0.0
    %1277 = vmatpush1.msra.mxu0 %v993
    %1278 = vmatprep.subr.mxu0 0.0
    %1279 = vmatpush1.msra.mxu0 %v994
    %1280 = vmatprep.subr.mxu0 0.0
    %1281 = vmatpush1.msra.mxu0 %v995
    %1282 = vmatprep.subr.mxu0 0.0
    %1283 = vmatpush1.msra.mxu0 %v996
    %1284 = vmatprep.subr.mxu0 0.0
    %1285 = vmatpush1.msra.mxu0 %v997
    %1286 = vmatprep.subr.mxu0 0.0
    %1287 = vmatpush1.msra.mxu0 %v998
    %1288 = vmatprep.subr.mxu0 0.0
    %1289 = vmatpush1.msra.mxu0 %v999
    %1290 = vmatprep.subr.mxu0 0.0
    %1291 = vmatpush1.msra.mxu0 %v1000
    %1292 = vmatprep.subr.mxu0 0.0
    %1293 = vmatpush1.msra.mxu0 %v1001
    %1294 = vmatprep.subr.mxu0 0.0
    %1295 = vmatpush1.msra.mxu0 %v1002
    %1296 = vmatprep.subr.mxu0 0.0
    %1297 = vmatpush1.msra.mxu0 %v1003
    %1298 = vmatprep.subr.mxu0 0.0
    %1299 = vmatpush1.msra.mxu0 %v1004
    %1300 = vmatprep.subr.mxu0 0.0
    %1301 = vmatpush1.msra.mxu0 %v1005
    %1302 = vmatprep.subr.mxu0 0.0
    %1303 = vmatpush1.msra.mxu0 %v1006
    %1304 = vmatprep.mubr.f32.mxu0 %v895
    %1305 = vmatmul.mubr.f32.gmra.mrb[0].mxu0 %v887
    %v1306 = vpop.f32.mrb[0].mxu0
    %v1307 = vadd.f32 %v1202, %v1306
    %v1308 = vpop.f32.mrb[0].mxu0
    %1309 = vmatprep.mubr.f32.mxu0 %v896
    %1310 = vmatmul.mubr.f32.gmra.mrb[0].mxu0 %v888
    %v1311 = vpop.f32.mrb[0].mxu0
    %v1312 = vadd.f32 %v1207, %v1311
    %v1313 = vpop.f32.mrb[0].mxu0
    %1314 = vmatprep.mubr.f32.mxu0 %v897
    %1315 = vmatmul.mubr.f32.gmra.mrb[0].mxu0 %v889
    %v1316 = vpop.f32.mrb[0].mxu0
    %v1317 = vadd.f32 %v1212, %v1316
    %v1318 = vpop.f32.mrb[0].mxu0
    %1319 = vmatprep.mubr.f32.mxu0 %v898
    %1320 = vmatmul.mubr.f32.gmra.mrb[0].mxu0 %v890
    %v1321 = vpop.f32.mrb[0].mxu0
    %v1322 = vadd.f32 %v1217, %v1321
    %v1323 = vpop.f32.mrb[0].mxu0
    %1324 = vmatprep.mubr.f32.mxu0 %v899
    %1325 = vmatmul.mubr.f32.gmra.mrb[0].mxu0 %v891
    %v1326 = vpop.f32.mrb[0].mxu0
    %v1327 = vadd.f32 %v1222, %v1326
    %v1328 = vpop.f32.mrb[0].mxu0
    %1329 = vmatprep.mubr.f32.mxu0 %v900
    %1330 = vmatmul.mubr.f32.gmra.mrb[0].mxu0 %v892
    %v1331 = vpop.f32.mrb[0].mxu0
    %v1332 = vadd.f32 %v1227, %v1331
    %v1333 = vpop.f32.mrb[0].mxu0
    %1334 = vmatprep.mubr.f32.mxu0 %v901
    %1335 = vmatmul.mubr.f32.gmra.mrb[0].mxu0 %v893
    %v1336 = vpop.f32.mrb[0].mxu0
    %v1337 = vadd.f32 %v1232, %v1336
    %v1338 = vpop.f32.mrb[0].mxu0
    %1339 = vmatprep.mubr.f32.mxu0 %v902
    %1340 = vmatmul.mubr.f32.gmra.mrb[0].mxu0 %v894
    %v1341 = vpop.f32.mrb[0].mxu0
    %v1342 = vadd.f32 %v1237, %v1341
    %v1343 = vpop.f32.mrb[0].mxu0
    %1344 = vdwg.mxu0
    %1345 = vmatprep.subr.mxu0 0.0
    %1346 = vmatpush1.msra.mxu0 %v1007
    %1347 = vmatprep.subr.mxu0 0.0
    %1348 = vmatpush1.msra.mxu0 %v1008
    %1349 = vmatprep.subr.mxu0 0.0
    %1350 = vmatpush1.msra.mxu0 %v1009
    %1351 = vmatprep.subr.mxu0 0.0
    %1352 = vmatpush1.msra.mxu0 %v1010
    %1353 = vmatprep.subr.mxu0 0.0
    %1354 = vmatpush1.msra.mxu0 %v1011
    %1355 = vmatprep.subr.mxu0 0.0
    %1356 = vmatpush1.msra.mxu0 %v1012
    %1357 = vmatprep.subr.mxu0 0.0
    %1358 = vmatpush1.msra.mxu0 %v1013
    %1359 = vmatprep.subr.mxu0 0.0
    %1360 = vmatpush1.msra.mxu0 %v1014
    %1361 = vmatprep.subr.mxu0 0.0
    %1362 = vmatpush1.msra.mxu0 %v1015
    %1363 = vmatprep.subr.mxu0 0.0
    %1364 = vmatpush1.msra.mxu0 %v1016
    %1365 = vmatprep.subr.mxu0 0.0
    %1366 = vmatpush1.msra.mxu0 %v1017
    %1367 = vmatprep.subr.mxu0 0.0
    %1368 = vmatpush1.msra.mxu0 %v1018
    %1369 = vmatprep.subr.mxu0 0.0
    %1370 = vmatpush1.msra.mxu0 %v1019
    %1371 = vmatprep.subr.mxu0 0.0
    %1372 = vmatpush1.msra.mxu0 %v1020
    %1373 = vmatprep.subr.mxu0 0.0
    %1374 = vmatpush1.msra.mxu0 %v1021
    %1375 = vmatprep.subr.mxu0 0.0
    %1376 = vmatpush1.msra.mxu0 %v1022
    %1377 = vmatprep.subr.mxu0 0.0
    %1378 = vmatpush1.msra.mxu0 0.0
    %1379 = vmatprep.subr.mxu0 0.0
    %1380 = vmatpush1.msra.mxu0 0.0
    %1381 = vmatprep.subr.mxu0 0.0
    %1382 = vmatpush1.msra.mxu0 0.0
    %1383 = vmatprep.subr.mxu0 0.0
    %1384 = vmatpush1.msra.mxu0 0.0
    %1385 = vmatprep.subr.mxu0 0.0
    %1386 = vmatpush1.msra.mxu0 0.0
    %1387 = vmatprep.subr.mxu0 0.0
    %1388 = vmatpush1.msra.mxu0 0.0
    %1389 = vmatprep.subr.mxu0 0.0
    %1390 = vmatpush1.msra.mxu0 0.0
    %1391 = vmatprep.subr.mxu0 0.0
    %1392 = vmatpush1.msra.mxu0 0.0
    %1393 = vmatprep.subr.mxu0 0.0
    %1394 = vmatpush1.msra.mxu0 0.0
    %1395 = vmatprep.subr.mxu0 0.0
    %1396 = vmatpush1.msra.mxu0 0.0
    %1397 = vmatprep.subr.mxu0 0.0
    %1398 = vmatpush1.msra.mxu0 0.0
    %1399 = vmatprep.subr.mxu0 0.0
    %1400 = vmatpush1.msra.mxu0 0.0
    %1401 = vmatprep.subr.mxu0 0.0
    %1402 = vmatpush1.msra.mxu0 0.0
    %1403 = vmatprep.subr.mxu0 0.0
    %1404 = vmatpush1.msra.mxu0 0.0
    %1405 = vmatprep.subr.mxu0 0.0
    %1406 = vmatpush1.msra.mxu0 0.0
    %1407 = vmatprep.subr.mxu0 0.0
    %1408 = vmatpush1.msra.mxu0 0.0
    %1409 = vmatprep.mubr.f32.mxu0 0.0
    %1410 = vmatmul.mubr.f32.gmra.mrb[0].mxu0 %v903
    %v1411 = vpop.f32.mrb[0].mxu0
    %v1412 = vadd.f32 %v1307, %v1411
    %v1413 = vpop.f32.mrb[0].mxu0
    %1414 = vmatprep.mubr.f32.mxu0 0.0
    %1415 = vmatmul.mubr.f32.gmra.mrb[0].mxu0 %v904
    %v1416 = vpop.f32.mrb[0].mxu0
    %v1417 = vadd.f32 %v1312, %v1416
    %v1418 = vpop.f32.mrb[0].mxu0
    %1419 = vmatprep.mubr.f32.mxu0 0.0
    %1420 = vmatmul.mubr.f32.gmra.mrb[0].mxu0 %v905
    %v1421 = vpop.f32.mrb[0].mxu0
    %v1422 = vadd.f32 %v1317, %v1421
    %v1423 = vpop.f32.mrb[0].mxu0
    %1424 = vmatprep.mubr.f32.mxu0 0.0
    %1425 = vmatmul.mubr.f32.gmra.mrb[0].mxu0 %v906
    %v1426 = vpop.f32.mrb[0].mxu0
    %v1427 = vadd.f32 %v1322, %v1426
    %v1428 = vpop.f32.mrb[0].mxu0
    %1429 = vmatprep.mubr.f32.mxu0 0.0
    %1430 = vmatmul.mubr.f32.gmra.mrb[0].mxu0 %v907
    %v1431 = vpop.f32.mrb[0].mxu0
    %v1432 = vadd.f32 %v1327, %v1431
    %v1433 = vpop.f32.mrb[0].mxu0
    %1434 = vmatprep.mubr.f32.mxu0 0.0
    %1435 = vmatmul.mubr.f32.gmra.mrb[0].mxu0 %v908
    %v1436 = vpop.f32.mrb[0].mxu0
    %v1437 = vadd.f32 %v1332, %v1436
    %v1438 = vpop.f32.mrb[0].mxu0
    %1439 = vmatprep.mubr.f32.mxu0 0.0
    %1440 = vmatmul.mubr.f32.gmra.mrb[0].mxu0 %v909
    %v1441 = vpop.f32.mrb[0].mxu0
    %v1442 = vadd.f32 %v1337, %v1441
    %v1443 = vpop.f32.mrb[0].mxu0
    %1444 = vmatprep.mubr.f32.mxu0 0.0
    %1445 = vmatmul.mubr.f32.gmra.mrb[0].mxu0 %v910
    %v1446 = vpop.f32.mrb[0].mxu0
    %v1447 = vadd.f32 %v1342, %v1446
    %v1448 = vpop.f32.mrb[0].mxu0
    %1449 = vdwg.mxu0
    %v1450 = vmax.f32 %v1412, 0.0
    %v1451 = vmax.f32 %v1417, 0.0
    %v1452 = vmax.f32 %v1422, 0.0
    %v1453 = vmax.f32 %v1427, 0.0
    %v1454 = vmax.f32 %v1432, 0.0
    %v1455 = vmax.f32 %v1437, 0.0
    %v1456 = vmax.f32 %v1442, 0.0
    %v1457 = vmax.f32 %v1447, 0.0
    %v1458 = vadd.f32 %v1450, %v1451
    %v1459 = vrot.slane %v1458, 4
    %v1460 = vadd.f32 %v1458, %v1459
    %v1461 = vrot.slane %v1460, 2
    %v1462 = vadd.f32 %v1460, %v1461
    %v1463 = vrot.slane %v1462, 1
    %v1464 = vadd.f32 %v1462, %v1463
    %v1465 = vadd.f32 %v1452, %v1453
    %v1466 = vrot.slane %v1465, 4
    %v1467 = vadd.f32 %v1465, %v1466
    %v1468 = vrot.slane %v1467, 2
    %v1469 = vadd.f32 %v1467, %v1468
    %v1470 = vrot.slane %v1469, 1
    %v1471 = vadd.f32 %v1469, %v1470
    %v1472 = vadd.f32 %v1454, %v1455
    %v1473 = vrot.slane %v1472, 4
    %v1474 = vadd.f32 %v1472, %v1473
    %v1475 = vrot.slane %v1474, 2
    %v1476 = vadd.f32 %v1474, %v1475
    %v1477 = vrot.slane %v1476, 1
    %v1478 = vadd.f32 %v1476, %v1477
    %v1479 = vadd.f32 %v1456, %v1457
    %v1480 = vrot.slane %v1479, 4
    %v1481 = vadd.f32 %v1479, %v1480
    %v1482 = vrot.slane %v1481, 2
    %v1483 = vadd.f32 %v1481, %v1482
    %v1484 = vrot.slane %v1483, 1
    %v1485 = vadd.f32 %v1483, %v1484
    %v1486 = vrcp.pop 16.0
    %v1487 = vmul.f32 %v1464, %v1486
    %v1488 = vmul.f32 %v1471, %v1486
    %v1489 = vmul.f32 %v1478, %v1486
    %v1490 = vmul.f32 %v1485, %v1486
    %v1491 = vld [vmem:[%s7] sm:$0xff]
    %v1492 = vld [vmem:[%s7 + $0x8] sm:$0xff]
    %v1493 = vld [vmem:[%s7 + $0x10] sm:$0xff]
    %v1494 = vld [vmem:[%s7 + $0x18] sm:$0xff]
    %v1495 = vld [vmem:[%s7 + $0x20] sm:$0xff]
    %v1496 = vld [vmem:[%s7 + $0x28] sm:$0xff]
    %v1497 = vld [vmem:[%s7 + $0x30] sm:$0xff]
    %v1498 = vld [vmem:[%s7 + $0x38] sm:$0xff]
    %v1499 = vld [vmem:[%s7 + $0x40] sm:$0xff]
    %v1500 = vld [vmem:[%s7 + $0x48] sm:$0xff]
    %v1501 = vld [vmem:[%s7 + $0x50] sm:$0xff]
    %v1502 = vld [vmem:[%s7 + $0x58] sm:$0xff]
    %v1503 = vld [vmem:[%s7 + $0x60] sm:$0xff]
    %v1504 = vld [vmem:[%s7 + $0x68] sm:$0xff]
    %v1505 = vld [vmem:[%s7 + $0x70] sm:$0xff]
    %v1506 = vld [vmem:[%s7 + $0x78] sm:$0xff]
    %v1507 = vld [vmem:[%s7 + $0x80] sm:$0xff]
    %v1508 = vld [vmem:[%s7 + $0x88] sm:$0xff]
    %v1509 = vld [vmem:[%s7 + $0x90] sm:$0xff]
    %v1510 = vld [vmem:[%s7 + $0x98] sm:$0xff]
    %v1511 = vld [vmem:[%s7 + $0xa0] sm:$0xff]
    %v1512 = vld [vmem:[%s7 + $0xa8] sm:$0xff]
    %v1513 = vld [vmem:[%s7 + $0xb0] sm:$0xff]
    %v1514 = vld [vmem:[%s7 + $0xb8] sm:$0xff]
    %v1515 = vld [vmem:[%s7 + $0xc0] sm:$0xff]
    %v1516 = vld [vmem:[%s7 + $0xc8] sm:$0xff]
    %v1517 = vld [vmem:[%s7 + $0xd0] sm:$0xff]
    %v1518 = vld [vmem:[%s7 + $0xd8] sm:$0xff]
    %v1519 = vld [vmem:[%s7 + $0xe0] sm:$0xff]
    %v1520 = vld [vmem:[%s7 + $0xe8] sm:$0xff]
    %v1521 = vld [vmem:[%s7 + $0xf0] sm:$0xff]
    %v1522 = vld [vmem:[%s7 + $0xf8] sm:$0xff]
    %v1523 = vld [vmem:[%s8] sm:$0x3]
    %v1525 = vlaneseq
    %v1526 = vshrl.u32 %v1525, 7
    %v1527 = vsub.s32 0, %v1526
    %v1528 = vrot.slane %v1523, %v1527
    %v1529 = vlaneseq
    %v1530 = vshrl.u32 %v1529, 7
    %v1531 = vsub.s32 1, %v1530
    %v1532 = vrot.slane %v1523, %v1531
    %vm1539 = vcmask 1041409
    %v1540 = vsel %vm1539, %v1488, %v1487
    %vm1541 = vcmask 1042434
    %v1542 = vsel %vm1541, %v1489, %v1540
    %vm1543 = vcmask 1043459
    %v1544 = vsel %vm1543, %v1490, %v1542
    %1546 = vmatprep.subr.mxu0 %v1492
    %1547 = vmatpush1.msra.mxu0 %v1491
    %1548 = vmatprep.subr.mxu0 %v1494
    %1549 = vmatpush1.msra.mxu0 %v1493
    %1550 = vmatprep.subr.mxu0 %v1496
    %1551 = vmatpush1.msra.mxu0 %v1495
    %1552 = vmatprep.subr.mxu0 %v1498
    %1553 = vmatpush1.msra.mxu0 %v1497
    %1554 = vmatprep.subr.mxu0 %v1500
    %1555 = vmatpush1.msra.mxu0 %v1499
    %1556 = vmatprep.subr.mxu0 %v1502
    %1557 = vmatpush1.msra.mxu0 %v1501
    %1558 = vmatprep.subr.mxu0 %v1504
    %1559 = vmatpush1.msra.mxu0 %v1503
    %1560 = vmatprep.subr.mxu0 %v1506
    %1561 = vmatpush1.msra.mxu0 %v1505
    %1562 = vmatprep.subr.mxu0 %v1508
    %1563 = vmatpush1.msra.mxu0 %v1507
    %1564 = vmatprep.subr.mxu0 %v1510
    %1565 = vmatpush1.msra.mxu0 %v1509
    %1566 = vmatprep.subr.mxu0 %v1512
    %1567 = vmatpush1.msra.mxu0 %v1511
    %1568 = vmatprep.subr.mxu0 %v1514
    %1569 = vmatpush1.msra.mxu0 %v1513
    %1570 = vmatprep.subr.mxu0 %v1516
    %1571 = vmatpush1.msra.mxu0 %v1515
    %1572 = vmatprep.subr.mxu0 %v1518
    %1573 = vmatpush1.msra.mxu0 %v1517
    %1574 = vmatprep.subr.mxu0 %v1520
    %1575 = vmatpush1.msra.mxu0 %v1519
    %1576 = vmatprep.subr.mxu0 %v1522
    %1577 = vmatpush1.msra.mxu0 %v1521
    %1578 = vmatprep.subr.mxu0 0.0
    %1579 = vmatpush1.msra.mxu0 0.0
    %1580 = vmatprep.subr.mxu0 0.0
    %1581 = vmatpush1.msra.mxu0 0.0
    %1582 = vmatprep.subr.mxu0 0.0
    %1583 = vmatpush1.msra.mxu0 0.0
    %1584 = vmatprep.subr.mxu0 0.0
    %1585 = vmatpush1.msra.mxu0 0.0
    %1586 = vmatprep.subr.mxu0 0.0
    %1587 = vmatpush1.msra.mxu0 0.0
    %1588 = vmatprep.subr.mxu0 0.0
    %1589 = vmatpush1.msra.mxu0 0.0
    %1590 = vmatprep.subr.mxu0 0.0
    %1591 = vmatpush1.msra.mxu0 0.0
    %1592 = vmatprep.subr.mxu0 0.0
    %1593 = vmatpush1.msra.mxu0 0.0
    %1594 = vmatprep.subr.mxu0 0.0
    %1595 = vmatpush1.msra.mxu0 0.0
    %1596 = vmatprep.subr.mxu0 0.0
    %1597 = vmatpush1.msra.mxu0 0.0
    %1598 = vmatprep.subr.mxu0 0.0
    %1599 = vmatpush1.msra.mxu0 0.0
    %1600 = vmatprep.subr.mxu0 0.0
    %1601 = vmatpush1.msra.mxu0 0.0
    %1602 = vmatprep.subr.mxu0 0.0
    %1603 = vmatpush1.msra.mxu0 0.0
    %1604 = vmatprep.subr.mxu0 0.0
    %1605 = vmatpush1.msra.mxu0 0.0
    %1606 = vmatprep.subr.mxu0 0.0
    %1607 = vmatpush1.msra.mxu0 0.0
    %1608 = vmatprep.subr.mxu0 0.0
    %1609 = vmatpush1.msra.mxu0 0.0
    %1610 = vmatprep.mubr.f32.mxu0 0.0
    %1611 = vmatmul.mubr.f32.gmra.mrb[0].mxu0 %v1544
    %v1612 = vpop.f32.mrb[0].mxu0
    %v1613 = vadd.f32 %v1528, %v1612
    %v1614 = vpop.f32.mrb[0].mxu0
    %v1615 = vadd.f32 %v1532, %v1614
    %1616 = vdwg.mxu0
    %v1617 = vmax.f32 %v1613, 0.0
    %v1618 = vmax.f32 %v1615, 0.0
    %v1619 = vld [vmem:[%s9] sm:$0xff]
    %v1620 = vld [vmem:[%s9 + $0x8] sm:$0xff]
    %v1621 = vld [vmem:[%s9 + $0x10] sm:$0xff]
    %v1622 = vld [vmem:[%s9 + $0x18] sm:$0xff]
    %v1623 = vld [vmem:[%s9 + $0x20] sm:$0xff]
    %v1624 = vld [vmem:[%s9 + $0x28] sm:$0xff]
    %v1625 = vld [vmem:[%s9 + $0x30] sm:$0xff]
    %v1626 = vld [vmem:[%s9 + $0x38] sm:$0xff]
    %v1627 = vld [vmem:[%s9 + $0x40] sm:$0xff]
    %v1628 = vld [vmem:[%s9 + $0x48] sm:$0xff]
    %v1629 = vld [vmem:[%s9 + $0x50] sm:$0xff]
    %v1630 = vld [vmem:[%s9 + $0x58] sm:$0xff]
    %v1631 = vld [vmem:[%s9 + $0x60] sm:$0xff]
    %v1632 = vld [vmem:[%s9 + $0x68] sm:$0xff]
    %v1633 = vld [vmem:[%s9 + $0x70] sm:$0xff]
    %v1634 = vld [vmem:[%s9 + $0x78] sm:$0xff]
    %v1635 = vld [vmem:[%s9 + $0x80] sm:$0xff]
    %v1636 = vld [vmem:[%s9 + $0x88] sm:$0xff]
    %v1637 = vld [vmem:[%s9 + $0x90] sm:$0xff]
    %v1638 = vld [vmem:[%s9 + $0x98] sm:$0xff]
    %v1639 = vld [vmem:[%s9 + $0xa0] sm:$0xff]
    %v1640 = vld [vmem:[%s9 + $0xa8] sm:$0xff]
    %v1641 = vld [vmem:[%s9 + $0xb0] sm:$0xff]
    %v1642 = vld [vmem:[%s9 + $0xb8] sm:$0xff]
    %v1643 = vld [vmem:[%s9 + $0xc0] sm:$0xff]
    %v1644 = vld [vmem:[%s9 + $0xc8] sm:$0xff]
    %v1645 = vld [vmem:[%s9 + $0xd0] sm:$0xff]
    %v1646 = vld [vmem:[%s9 + $0xd8] sm:$0xff]
    %v1647 = vld [vmem:[%s9 + $0xe0] sm:$0xff]
    %v1648 = vld [vmem:[%s9 + $0xe8] sm:$0xff]
    %v1649 = vld [vmem:[%s9 + $0xf0] sm:$0xff]
    %v1650 = vld [vmem:[%s9 + $0xf8] sm:$0xff]
    %v1651 = vld [vmem:[%s9 + $0x100] sm:$0xff]
    %v1652 = vld [vmem:[%s9 + $0x108] sm:$0xff]
    %v1653 = vld [vmem:[%s9 + $0x110] sm:$0xff]
    %v1654 = vld [vmem:[%s9 + $0x118] sm:$0xff]
    %v1655 = vld [vmem:[%s9 + $0x120] sm:$0xff]
    %v1656 = vld [vmem:[%s9 + $0x128] sm:$0xff]
    %v1657 = vld [vmem:[%s9 + $0x130] sm:$0xff]
    %v1658 = vld [vmem:[%s9 + $0x138] sm:$0xff]
    %v1659 = vld [vmem:[%s9 + $0x140] sm:$0xff]
    %v1660 = vld [vmem:[%s9 + $0x148] sm:$0xff]
    %v1661 = vld [vmem:[%s9 + $0x150] sm:$0xff]
    %v1662 = vld [vmem:[%s9 + $0x158] sm:$0xff]
    %v1663 = vld [vmem:[%s9 + $0x160] sm:$0xff]
    %v1664 = vld [vmem:[%s9 + $0x168] sm:$0xff]
    %v1665 = vld [vmem:[%s9 + $0x170] sm:$0xff]
    %v1666 = vld [vmem:[%s9 + $0x178] sm:$0xff]
    %v1667 = vld [vmem:[%s9 + $0x180] sm:$0xff]
    %v1668 = vld [vmem:[%s9 + $0x188] sm:$0xff]
    %v1669 = vld [vmem:[%s9 + $0x190] sm:$0xff]
    %v1670 = vld [vmem:[%s9 + $0x198] sm:$0xff]
    %v1671 = vld [vmem:[%s9 + $0x1a0] sm:$0xff]
    %v1672 = vld [vmem:[%s9 + $0x1a8] sm:$0xff]
    %v1673 = vld [vmem:[%s9 + $0x1b0] sm:$0xff]
    %v1674 = vld [vmem:[%s9 + $0x1b8] sm:$0xff]
    %v1675 = vld [vmem:[%s9 + $0x1c0] sm:$0xff]
    %v1676 = vld [vmem:[%s9 + $0x1c8] sm:$0xff]
    %v1677 = vld [vmem:[%s9 + $0x1d0] sm:$0xff]
    %v1678 = vld [vmem:[%s9 + $0x1d8] sm:$0xff]
    %v1679 = vld [vmem:[%s9 + $0x1e0] sm:$0xff]
    %v1680 = vld [vmem:[%s9 + $0x1e8] sm:$0xff]
    %v1681 = vld [vmem:[%s9 + $0x1f0] sm:$0xff]
    %v1682 = vld [vmem:[%s9 + $0x1f8] sm:$0xff]
    %v1683 = vld [vmem:[%s10] sm:$0x3]
    %v1685 = vlaneseq
    %v1686 = vshrl.u32 %v1685, 7
    %v1687 = vsub.s32 0, %v1686
    %v1688 = vrot.slane %v1683, %v1687
    %v1689 = vlaneseq
    %v1690 = vshrl.u32 %v1689, 7
    %v1691 = vsub.s32 1, %v1690
    %v1692 = vrot.slane %v1683, %v1691
    %1695 = vmatprep.subr.mxu0 %v1620
    %1696 = vmatpush1.msra.mxu0 %v1619
    %1697 = vmatprep.subr.mxu0 %v1622
    %1698 = vmatpush1.msra.mxu0 %v1621
    %1699 = vmatprep.subr.mxu0 %v1624
    %1700 = vmatpush1.msra.mxu0 %v1623
    %1701 = vmatprep.subr.mxu0 %v1626
    %1702 = vmatpush1.msra.mxu0 %v1625
    %1703 = vmatprep.subr.mxu0 %v1628
    %1704 = vmatpush1.msra.mxu0 %v1627
    %1705 = vmatprep.subr.mxu0 %v1630
    %1706 = vmatpush1.msra.mxu0 %v1629
    %1707 = vmatprep.subr.mxu0 %v1632
    %1708 = vmatpush1.msra.mxu0 %v1631
    %1709 = vmatprep.subr.mxu0 %v1634
    %1710 = vmatpush1.msra.mxu0 %v1633
    %1711 = vmatprep.subr.mxu0 %v1636
    %1712 = vmatpush1.msra.mxu0 %v1635
    %1713 = vmatprep.subr.mxu0 %v1638
    %1714 = vmatpush1.msra.mxu0 %v1637
    %1715 = vmatprep.subr.mxu0 %v1640
    %1716 = vmatpush1.msra.mxu0 %v1639
    %1717 = vmatprep.subr.mxu0 %v1642
    %1718 = vmatpush1.msra.mxu0 %v1641
    %1719 = vmatprep.subr.mxu0 %v1644
    %1720 = vmatpush1.msra.mxu0 %v1643
    %1721 = vmatprep.subr.mxu0 %v1646
    %1722 = vmatpush1.msra.mxu0 %v1645
    %1723 = vmatprep.subr.mxu0 %v1648
    %1724 = vmatpush1.msra.mxu0 %v1647
    %1725 = vmatprep.subr.mxu0 %v1650
    %1726 = vmatpush1.msra.mxu0 %v1649
    %1727 = vmatprep.subr.mxu0 %v1652
    %1728 = vmatpush1.msra.mxu0 %v1651
    %1729 = vmatprep.subr.mxu0 %v1654
    %1730 = vmatpush1.msra.mxu0 %v1653
    %1731 = vmatprep.subr.mxu0 %v1656
    %1732 = vmatpush1.msra.mxu0 %v1655
    %1733 = vmatprep.subr.mxu0 %v1658
    %1734 = vmatpush1.msra.mxu0 %v1657
    %1735 = vmatprep.subr.mxu0 %v1660
    %1736 = vmatpush1.msra.mxu0 %v1659
    %1737 = vmatprep.subr.mxu0 %v1662
    %1738 = vmatpush1.msra.mxu0 %v1661
    %1739 = vmatprep.subr.mxu0 %v1664
    %1740 = vmatpush1.msra.mxu0 %v1663
    %1741 = vmatprep.subr.mxu0 %v1666
    %1742 = vmatpush1.msra.mxu0 %v1665
    %1743 = vmatprep.subr.mxu0 %v1668
    %1744 = vmatpush1.msra.mxu0 %v1667
    %1745 = vmatprep.subr.mxu0 %v1670
    %1746 = vmatpush1.msra.mxu0 %v1669
    %1747 = vmatprep.subr.mxu0 %v1672
    %1748 = vmatpush1.msra.mxu0 %v1671
    %1749 = vmatprep.subr.mxu0 %v1674
    %1750 = vmatpush1.msra.mxu0 %v1673
    %1751 = vmatprep.subr.mxu0 %v1676
    %1752 = vmatpush1.msra.mxu0 %v1675
    %1753 = vmatprep.subr.mxu0 %v1678
    %1754 = vmatpush1.msra.mxu0 %v1677
    %1755 = vmatprep.subr.mxu0 %v1680
    %1756 = vmatpush1.msra.mxu0 %v1679
    %1757 = vmatprep.subr.mxu0 %v1682
    %1758 = vmatpush1.msra.mxu0 %v1681
    %1759 = vmatprep.mubr.f32.mxu0 %v1618
    %1760 = vmatmul.mubr.f32.gmra.mrb[0].mxu0 %v1617
    %v1761 = vpop.f32.mrb[0].mxu0
    %v1762 = vadd.f32 %v1688, %v1761
    %v1763 = vpop.f32.mrb[0].mxu0
    %v1764 = vadd.f32 %v1692, %v1763
    %1765 = vdwg.mxu0
    %v1766 = vmax.f32 %v1762, 0.0
    %v1767 = vmax.f32 %v1764, 0.0
    %v1768 = vld [vmem:[%s11] sm:$0xff]
    %v1769 = vld [vmem:[%s11 + $0x8] sm:$0xff]
    %v1770 = vld [vmem:[%s11 + $0x10] sm:$0xff]
    %v1771 = vld [vmem:[%s11 + $0x18] sm:$0xff]
    %v1772 = vld [vmem:[%s11 + $0x20] sm:$0xff]
    %v1773 = vld [vmem:[%s11 + $0x28] sm:$0xff]
    %v1774 = vld [vmem:[%s11 + $0x30] sm:$0xff]
    %v1775 = vld [vmem:[%s11 + $0x38] sm:$0xff]
    %v1776 = vld [vmem:[%s11 + $0x40] sm:$0xff]
    %v1777 = vld [vmem:[%s11 + $0x48] sm:$0xff]
    %v1778 = vld [vmem:[%s11 + $0x50] sm:$0xff]
    %v1779 = vld [vmem:[%s11 + $0x58] sm:$0xff]
    %v1780 = vld [vmem:[%s11 + $0x60] sm:$0xff]
    %v1781 = vld [vmem:[%s11 + $0x68] sm:$0xff]
    %v1782 = vld [vmem:[%s11 + $0x70] sm:$0xff]
    %v1783 = vld [vmem:[%s11 + $0x78] sm:$0xff]
    %v1784 = vld [vmem:[%s11 + $0x80] sm:$0xff]
    %v1785 = vld [vmem:[%s11 + $0x88] sm:$0xff]
    %v1786 = vld [vmem:[%s11 + $0x90] sm:$0xff]
    %v1787 = vld [vmem:[%s11 + $0x98] sm:$0xff]
    %v1788 = vld [vmem:[%s11 + $0xa0] sm:$0xff]
    %v1789 = vld [vmem:[%s11 + $0xa8] sm:$0xff]
    %v1790 = vld [vmem:[%s11 + $0xb0] sm:$0xff]
    %v1791 = vld [vmem:[%s11 + $0xb8] sm:$0xff]
    %v1792 = vld [vmem:[%s11 + $0xc0] sm:$0xff]
    %v1793 = vld [vmem:[%s11 + $0xc8] sm:$0xff]
    %v1794 = vld [vmem:[%s11 + $0xd0] sm:$0xff]
    %v1795 = vld [vmem:[%s11 + $0xd8] sm:$0xff]
    %v1796 = vld [vmem:[%s11 + $0xe0] sm:$0xff]
    %v1797 = vld [vmem:[%s11 + $0xe8] sm:$0xff]
    %v1798 = vld [vmem:[%s11 + $0xf0] sm:$0xff]
    %v1799 = vld [vmem:[%s11 + $0xf8] sm:$0xff]
    %v1800 = vld [vmem:[%s11 + $0x100] sm:$0xff]
    %v1801 = vld [vmem:[%s11 + $0x108] sm:$0xff]
    %v1802 = vld [vmem:[%s11 + $0x110] sm:$0xff]
    %v1803 = vld [vmem:[%s11 + $0x118] sm:$0xff]
    %v1804 = vld [vmem:[%s11 + $0x120] sm:$0xff]
    %v1805 = vld [vmem:[%s11 + $0x128] sm:$0xff]
    %v1806 = vld [vmem:[%s11 + $0x130] sm:$0xff]
    %v1807 = vld [vmem:[%s11 + $0x138] sm:$0xff]
    %v1808 = vld [vmem:[%s11 + $0x140] sm:$0xff]
    %v1809 = vld [vmem:[%s11 + $0x148] sm:$0xff]
    %v1810 = vld [vmem:[%s11 + $0x150] sm:$0xff]
    %v1811 = vld [vmem:[%s11 + $0x158] sm:$0xff]
    %v1812 = vld [vmem:[%s11 + $0x160] sm:$0xff]
    %v1813 = vld [vmem:[%s11 + $0x168] sm:$0xff]
    %v1814 = vld [vmem:[%s11 + $0x170] sm:$0xff]
    %v1815 = vld [vmem:[%s11 + $0x178] sm:$0xff]
    %v1816 = vld [vmem:[%s11 + $0x180] sm:$0xff]
    %v1817 = vld [vmem:[%s11 + $0x188] sm:$0xff]
    %v1818 = vld [vmem:[%s11 + $0x190] sm:$0xff]
    %v1819 = vld [vmem:[%s11 + $0x198] sm:$0xff]
    %v1820 = vld [vmem:[%s11 + $0x1a0] sm:$0xff]
    %v1821 = vld [vmem:[%s11 + $0x1a8] sm:$0xff]
    %v1822 = vld [vmem:[%s11 + $0x1b0] sm:$0xff]
    %v1823 = vld [vmem:[%s11 + $0x1b8] sm:$0xff]
    %v1824 = vld [vmem:[%s11 + $0x1c0] sm:$0xff]
    %v1825 = vld [vmem:[%s11 + $0x1c8] sm:$0xff]
    %v1826 = vld [vmem:[%s11 + $0x1d0] sm:$0xff]
    %v1827 = vld [vmem:[%s11 + $0x1d8] sm:$0xff]
    %v1828 = vld [vmem:[%s11 + $0x1e0] sm:$0xff]
    %v1829 = vld [vmem:[%s11 + $0x1e8] sm:$0xff]
    %v1830 = vld [vmem:[%s11 + $0x1f0] sm:$0xff]
    %v1831 = vld [vmem:[%s11 + $0x1f8] sm:$0xff]
    %v1832 = vld [vmem:[%s12] sm:$0x3]
    %v1834 = vlaneseq
    %v1835 = vshrl.u32 %v1834, 7
    %v1836 = vsub.s32 0, %v1835
    %v1837 = vrot.slane %v1832, %v1836
    %v1838 = vlaneseq
    %v1839 = vshrl.u32 %v1838, 7
    %v1840 = vsub.s32 1, %v1839
    %v1841 = vrot.slane %v1832, %v1840
    %1844 = vmatprep.subr.mxu0 %v1769
    %1845 = vmatpush1.msra.mxu0 %v1768
    %1846 = vmatprep.subr.mxu0 %v1771
    %1847 = vmatpush1.msra.mxu0 %v1770
    %1848 = vmatprep.subr.mxu0 %v1773
    %1849 = vmatpush1.msra.mxu0 %v1772
    %1850 = vmatprep.subr.mxu0 %v1775
    %1851 = vmatpush1.msra.mxu0 %v1774
    %1852 = vmatprep.subr.mxu0 %v1777
    %1853 = vmatpush1.msra.mxu0 %v1776
    %1854 = vmatprep.subr.mxu0 %v1779
    %1855 = vmatpush1.msra.mxu0 %v1778
    %1856 = vmatprep.subr.mxu0 %v1781
    %1857 = vmatpush1.msra.mxu0 %v1780
    %1858 = vmatprep.subr.mxu0 %v1783
    %1859 = vmatpush1.msra.mxu0 %v1782
    %1860 = vmatprep.subr.mxu0 %v1785
    %1861 = vmatpush1.msra.mxu0 %v1784
    %1862 = vmatprep.subr.mxu0 %v1787
    %1863 = vmatpush1.msra.mxu0 %v1786
    %1864 = vmatprep.subr.mxu0 %v1789
    %1865 = vmatpush1.msra.mxu0 %v1788
    %1866 = vmatprep.subr.mxu0 %v1791
    %1867 = vmatpush1.msra.mxu0 %v1790
    %1868 = vmatprep.subr.mxu0 %v1793
    %1869 = vmatpush1.msra.mxu0 %v1792
    %1870 = vmatprep.subr.mxu0 %v1795
    %1871 = vmatpush1.msra.mxu0 %v1794
    %1872 = vmatprep.subr.mxu0 %v1797
    %1873 = vmatpush1.msra.mxu0 %v1796
    %1874 = vmatprep.subr.mxu0 %v1799
    %1875 = vmatpush1.msra.mxu0 %v1798
    %1876 = vmatprep.subr.mxu0 %v1801
    %1877 = vmatpush1.msra.mxu0 %v1800
    %1878 = vmatprep.subr.mxu0 %v1803
    %1879 = vmatpush1.msra.mxu0 %v1802
    %1880 = vmatprep.subr.mxu0 %v1805
    %1881 = vmatpush1.msra.mxu0 %v1804
    %1882 = vmatprep.subr.mxu0 %v1807
    %1883 = vmatpush1.msra.mxu0 %v1806
    %1884 = vmatprep.subr.mxu0 %v1809
    %1885 = vmatpush1.msra.mxu0 %v1808
    %1886 = vmatprep.subr.mxu0 %v1811
    %1887 = vmatpush1.msra.mxu0 %v1810
    %1888 = vmatprep.subr.mxu0 %v1813
    %1889 = vmatpush1.msra.mxu0 %v1812
    %1890 = vmatprep.subr.mxu0 %v1815
    %1891 = vmatpush1.msra.mxu0 %v1814
    %1892 = vmatprep.subr.mxu0 %v1817
    %1893 = vmatpush1.msra.mxu0 %v1816
    %1894 = vmatprep.subr.mxu0 %v1819
    %1895 = vmatpush1.msra.mxu0 %v1818
    %1896 = vmatprep.subr.mxu0 %v1821
    %1897 = vmatpush1.msra.mxu0 %v1820
    %1898 = vmatprep.subr.mxu0 %v1823
    %1899 = vmatpush1.msra.mxu0 %v1822
    %1900 = vmatprep.subr.mxu0 %v1825
    %1901 = vmatpush1.msra.mxu0 %v1824
    %1902 = vmatprep.subr.mxu0 %v1827
    %1903 = vmatpush1.msra.mxu0 %v1826
    %1904 = vmatprep.subr.mxu0 %v1829
    %1905 = vmatpush1.msra.mxu0 %v1828
    %1906 = vmatprep.subr.mxu0 %v1831
    %1907 = vmatpush1.msra.mxu0 %v1830
    %1908 = vmatprep.mubr.f32.mxu0 %v1767
    %1909 = vmatmul.mubr.f32.gmra.mrb[0].mxu0 %v1766
    %v1910 = vpop.f32.mrb[0].mxu0
    %v1911 = vadd.f32 %v1837, %v1910
    %v1912 = vpop.f32.mrb[0].mxu0
    %v1913 = vadd.f32 %v1841, %v1912
    %1914 = vdwg.mxu0
    %v1917 = vcombine.low %v1911, %v1913
    %1919 = vst [vmem:[#allocation4] sm:$0xff] %v1917
    // Predicated region
    $region54: #{vicreg_forward.2} parent=1 // pred_check
      _
    $region55: #{vicreg_forward.2} parent=1 // pred_check_branch
      %1921 = sbr.rel (0) target = $region57
    $region56: #{vicreg_forward.2} parent=1 // pred_region
      %s1923 = ssub.s32 128, 128
      %1924 = vsyncadd [#allocation5], %s1923
      %s1926 = sshll.u32 [#allocation4], 4
      %s1927 = int_to_ptr.vmem [resolvable:$true] %s1926
      %1929 = dma.vmem_to_hbm [thread:$0]  %s1927, 128, %s13, [#allocation5]
    $region57: #{vicreg_forward.2} parent=1 // pred_fallthru
      _
    // Predicated region
    $region58: #{vicreg_forward.2} parent=1 // pred_check
      _
    $region59: #{vicreg_forward.2} parent=1 // pred_check_branch
      %1931 = sbr.rel (0) target = $region61
    $region60: #{vicreg_forward.2} parent=1 // pred_region
      %1932 = dma.done [#allocation5], 128
    $region61: #{vicreg_forward.2} parent=1 // pred_fallthru
      _
    %1933 = vsyncpa [#allocation5], 1

// kernel: vicreg_forward.3
$region0: #{vicreg_forward.3}
  #allocation0 [shape = 'u32[]', space=smem, size = 0x4, offset = 0x4, fixed_abs, tag = 'smem constant byte address 0x4 - core index']
  #allocation1 [shape = 'u32[144,128]{1,0:T(1,128)}', space=vmem, size = 0x12000, scoped, tag = 'internal scratch']
  #allocation2 [shape = 'f32[4,32,128]{2,1,0:T(8,128)}', space=vmem, size = 0x10000, scoped, tag = 'scratch operand']
  #allocation3 [shape = 'f32[4,32,128]{2,1,0:T(8,128)}', space=vmem, size = 0x10000, scoped, tag = 'scratch operand']
  %s0 = inlined_call_operand.vmem [shape: f32[64,70], index: 0, kind: input, shape index: {}]
  %s1 = inlined_call_operand.vmem [shape: f32[70,128], index: 1, kind: input, shape index: {}]
  %s2 = inlined_call_operand.vmem [shape: f32[1,128], index: 2, kind: input, shape index: {}]
  %s3 = inlined_call_operand.vmem [shape: f32[896,128], index: 3, kind: input, shape index: {}]
  %s4 = inlined_call_operand.vmem [shape: f32[1,128], index: 4, kind: input, shape index: {}]
  %s5 = inlined_call_operand.vmem [shape: f32[896,128], index: 5, kind: input, shape index: {}]
  %s6 = inlined_call_operand.vmem [shape: f32[1,128], index: 6, kind: input, shape index: {}]
  %s7 = inlined_call_operand.vmem [shape: f32[128,256], index: 7, kind: input, shape index: {}]
  %s8 = inlined_call_operand.vmem [shape: f32[1,256], index: 8, kind: input, shape index: {}]
  %s9 = inlined_call_operand.vmem [shape: f32[256,256], index: 9, kind: input, shape index: {}]
  %s10 = inlined_call_operand.vmem [shape: f32[1,256], index: 10, kind: input, shape index: {}]
  %s11 = inlined_call_operand.vmem [shape: f32[256,256], index: 11, kind: input, shape index: {}]
  %s12 = inlined_call_operand.vmem [shape: f32[1,256], index: 12, kind: input, shape index: {}]
  %s13 = inlined_call_operand.hbm [shape: f32[4,256], index: 13, kind: output, shape index: {}]
  %s14 = sld [smem:[#allocation0]]
  $region62: #{vicreg_forward.3} parent=0
    _
  %s16 = ssub.s32 1, %s14
  %s17 = scalar_select 0, %s16, %s14
  $region1: #{vicreg_forward.3} parent=0
    #allocation4 [shape = 'u8[4096]{0}', space=vmem, size = 0x1000, scoped, tag = 'output window, operand 0, single buffered']
    #allocation5 [shape = 's32[1]{0}', space=sflag, size = 0x4, scoped, tag = 'scoped memory for vicreg_forward.3']
    %18 = vsyncpa [#allocation5], 0
    // Predicated region
    $region2: #{vicreg_forward.3} parent=1 // pred_check
      _
    $region3: #{vicreg_forward.3} parent=1 // pred_check_branch
      %20 = sbr.rel (0) target = $region5
    $region4: #{vicreg_forward.3} parent=1 // pred_region
      _
    $region5: #{vicreg_forward.3} parent=1 // pred_fallthru
      _
    // Predicated region
    $region6: #{vicreg_forward.3} parent=1 // pred_check
      _
    $region7: #{vicreg_forward.3} parent=1 // pred_check_branch
      %22 = sbr.rel (0) target = $region9
    $region8: #{vicreg_forward.3} parent=1 // pred_region
      _
    $region9: #{vicreg_forward.3} parent=1 // pred_fallthru
      _
    // Predicated region
    $region10: #{vicreg_forward.3} parent=1 // pred_check
      _
    $region11: #{vicreg_forward.3} parent=1 // pred_check_branch
      %24 = sbr.rel (0) target = $region13
    $region12: #{vicreg_forward.3} parent=1 // pred_region
      _
    $region13: #{vicreg_forward.3} parent=1 // pred_fallthru
      _
    // Predicated region
    $region14: #{vicreg_forward.3} parent=1 // pred_check
      _
    $region15: #{vicreg_forward.3} parent=1 // pred_check_branch
      %26 = sbr.rel (0) target = $region17
    $region16: #{vicreg_forward.3} parent=1 // pred_region
      _
    $region17: #{vicreg_forward.3} parent=1 // pred_fallthru
      _
    // Predicated region
    $region18: #{vicreg_forward.3} parent=1 // pred_check
      _
    $region19: #{vicreg_forward.3} parent=1 // pred_check_branch
      %28 = sbr.rel (0) target = $region21
    $region20: #{vicreg_forward.3} parent=1 // pred_region
      _
    $region21: #{vicreg_forward.3} parent=1 // pred_fallthru
      _
    // Predicated region
    $region22: #{vicreg_forward.3} parent=1 // pred_check
      _
    $region23: #{vicreg_forward.3} parent=1 // pred_check_branch
      %30 = sbr.rel (0) target = $region25
    $region24: #{vicreg_forward.3} parent=1 // pred_region
      _
    $region25: #{vicreg_forward.3} parent=1 // pred_fallthru
      _
    // Predicated region
    $region26: #{vicreg_forward.3} parent=1 // pred_check
      _
    $region27: #{vicreg_forward.3} parent=1 // pred_check_branch
      %32 = sbr.rel (0) target = $region29
    $region28: #{vicreg_forward.3} parent=1 // pred_region
      _
    $region29: #{vicreg_forward.3} parent=1 // pred_fallthru
      _
    // Predicated region
    $region30: #{vicreg_forward.3} parent=1 // pred_check
      _
    $region31: #{vicreg_forward.3} parent=1 // pred_check_branch
      %34 = sbr.rel (0) target = $region33
    $region32: #{vicreg_forward.3} parent=1 // pred_region
      _
    $region33: #{vicreg_forward.3} parent=1 // pred_fallthru
      _
    // Predicated region
    $region34: #{vicreg_forward.3} parent=1 // pred_check
      _
    $region35: #{vicreg_forward.3} parent=1 // pred_check_branch
      %36 = sbr.rel (0) target = $region37
    $region36: #{vicreg_forward.3} parent=1 // pred_region
      _
    $region37: #{vicreg_forward.3} parent=1 // pred_fallthru
      _
    // Predicated region
    $region38: #{vicreg_forward.3} parent=1 // pred_check
      _
    $region39: #{vicreg_forward.3} parent=1 // pred_check_branch
      %38 = sbr.rel (0) target = $region41
    $region40: #{vicreg_forward.3} parent=1 // pred_region
      _
    $region41: #{vicreg_forward.3} parent=1 // pred_fallthru
      _
    // Predicated region
    $region42: #{vicreg_forward.3} parent=1 // pred_check
      _
    $region43: #{vicreg_forward.3} parent=1 // pred_check_branch
      %40 = sbr.rel (0) target = $region45
    $region44: #{vicreg_forward.3} parent=1 // pred_region
      _
    $region45: #{vicreg_forward.3} parent=1 // pred_fallthru
      _
    // Predicated region
    $region46: #{vicreg_forward.3} parent=1 // pred_check
      _
    $region47: #{vicreg_forward.3} parent=1 // pred_check_branch
      %42 = sbr.rel (0) target = $region49
    $region48: #{vicreg_forward.3} parent=1 // pred_region
      _
    $region49: #{vicreg_forward.3} parent=1 // pred_fallthru
      _
    // Predicated region
    $region50: #{vicreg_forward.3} parent=1 // pred_check
      _
    $region51: #{vicreg_forward.3} parent=1 // pred_check_branch
      %44 = sbr.rel (0) target = $region53
    $region52: #{vicreg_forward.3} parent=1 // pred_region
      _
    $region53: #{vicreg_forward.3} parent=1 // pred_fallthru
      _
    %v45 = vld [vmem:[%s0] sm:$0xff]
    %v46 = vld [vmem:[%s0 + $0x8] sm:$0xff]
    %v47 = vld [vmem:[%s0 + $0x10] sm:$0xff]
    %v48 = vld [vmem:[%s0 + $0x18] sm:$0xff]
    %v49 = vld [vmem:[%s0 + $0x20] sm:$0xff]
    %v50 = vld [vmem:[%s0 + $0x28] sm:$0xff]
    %v51 = vld [vmem:[%s0 + $0x30] sm:$0xff]
    %v52 = vld [vmem:[%s0 + $0x38] sm:$0xff]
    %v53 = vld [vmem:[%s1] sm:$0xff]
    %v54 = vld [vmem:[%s1 + $0x8] sm:$0xff]
    %v55 = vld [vmem:[%s1 + $0x10] sm:$0xff]
    %v56 = vld [vmem:[%s1 + $0x18] sm:$0xff]
    %v57 = vld [vmem:[%s1 + $0x20] sm:$0xff]
    %v58 = vld [vmem:[%s1 + $0x28] sm:$0xff]
    %v59 = vld [vmem:[%s1 + $0x30] sm:$0xff]
    %v60 = vld [vmem:[%s1 + $0x38] sm:$0xff]
    %v61 = vld [vmem:[%s1 + $0x40] sm:$0x3f]
    %v62 = vld [vmem:[%s2] sm:$0x1]
    %v64 = vlaneseq
    %v65 = vshrl.u32 %v64, 7
    %v66 = vsub.s32 0, %v65
    %v67 = vrot.slane %v62, %v66
    %vm69 = vcmask 572416
    %v71 = vsel %vm69, %v45, 0
    %v74 = vsel %vm69, %v46, 0
    %v77 = vsel %vm69, %v47, 0
    %v80 = vsel %vm69, %v48, 0
    %v83 = vsel %vm69, %v49, 0
    %v86 = vsel %vm69, %v50, 0
    %v89 = vsel %vm69, %v51, 0
    %v92 = vsel %vm69, %v52, 0
    %vm94 = vcmask 1045504
    %v96 = vsel %vm94, %v61, 0
    %98 = vmatprep.subr.mxu0 0.0
    %99 = vmatpush1.msra.mxu0 %v53
    %100 = vmatprep.subr.mxu0 0.0
    %101 = vmatpush1.msra.mxu0 %v54
    %102 = vmatprep.subr.mxu0 0.0
    %103 = vmatpush1.msra.mxu0 %v55
    %104 = vmatprep.subr.mxu0 0.0
    %105 = vmatpush1.msra.mxu0 %v56
    %106 = vmatprep.subr.mxu0 0.0
    %107 = vmatpush1.msra.mxu0 %v57
    %108 = vmatprep.subr.mxu0 0.0
    %109 = vmatpush1.msra.mxu0 %v58
    %110 = vmatprep.subr.mxu0 0.0
    %111 = vmatpush1.msra.mxu0 %v59
    %112 = vmatprep.subr.mxu0 0.0
    %113 = vmatpush1.msra.mxu0 %v60
    %114 = vmatprep.subr.mxu0 0.0
    %115 = vmatpush1.msra.mxu0 %v96
    %116 = vmatprep.subr.mxu0 0.0
    %117 = vmatpush1.msra.mxu0 0.0
    %118 = vmatprep.subr.mxu0 0.0
    %119 = vmatpush1.msra.mxu0 0.0
    %120 = vmatprep.subr.mxu0 0.0
    %121 = vmatpush1.msra.mxu0 0.0
    %122 = vmatprep.subr.mxu0 0.0
    %123 = vmatpush1.msra.mxu0 0.0
    %124 = vmatprep.subr.mxu0 0.0
    %125 = vmatpush1.msra.mxu0 0.0
    %126 = vmatprep.subr.mxu0 0.0
    %127 = vmatpush1.msra.mxu0 0.0
    %128 = vmatprep.subr.mxu0 0.0
    %129 = vmatpush1.msra.mxu0 0.0
    %130 = vmatprep.subr.mxu0 0.0
    %131 = vmatpush1.msra.mxu0 0.0
    %132 = vmatprep.subr.mxu0 0.0
    %133 = vmatpush1.msra.mxu0 0.0
    %134 = vmatprep.subr.mxu0 0.0
    %135 = vmatpush1.msra.mxu0 0.0
    %136 = vmatprep.subr.mxu0 0.0
    %137 = vmatpush1.msra.mxu0 0.0
    %138 = vmatprep.subr.mxu0 0.0
    %139 = vmatpush1.msra.mxu0 0.0
    %140 = vmatprep.subr.mxu0 0.0
    %141 = vmatpush1.msra.mxu0 0.0
    %142 = vmatprep.subr.mxu0 0.0
    %143 = vmatpush1.msra.mxu0 0.0
    %144 = vmatprep.subr.mxu0 0.0
    %145 = vmatpush1.msra.mxu0 0.0
    %146 = vmatprep.subr.mxu0 0.0
    %147 = vmatpush1.msra.mxu0 0.0
    %148 = vmatprep.subr.mxu0 0.0
    %149 = vmatpush1.msra.mxu0 0.0
    %150 = vmatprep.subr.mxu0 0.0
    %151 = vmatpush1.msra.mxu0 0.0
    %152 = vmatprep.subr.mxu0 0.0
    %153 = vmatpush1.msra.mxu0 0.0
    %154 = vmatprep.subr.mxu0 0.0
    %155 = vmatpush1.msra.mxu0 0.0
    %156 = vmatprep.subr.mxu0 0.0
    %157 = vmatpush1.msra.mxu0 0.0
    %158 = vmatprep.subr.mxu0 0.0
    %159 = vmatpush1.msra.mxu0 0.0
    %160 = vmatprep.subr.mxu0 0.0
    %161 = vmatpush1.msra.mxu0 0.0
    %162 = vmatprep.mubr.f32.mxu0 0.0
    %163 = vmatmul.mubr.f32.gmra.mrb[0].mxu0 %v71
    %v164 = vpop.f32.mrb[0].mxu0
    %v165 = vadd.f32 %v67, %v164
    %v166 = vpop.f32.mrb[0].mxu0
    %167 = vmatprep.mubr.f32.mxu0 0.0
    %168 = vmatmul.mubr.f32.gmra.mrb[0].mxu0 %v74
    %v169 = vpop.f32.mrb[0].mxu0
    %v170 = vadd.f32 %v67, %v169
    %v171 = vpop.f32.mrb[0].mxu0
    %172 = vmatprep.mubr.f32.mxu0 0.0
    %173 = vmatmul.mubr.f32.gmra.mrb[0].mxu0 %v77
    %v174 = vpop.f32.mrb[0].mxu0
    %v175 = vadd.f32 %v67, %v174
    %v176 = vpop.f32.mrb[0].mxu0
    %177 = vmatprep.mubr.f32.mxu0 0.0
    %178 = vmatmul.mubr.f32.gmra.mrb[0].mxu0 %v80
    %v179 = vpop.f32.mrb[0].mxu0
    %v180 = vadd.f32 %v67, %v179
    %v181 = vpop.f32.mrb[0].mxu0
    %182 = vmatprep.mubr.f32.mxu0 0.0
    %183 = vmatmul.mubr.f32.gmra.mrb[0].mxu0 %v83
    %v184 = vpop.f32.mrb[0].mxu0
    %v185 = vadd.f32 %v67, %v184
    %v186 = vpop.f32.mrb[0].mxu0
    %187 = vmatprep.mubr.f32.mxu0 0.0
    %188 = vmatmul.mubr.f32.gmra.mrb[0].mxu0 %v86
    %v189 = vpop.f32.mrb[0].mxu0
    %v190 = vadd.f32 %v67, %v189
    %v191 = vpop.f32.mrb[0].mxu0
    %192 = vmatprep.mubr.f32.mxu0 0.0
    %193 = vmatmul.mubr.f32.gmra.mrb[0].mxu0 %v89
    %v194 = vpop.f32.mrb[0].mxu0
    %v195 = vadd.f32 %v67, %v194
    %v196 = vpop.f32.mrb[0].mxu0
    %197 = vmatprep.mubr.f32.mxu0 0.0
    %198 = vmatmul.mubr.f32.gmra.mrb[0].mxu0 %v92
    %v199 = vpop.f32.mrb[0].mxu0
    %v200 = vadd.f32 %v67, %v199
    %v201 = vpop.f32.mrb[0].mxu0
    %202 = vdwg.mxu0
    %v203 = vmax.f32 %v165, 0.0
    %v204 = vmax.f32 %v170, 0.0
    %v205 = vmax.f32 %v175, 0.0
    %v206 = vmax.f32 %v180, 0.0
    %v207 = vmax.f32 %v185, 0.0
    %v208 = vmax.f32 %v190, 0.0
    %v209 = vmax.f32 %v195, 0.0
    %v210 = vmax.f32 %v200, 0.0
    %211 = vst [vmem:[#allocation2] sm:$0xff] 0.0
    %212 = vst [vmem:[#allocation2 + $0x8] sm:$0xff] 0.0
    %213 = vst [vmem:[#allocation2 + $0x10] sm:$0xff] 0.0
    %214 = vst [vmem:[#allocation2 + $0x18] sm:$0xff] 0.0
    %215 = vst [vmem:[#allocation2 + $0x20] sm:$0xff] 0.0
    %216 = vst [vmem:[#allocation2 + $0x28] sm:$0xff] 0.0
    %217 = vst [vmem:[#allocation2 + $0x30] sm:$0xff] 0.0
    %218 = vst [vmem:[#allocation2 + $0x38] sm:$0xff] 0.0
    %219 = vst [vmem:[#allocation2 + $0x40] sm:$0xff] 0.0
    %220 = vst [vmem:[#allocation2 + $0x48] sm:$0xff] 0.0
    %221 = vst [vmem:[#allocation2 + $0x50] sm:$0xff] 0.0
    %222 = vst [vmem:[#allocation2 + $0x58] sm:$0xff] 0.0
    %223 = vst [vmem:[#allocation2 + $0x60] sm:$0xff] 0.0
    %224 = vst [vmem:[#allocation2 + $0x68] sm:$0xff] 0.0
    %225 = vst [vmem:[#allocation2 + $0x70] sm:$0xff] 0.0
    %226 = vst [vmem:[#allocation2 + $0x78] sm:$0xff] 0.0
    %227 = vst [vmem:[#allocation2 + $0x8] sm:$0xff] %v203
    %228 = vst [vmem:[#allocation2 + $0x10] sm:$0xff] %v204
    %229 = vst [vmem:[#allocation2 + $0x28] sm:$0xff] %v205
    %230 = vst [vmem:[#allocation2 + $0x30] sm:$0xff] %v206
    %231 = vst [vmem:[#allocation2 + $0x48] sm:$0xff] %v207
    %232 = vst [vmem:[#allocation2 + $0x50] sm:$0xff] %v208
    %233 = vst [vmem:[#allocation2 + $0x68] sm:$0xff] %v209
    %234 = vst [vmem:[#allocation2 + $0x70] sm:$0xff] %v210
    %v235 = vld [vmem:[#allocation2 + $0x5] sm:$0xff]
    %v236 = vld [vmem:[#allocation2 + $0xd] sm:$0xff]
    %v237 = vld [vmem:[#allocation2 + $0x25] sm:$0xff]
    %v238 = vld [vmem:[#allocation2 + $0x2d] sm:$0xff]
    %v239 = vld [vmem:[#allocation2 + $0x45] sm:$0xff]
    %v240 = vld [vmem:[#allocation2 + $0x4d] sm:$0xff]
    %v241 = vld [vmem:[#allocation2 + $0x65] sm:$0xff]
    %v242 = vld [vmem:[#allocation2 + $0x6d] sm:$0xff]
    %v243 = vld [vmem:[#allocation2 + $0x6] sm:$0xff]
    %v244 = vld [vmem:[#allocation2 + $0xe] sm:$0xff]
    %v245 = vld [vmem:[#allocation2 + $0x26] sm:$0xff]
    %v246 = vld [vmem:[#allocation2 + $0x2e] sm:$0xff]
    %v247 = vld [vmem:[#allocation2 + $0x46] sm:$0xff]
    %v248 = vld [vmem:[#allocation2 + $0x4e] sm:$0xff]
    %v249 = vld [vmem:[#allocation2 + $0x66] sm:$0xff]
    %v250 = vld [vmem:[#allocation2 + $0x6e] sm:$0xff]
    %v251 = vld [vmem:[#allocation2 + $0x7] sm:$0xff]
    %v252 = vld [vmem:[#allocation2 + $0xf] sm:$0xff]
    %v253 = vld [vmem:[#allocation2 + $0x27] sm:$0xff]
    %v254 = vld [vmem:[#allocation2 + $0x2f] sm:$0xff]
    %v255 = vld [vmem:[#allocation2 + $0x47] sm:$0xff]
    %v256 = vld [vmem:[#allocation2 + $0x4f] sm:$0xff]
    %v257 = vld [vmem:[#allocation2 + $0x67] sm:$0xff]
    %v258 = vld [vmem:[#allocation2 + $0x6f] sm:$0xff]
    %v259 = vld [vmem:[#allocation2 + $0x8] sm:$0xff]
    %v260 = vld [vmem:[#allocation2 + $0x10] sm:$0xff]
    %v261 = vld [vmem:[#allocation2 + $0x28] sm:$0xff]
    %v262 = vld [vmem:[#allocation2 + $0x30] sm:$0xff]
    %v263 = vld [vmem:[#allocation2 + $0x48] sm:$0xff]
    %v264 = vld [vmem:[#allocation2 + $0x50] sm:$0xff]
    %v265 = vld [vmem:[#allocation2 + $0x68] sm:$0xff]
    %v266 = vld [vmem:[#allocation2 + $0x70] sm:$0xff]
    %v267 = vld [vmem:[#allocation2 + $0x9] sm:$0xff]
    %v268 = vld [vmem:[#allocation2 + $0x11] sm:$0xff]
    %v269 = vld [vmem:[#allocation2 + $0x29] sm:$0xff]
    %v270 = vld [vmem:[#allocation2 + $0x31] sm:$0xff]
    %v271 = vld [vmem:[#allocation2 + $0x49] sm:$0xff]
    %v272 = vld [vmem:[#allocation2 + $0x51] sm:$0xff]
    %v273 = vld [vmem:[#allocation2 + $0x69] sm:$0xff]
    %v274 = vld [vmem:[#allocation2 + $0x71] sm:$0xff]
    %v275 = vld [vmem:[#allocation2 + $0xa] sm:$0xff]
    %v276 = vld [vmem:[#allocation2 + $0x12] sm:$0xff]
    %v277 = vld [vmem:[#allocation2 + $0x2a] sm:$0xff]
    %v278 = vld [vmem:[#allocation2 + $0x32] sm:$0xff]
    %v279 = vld [vmem:[#allocation2 + $0x4a] sm:$0xff]
    %v280 = vld [vmem:[#allocation2 + $0x52] sm:$0xff]
    %v281 = vld [vmem:[#allocation2 + $0x6a] sm:$0xff]
    %v282 = vld [vmem:[#allocation2 + $0x72] sm:$0xff]
    %v283 = vld [vmem:[#allocation2 + $0xb] sm:$0xff]
    %v284 = vld [vmem:[#allocation2 + $0x13] sm:$0xff]
    %v285 = vld [vmem:[#allocation2 + $0x2b] sm:$0xff]
    %v286 = vld [vmem:[#allocation2 + $0x33] sm:$0xff]
    %v287 = vld [vmem:[#allocation2 + $0x4b] sm:$0xff]
    %v288 = vld [vmem:[#allocation2 + $0x53] sm:$0xff]
    %v289 = vld [vmem:[#allocation2 + $0x6b] sm:$0xff]
    %v290 = vld [vmem:[#allocation2 + $0x73] sm:$0xff]
    %v291 = vld [vmem:[%s3] sm:$0xff]
    %v292 = vld [vmem:[%s3 + $0x8] sm:$0xff]
    %v293 = vld [vmem:[%s3 + $0x10] sm:$0xff]
    %v294 = vld [vmem:[%s3 + $0x18] sm:$0xff]
    %v295 = vld [vmem:[%s3 + $0x20] sm:$0xff]
    %v296 = vld [vmem:[%s3 + $0x28] sm:$0xff]
    %v297 = vld [vmem:[%s3 + $0x30] sm:$0xff]
    %v298 = vld [vmem:[%s3 + $0x38] sm:$0xff]
    %v299 = vld [vmem:[%s3 + $0x40] sm:$0xff]
    %v300 = vld [vmem:[%s3 + $0x48] sm:$0xff]
    %v301 = vld [vmem:[%s3 + $0x50] sm:$0xff]
    %v302 = vld [vmem:[%s3 + $0x58] sm:$0xff]
    %v303 = vld [vmem:[%s3 + $0x60] sm:$0xff]
    %v304 = vld [vmem:[%s3 + $0x68] sm:$0xff]
    %v305 = vld [vmem:[%s3 + $0x70] sm:$0xff]
    %v306 = vld [vmem:[%s3 + $0x78] sm:$0xff]
    %v307 = vld [vmem:[%s3 + $0x80] sm:$0xff]
    %v308 = vld [vmem:[%s3 + $0x88] sm:$0xff]
    %v309 = vld [vmem:[%s3 + $0x90] sm:$0xff]
    %v310 = vld [vmem:[%s3 + $0x98] sm:$0xff]
    %v311 = vld [vmem:[%s3 + $0xa0] sm:$0xff]
    %v312 = vld [vmem:[%s3 + $0xa8] sm:$0xff]
    %v313 = vld [vmem:[%s3 + $0xb0] sm:$0xff]
    %v314 = vld [vmem:[%s3 + $0xb8] sm:$0xff]
    %v315 = vld [vmem:[%s3 + $0xc0] sm:$0xff]
    %v316 = vld [vmem:[%s3 + $0xc8] sm:$0xff]
    %v317 = vld [vmem:[%s3 + $0xd0] sm:$0xff]
    %v318 = vld [vmem:[%s3 + $0xd8] sm:$0xff]
    %v319 = vld [vmem:[%s3 + $0xe0] sm:$0xff]
    %v320 = vld [vmem:[%s3 + $0xe8] sm:$0xff]
    %v321 = vld [vmem:[%s3 + $0xf0] sm:$0xff]
    %v322 = vld [vmem:[%s3 + $0xf8] sm:$0xff]
    %v323 = vld [vmem:[%s3 + $0x100] sm:$0xff]
    %v324 = vld [vmem:[%s3 + $0x108] sm:$0xff]
    %v325 = vld [vmem:[%s3 + $0x110] sm:$0xff]
    %v326 = vld [vmem:[%s3 + $0x118] sm:$0xff]
    %v327 = vld [vmem:[%s3 + $0x120] sm:$0xff]
    %v328 = vld [vmem:[%s3 + $0x128] sm:$0xff]
    %v329 = vld [vmem:[%s3 + $0x130] sm:$0xff]
    %v330 = vld [vmem:[%s3 + $0x138] sm:$0xff]
    %v331 = vld [vmem:[%s3 + $0x140] sm:$0xff]
    %v332 = vld [vmem:[%s3 + $0x148] sm:$0xff]
    %v333 = vld [vmem:[%s3 + $0x150] sm:$0xff]
    %v334 = vld [vmem:[%s3 + $0x158] sm:$0xff]
    %v335 = vld [vmem:[%s3 + $0x160] sm:$0xff]
    %v336 = vld [vmem:[%s3 + $0x168] sm:$0xff]
    %v337 = vld [vmem:[%s3 + $0x170] sm:$0xff]
    %v338 = vld [vmem:[%s3 + $0x178] sm:$0xff]
    %v339 = vld [vmem:[%s3 + $0x180] sm:$0xff]
    %v340 = vld [vmem:[%s3 + $0x188] sm:$0xff]
    %v341 = vld [vmem:[%s3 + $0x190] sm:$0xff]
    %v342 = vld [vmem:[%s3 + $0x198] sm:$0xff]
    %v343 = vld [vmem:[%s3 + $0x1a0] sm:$0xff]
    %v344 = vld [vmem:[%s3 + $0x1a8] sm:$0xff]
    %v345 = vld [vmem:[%s3 + $0x1b0] sm:$0xff]
    %v346 = vld [vmem:[%s3 + $0x1b8] sm:$0xff]
    %v347 = vld [vmem:[%s3 + $0x1c0] sm:$0xff]
    %v348 = vld [vmem:[%s3 + $0x1c8] sm:$0xff]
    %v349 = vld [vmem:[%s3 + $0x1d0] sm:$0xff]
    %v350 = vld [vmem:[%s3 + $0x1d8] sm:$0xff]
    %v351 = vld [vmem:[%s3 + $0x1e0] sm:$0xff]
    %v352 = vld [vmem:[%s3 + $0x1e8] sm:$0xff]
    %v353 = vld [vmem:[%s3 + $0x1f0] sm:$0xff]
    %v354 = vld [vmem:[%s3 + $0x1f8] sm:$0xff]
    %v355 = vld [vmem:[%s3 + $0x200] sm:$0xff]
    %v356 = vld [vmem:[%s3 + $0x208] sm:$0xff]
    %v357 = vld [vmem:[%s3 + $0x210] sm:$0xff]
    %v358 = vld [vmem:[%s3 + $0x218] sm:$0xff]
    %v359 = vld [vmem:[%s3 + $0x220] sm:$0xff]
    %v360 = vld [vmem:[%s3 + $0x228] sm:$0xff]
    %v361 = vld [vmem:[%s3 + $0x230] sm:$0xff]
    %v362 = vld [vmem:[%s3 + $0x238] sm:$0xff]
    %v363 = vld [vmem:[%s3 + $0x240] sm:$0xff]
    %v364 = vld [vmem:[%s3 + $0x248] sm:$0xff]
    %v365 = vld [vmem:[%s3 + $0x250] sm:$0xff]
    %v366 = vld [vmem:[%s3 + $0x258] sm:$0xff]
    %v367 = vld [vmem:[%s3 + $0x260] sm:$0xff]
    %v368 = vld [vmem:[%s3 + $0x268] sm:$0xff]
    %v369 = vld [vmem:[%s3 + $0x270] sm:$0xff]
    %v370 = vld [vmem:[%s3 + $0x278] sm:$0xff]
    %v371 = vld [vmem:[%s3 + $0x280] sm:$0xff]
    %v372 = vld [vmem:[%s3 + $0x288] sm:$0xff]
    %v373 = vld [vmem:[%s3 + $0x290] sm:$0xff]
    %v374 = vld [vmem:[%s3 + $0x298] sm:$0xff]
    %v375 = vld [vmem:[%s3 + $0x2a0] sm:$0xff]
    %v376 = vld [vmem:[%s3 + $0x2a8] sm:$0xff]
    %v377 = vld [vmem:[%s3 + $0x2b0] sm:$0xff]
    %v378 = vld [vmem:[%s3 + $0x2b8] sm:$0xff]
    %v379 = vld [vmem:[%s3 + $0x2c0] sm:$0xff]
    %v380 = vld [vmem:[%s3 + $0x2c8] sm:$0xff]
    %v381 = vld [vmem:[%s3 + $0x2d0] sm:$0xff]
    %v382 = vld [vmem:[%s3 + $0x2d8] sm:$0xff]
    %v383 = vld [vmem:[%s3 + $0x2e0] sm:$0xff]
    %v384 = vld [vmem:[%s3 + $0x2e8] sm:$0xff]
    %v385 = vld [vmem:[%s3 + $0x2f0] sm:$0xff]
    %v386 = vld [vmem:[%s3 + $0x2f8] sm:$0xff]
    %v387 = vld [vmem:[%s3 + $0x300] sm:$0xff]
    %v388 = vld [vmem:[%s3 + $0x308] sm:$0xff]
    %v389 = vld [vmem:[%s3 + $0x310] sm:$0xff]
    %v390 = vld [vmem:[%s3 + $0x318] sm:$0xff]
    %v391 = vld [vmem:[%s3 + $0x320] sm:$0xff]
    %v392 = vld [vmem:[%s3 + $0x328] sm:$0xff]
    %v393 = vld [vmem:[%s3 + $0x330] sm:$0xff]
    %v394 = vld [vmem:[%s3 + $0x338] sm:$0xff]
    %v395 = vld [vmem:[%s3 + $0x340] sm:$0xff]
    %v396 = vld [vmem:[%s3 + $0x348] sm:$0xff]
    %v397 = vld [vmem:[%s3 + $0x350] sm:$0xff]
    %v398 = vld [vmem:[%s3 + $0x358] sm:$0xff]
    %v399 = vld [vmem:[%s3 + $0x360] sm:$0xff]
    %v400 = vld [vmem:[%s3 + $0x368] sm:$0xff]
    %v401 = vld [vmem:[%s3 + $0x370] sm:$0xff]
    %v402 = vld [vmem:[%s3 + $0x378] sm:$0xff]
    %v403 = vld [vmem:[%s4] sm:$0x1]
    %v405 = vlaneseq
    %v406 = vshrl.u32 %v405, 7
    %v407 = vsub.s32 0, %v406
    %v408 = vrot.slane %v403, %v407
    %410 = vmatprep.subr.mxu0 0.0
    %411 = vmatpush1.msra.mxu0 %v291
    %412 = vmatprep.subr.mxu0 0.0
    %413 = vmatpush1.msra.mxu0 %v292
    %414 = vmatprep.subr.mxu0 0.0
    %415 = vmatpush1.msra.mxu0 %v293
    %416 = vmatprep.subr.mxu0 0.0
    %417 = vmatpush1.msra.mxu0 %v294
    %418 = vmatprep.subr.mxu0 0.0
    %419 = vmatpush1.msra.mxu0 %v295
    %420 = vmatprep.subr.mxu0 0.0
    %421 = vmatpush1.msra.mxu0 %v296
    %422 = vmatprep.subr.mxu0 0.0
    %423 = vmatpush1.msra.mxu0 %v297
    %424 = vmatprep.subr.mxu0 0.0
    %425 = vmatpush1.msra.mxu0 %v298
    %426 = vmatprep.subr.mxu0 0.0
    %427 = vmatpush1.msra.mxu0 %v299
    %428 = vmatprep.subr.mxu0 0.0
    %429 = vmatpush1.msra.mxu0 %v300
    %430 = vmatprep.subr.mxu0 0.0
    %431 = vmatpush1.msra.mxu0 %v301
    %432 = vmatprep.subr.mxu0 0.0
    %433 = vmatpush1.msra.mxu0 %v302
    %434 = vmatprep.subr.mxu0 0.0
    %435 = vmatpush1.msra.mxu0 %v303
    %436 = vmatprep.subr.mxu0 0.0
    %437 = vmatpush1.msra.mxu0 %v304
    %438 = vmatprep.subr.mxu0 0.0
    %439 = vmatpush1.msra.mxu0 %v305
    %440 = vmatprep.subr.mxu0 0.0
    %441 = vmatpush1.msra.mxu0 %v306
    %442 = vmatprep.subr.mxu0 0.0
    %443 = vmatpush1.msra.mxu0 %v307
    %444 = vmatprep.subr.mxu0 0.0
    %445 = vmatpush1.msra.mxu0 %v308
    %446 = vmatprep.subr.mxu0 0.0
    %447 = vmatpush1.msra.mxu0 %v309
    %448 = vmatprep.subr.mxu0 0.0
    %449 = vmatpush1.msra.mxu0 %v310
    %450 = vmatprep.subr.mxu0 0.0
    %451 = vmatpush1.msra.mxu0 %v311
    %452 = vmatprep.subr.mxu0 0.0
    %453 = vmatpush1.msra.mxu0 %v312
    %454 = vmatprep.subr.mxu0 0.0
    %455 = vmatpush1.msra.mxu0 %v313
    %456 = vmatprep.subr.mxu0 0.0
    %457 = vmatpush1.msra.mxu0 %v314
    %458 = vmatprep.subr.mxu0 0.0
    %459 = vmatpush1.msra.mxu0 %v315
    %460 = vmatprep.subr.mxu0 0.0
    %461 = vmatpush1.msra.mxu0 %v316
    %462 = vmatprep.subr.mxu0 0.0
    %463 = vmatpush1.msra.mxu0 %v317
    %464 = vmatprep.subr.mxu0 0.0
    %465 = vmatpush1.msra.mxu0 %v318
    %466 = vmatprep.subr.mxu0 0.0
    %467 = vmatpush1.msra.mxu0 %v319
    %468 = vmatprep.subr.mxu0 0.0
    %469 = vmatpush1.msra.mxu0 %v320
    %470 = vmatprep.subr.mxu0 0.0
    %471 = vmatpush1.msra.mxu0 %v321
    %472 = vmatprep.subr.mxu0 0.0
    %473 = vmatpush1.msra.mxu0 %v322
    %474 = vmatprep.mubr.f32.mxu0 %v243
    %475 = vmatmul.mubr.f32.gmra.mrb[0].mxu0 %v235
    %v476 = vpop.f32.mrb[0].mxu0
    %v477 = vadd.f32 %v408, %v476
    %v478 = vpop.f32.mrb[0].mxu0
    %479 = vmatprep.mubr.f32.mxu0 %v244
    %480 = vmatmul.mubr.f32.gmra.mrb[0].mxu0 %v236
    %v481 = vpop.f32.mrb[0].mxu0
    %v482 = vadd.f32 %v408, %v481
    %v483 = vpop.f32.mrb[0].mxu0
    %484 = vmatprep.mubr.f32.mxu0 %v245
    %485 = vmatmul.mubr.f32.gmra.mrb[0].mxu0 %v237
    %v486 = vpop.f32.mrb[0].mxu0
    %v487 = vadd.f32 %v408, %v486
    %v488 = vpop.f32.mrb[0].mxu0
    %489 = vmatprep.mubr.f32.mxu0 %v246
    %490 = vmatmul.mubr.f32.gmra.mrb[0].mxu0 %v238
    %v491 = vpop.f32.mrb[0].mxu0
    %v492 = vadd.f32 %v408, %v491
    %v493 = vpop.f32.mrb[0].mxu0
    %494 = vmatprep.mubr.f32.mxu0 %v247
    %495 = vmatmul.mubr.f32.gmra.mrb[0].mxu0 %v239
    %v496 = vpop.f32.mrb[0].mxu0
    %v497 = vadd.f32 %v408, %v496
    %v498 = vpop.f32.mrb[0].mxu0
    %499 = vmatprep.mubr.f32.mxu0 %v248
    %500 = vmatmul.mubr.f32.gmra.mrb[0].mxu0 %v240
    %v501 = vpop.f32.mrb[0].mxu0
    %v502 = vadd.f32 %v408, %v501
    %v503 = vpop.f32.mrb[0].mxu0
    %504 = vmatprep.mubr.f32.mxu0 %v249
    %505 = vmatmul.mubr.f32.gmra.mrb[0].mxu0 %v241
    %v506 = vpop.f32.mrb[0].mxu0
    %v507 = vadd.f32 %v408, %v506
    %v508 = vpop.f32.mrb[0].mxu0
    %509 = vmatprep.mubr.f32.mxu0 %v250
    %510 = vmatmul.mubr.f32.gmra.mrb[0].mxu0 %v242
    %v511 = vpop.f32.mrb[0].mxu0
    %v512 = vadd.f32 %v408, %v511
    %v513 = vpop.f32.mrb[0].mxu0
    %514 = vdwg.mxu0
    %515 = vmatprep.subr.mxu0 0.0
    %516 = vmatpush1.msra.mxu0 %v323
    %517 = vmatprep.subr.mxu0 0.0
    %518 = vmatpush1.msra.mxu0 %v324
    %519 = vmatprep.subr.mxu0 0.0
    %520 = vmatpush1.msra.mxu0 %v325
    %521 = vmatprep.subr.mxu0 0.0
    %522 = vmatpush1.msra.mxu0 %v326
    %523 = vmatprep.subr.mxu0 0.0
    %524 = vmatpush1.msra.mxu0 %v327
    %525 = vmatprep.subr.mxu0 0.0
    %526 = vmatpush1.msra.mxu0 %v328
    %527 = vmatprep.subr.mxu0 0.0
    %528 = vmatpush1.msra.mxu0 %v329
    %529 = vmatprep.subr.mxu0 0.0
    %530 = vmatpush1.msra.mxu0 %v330
    %531 = vmatprep.subr.mxu0 0.0
    %532 = vmatpush1.msra.mxu0 %v331
    %533 = vmatprep.subr.mxu0 0.0
    %534 = vmatpush1.msra.mxu0 %v332
    %535 = vmatprep.subr.mxu0 0.0
    %536 = vmatpush1.msra.mxu0 %v333
    %537 = vmatprep.subr.mxu0 0.0
    %538 = vmatpush1.msra.mxu0 %v334
    %539 = vmatprep.subr.mxu0 0.0
    %540 = vmatpush1.msra.mxu0 %v335
    %541 = vmatprep.subr.mxu0 0.0
    %542 = vmatpush1.msra.mxu0 %v336
    %543 = vmatprep.subr.mxu0 0.0
    %544 = vmatpush1.msra.mxu0 %v337
    %545 = vmatprep.subr.mxu0 0.0
    %546 = vmatpush1.msra.mxu0 %v338
    %547 = vmatprep.subr.mxu0 0.0
    %548 = vmatpush1.msra.mxu0 %v339
    %549 = vmatprep.subr.mxu0 0.0
    %550 = vmatpush1.msra.mxu0 %v340
    %551 = vmatprep.subr.mxu0 0.0
    %552 = vmatpush1.msra.mxu0 %v341
    %553 = vmatprep.subr.mxu0 0.0
    %554 = vmatpush1.msra.mxu0 %v342
    %555 = vmatprep.subr.mxu0 0.0
    %556 = vmatpush1.msra.mxu0 %v343
    %557 = vmatprep.subr.mxu0 0.0
    %558 = vmatpush1.msra.mxu0 %v344
    %559 = vmatprep.subr.mxu0 0.0
    %560 = vmatpush1.msra.mxu0 %v345
    %561 = vmatprep.subr.mxu0 0.0
    %562 = vmatpush1.msra.mxu0 %v346
    %563 = vmatprep.subr.mxu0 0.0
    %564 = vmatpush1.msra.mxu0 %v347
    %565 = vmatprep.subr.mxu0 0.0
    %566 = vmatpush1.msra.mxu0 %v348
    %567 = vmatprep.subr.mxu0 0.0
    %568 = vmatpush1.msra.mxu0 %v349
    %569 = vmatprep.subr.mxu0 0.0
    %570 = vmatpush1.msra.mxu0 %v350
    %571 = vmatprep.subr.mxu0 0.0
    %572 = vmatpush1.msra.mxu0 %v351
    %573 = vmatprep.subr.mxu0 0.0
    %574 = vmatpush1.msra.mxu0 %v352
    %575 = vmatprep.subr.mxu0 0.0
    %576 = vmatpush1.msra.mxu0 %v353
    %577 = vmatprep.subr.mxu0 0.0
    %578 = vmatpush1.msra.mxu0 %v354
    %579 = vmatprep.mubr.f32.mxu0 %v259
    %580 = vmatmul.mubr.f32.gmra.mrb[0].mxu0 %v251
    %v581 = vpop.f32.mrb[0].mxu0
    %v582 = vadd.f32 %v477, %v581
    %v583 = vpop.f32.mrb[0].mxu0
    %584 = vmatprep.mubr.f32.mxu0 %v260
    %585 = vmatmul.mubr.f32.gmra.mrb[0].mxu0 %v252
    %v586 = vpop.f32.mrb[0].mxu0
    %v587 = vadd.f32 %v482, %v586
    %v588 = vpop.f32.mrb[0].mxu0
    %589 = vmatprep.mubr.f32.mxu0 %v261
    %590 = vmatmul.mubr.f32.gmra.mrb[0].mxu0 %v253
    %v591 = vpop.f32.mrb[0].mxu0
    %v592 = vadd.f32 %v487, %v591
    %v593 = vpop.f32.mrb[0].mxu0
    %594 = vmatprep.mubr.f32.mxu0 %v262
    %595 = vmatmul.mubr.f32.gmra.mrb[0].mxu0 %v254
    %v596 = vpop.f32.mrb[0].mxu0
    %v597 = vadd.f32 %v492, %v596
    %v598 = vpop.f32.mrb[0].mxu0
    %599 = vmatprep.mubr.f32.mxu0 %v263
    %600 = vmatmul.mubr.f32.gmra.mrb[0].mxu0 %v255
    %v601 = vpop.f32.mrb[0].mxu0
    %v602 = vadd.f32 %v497, %v601
    %v603 = vpop.f32.mrb[0].mxu0
    %604 = vmatprep.mubr.f32.mxu0 %v264
    %605 = vmatmul.mubr.f32.gmra.mrb[0].mxu0 %v256
    %v606 = vpop.f32.mrb[0].mxu0
    %v607 = vadd.f32 %v502, %v606
    %v608 = vpop.f32.mrb[0].mxu0
    %609 = vmatprep.mubr.f32.mxu0 %v265
    %610 = vmatmul.mubr.f32.gmra.mrb[0].mxu0 %v257
    %v611 = vpop.f32.mrb[0].mxu0
    %v612 = vadd.f32 %v507, %v611
    %v613 = vpop.f32.mrb[0].mxu0
    %614 = vmatprep.mubr.f32.mxu0 %v266
    %615 = vmatmul.mubr.f32.gmra.mrb[0].mxu0 %v258
    %v616 = vpop.f32.mrb[0].mxu0
    %v617 = vadd.f32 %v512, %v616
    %v618 = vpop.f32.mrb[0].mxu0
    %619 = vdwg.mxu0
    %620 = vmatprep.subr.mxu0 0.0
    %621 = vmatpush1.msra.mxu0 %v355
    %622 = vmatprep.subr.mxu0 0.0
    %623 = vmatpush1.msra.mxu0 %v356
    %624 = vmatprep.subr.mxu0 0.0
    %625 = vmatpush1.msra.mxu0 %v357
    %626 = vmatprep.subr.mxu0 0.0
    %627 = vmatpush1.msra.mxu0 %v358
    %628 = vmatprep.subr.mxu0 0.0
    %629 = vmatpush1.msra.mxu0 %v359
    %630 = vmatprep.subr.mxu0 0.0
    %631 = vmatpush1.msra.mxu0 %v360
    %632 = vmatprep.subr.mxu0 0.0
    %633 = vmatpush1.msra.mxu0 %v361
    %634 = vmatprep.subr.mxu0 0.0
    %635 = vmatpush1.msra.mxu0 %v362
    %636 = vmatprep.subr.mxu0 0.0
    %637 = vmatpush1.msra.mxu0 %v363
    %638 = vmatprep.subr.mxu0 0.0
    %639 = vmatpush1.msra.mxu0 %v364
    %640 = vmatprep.subr.mxu0 0.0
    %641 = vmatpush1.msra.mxu0 %v365
    %642 = vmatprep.subr.mxu0 0.0
    %643 = vmatpush1.msra.mxu0 %v366
    %644 = vmatprep.subr.mxu0 0.0
    %645 = vmatpush1.msra.mxu0 %v367
    %646 = vmatprep.subr.mxu0 0.0
    %647 = vmatpush1.msra.mxu0 %v368
    %648 = vmatprep.subr.mxu0 0.0
    %649 = vmatpush1.msra.mxu0 %v369
    %650 = vmatprep.subr.mxu0 0.0
    %651 = vmatpush1.msra.mxu0 %v370
    %652 = vmatprep.subr.mxu0 0.0
    %653 = vmatpush1.msra.mxu0 %v371
    %654 = vmatprep.subr.mxu0 0.0
    %655 = vmatpush1.msra.mxu0 %v372
    %656 = vmatprep.subr.mxu0 0.0
    %657 = vmatpush1.msra.mxu0 %v373
    %658 = vmatprep.subr.mxu0 0.0
    %659 = vmatpush1.msra.mxu0 %v374
    %660 = vmatprep.subr.mxu0 0.0
    %661 = vmatpush1.msra.mxu0 %v375
    %662 = vmatprep.subr.mxu0 0.0
    %663 = vmatpush1.msra.mxu0 %v376
    %664 = vmatprep.subr.mxu0 0.0
    %665 = vmatpush1.msra.mxu0 %v377
    %666 = vmatprep.subr.mxu0 0.0
    %667 = vmatpush1.msra.mxu0 %v378
    %668 = vmatprep.subr.mxu0 0.0
    %669 = vmatpush1.msra.mxu0 %v379
    %670 = vmatprep.subr.mxu0 0.0
    %671 = vmatpush1.msra.mxu0 %v380
    %672 = vmatprep.subr.mxu0 0.0
    %673 = vmatpush1.msra.mxu0 %v381
    %674 = vmatprep.subr.mxu0 0.0
    %675 = vmatpush1.msra.mxu0 %v382
    %676 = vmatprep.subr.mxu0 0.0
    %677 = vmatpush1.msra.mxu0 %v383
    %678 = vmatprep.subr.mxu0 0.0
    %679 = vmatpush1.msra.mxu0 %v384
    %680 = vmatprep.subr.mxu0 0.0
    %681 = vmatpush1.msra.mxu0 %v385
    %682 = vmatprep.subr.mxu0 0.0
    %683 = vmatpush1.msra.mxu0 %v386
    %684 = vmatprep.mubr.f32.mxu0 %v275
    %685 = vmatmul.mubr.f32.gmra.mrb[0].mxu0 %v267
    %v686 = vpop.f32.mrb[0].mxu0
    %v687 = vadd.f32 %v582, %v686
    %v688 = vpop.f32.mrb[0].mxu0
    %689 = vmatprep.mubr.f32.mxu0 %v276
    %690 = vmatmul.mubr.f32.gmra.mrb[0].mxu0 %v268
    %v691 = vpop.f32.mrb[0].mxu0
    %v692 = vadd.f32 %v587, %v691
    %v693 = vpop.f32.mrb[0].mxu0
    %694 = vmatprep.mubr.f32.mxu0 %v277
    %695 = vmatmul.mubr.f32.gmra.mrb[0].mxu0 %v269
    %v696 = vpop.f32.mrb[0].mxu0
    %v697 = vadd.f32 %v592, %v696
    %v698 = vpop.f32.mrb[0].mxu0
    %699 = vmatprep.mubr.f32.mxu0 %v278
    %700 = vmatmul.mubr.f32.gmra.mrb[0].mxu0 %v270
    %v701 = vpop.f32.mrb[0].mxu0
    %v702 = vadd.f32 %v597, %v701
    %v703 = vpop.f32.mrb[0].mxu0
    %704 = vmatprep.mubr.f32.mxu0 %v279
    %705 = vmatmul.mubr.f32.gmra.mrb[0].mxu0 %v271
    %v706 = vpop.f32.mrb[0].mxu0
    %v707 = vadd.f32 %v602, %v706
    %v708 = vpop.f32.mrb[0].mxu0
    %709 = vmatprep.mubr.f32.mxu0 %v280
    %710 = vmatmul.mubr.f32.gmra.mrb[0].mxu0 %v272
    %v711 = vpop.f32.mrb[0].mxu0
    %v712 = vadd.f32 %v607, %v711
    %v713 = vpop.f32.mrb[0].mxu0
    %714 = vmatprep.mubr.f32.mxu0 %v281
    %715 = vmatmul.mubr.f32.gmra.mrb[0].mxu0 %v273
    %v716 = vpop.f32.mrb[0].mxu0
    %v717 = vadd.f32 %v612, %v716
    %v718 = vpop.f32.mrb[0].mxu0
    %719 = vmatprep.mubr.f32.mxu0 %v282
    %720 = vmatmul.mubr.f32.gmra.mrb[0].mxu0 %v274
    %v721 = vpop.f32.mrb[0].mxu0
    %v722 = vadd.f32 %v617, %v721
    %v723 = vpop.f32.mrb[0].mxu0
    %724 = vdwg.mxu0
    %725 = vmatprep.subr.mxu0 0.0
    %726 = vmatpush1.msra.mxu0 %v387
    %727 = vmatprep.subr.mxu0 0.0
    %728 = vmatpush1.msra.mxu0 %v388
    %729 = vmatprep.subr.mxu0 0.0
    %730 = vmatpush1.msra.mxu0 %v389
    %731 = vmatprep.subr.mxu0 0.0
    %732 = vmatpush1.msra.mxu0 %v390
    %733 = vmatprep.subr.mxu0 0.0
    %734 = vmatpush1.msra.mxu0 %v391
    %735 = vmatprep.subr.mxu0 0.0
    %736 = vmatpush1.msra.mxu0 %v392
    %737 = vmatprep.subr.mxu0 0.0
    %738 = vmatpush1.msra.mxu0 %v393
    %739 = vmatprep.subr.mxu0 0.0
    %740 = vmatpush1.msra.mxu0 %v394
    %741 = vmatprep.subr.mxu0 0.0
    %742 = vmatpush1.msra.mxu0 %v395
    %743 = vmatprep.subr.mxu0 0.0
    %744 = vmatpush1.msra.mxu0 %v396
    %745 = vmatprep.subr.mxu0 0.0
    %746 = vmatpush1.msra.mxu0 %v397
    %747 = vmatprep.subr.mxu0 0.0
    %748 = vmatpush1.msra.mxu0 %v398
    %749 = vmatprep.subr.mxu0 0.0
    %750 = vmatpush1.msra.mxu0 %v399
    %751 = vmatprep.subr.mxu0 0.0
    %752 = vmatpush1.msra.mxu0 %v400
    %753 = vmatprep.subr.mxu0 0.0
    %754 = vmatpush1.msra.mxu0 %v401
    %755 = vmatprep.subr.mxu0 0.0
    %756 = vmatpush1.msra.mxu0 %v402
    %757 = vmatprep.subr.mxu0 0.0
    %758 = vmatpush1.msra.mxu0 0.0
    %759 = vmatprep.subr.mxu0 0.0
    %760 = vmatpush1.msra.mxu0 0.0
    %761 = vmatprep.subr.mxu0 0.0
    %762 = vmatpush1.msra.mxu0 0.0
    %763 = vmatprep.subr.mxu0 0.0
    %764 = vmatpush1.msra.mxu0 0.0
    %765 = vmatprep.subr.mxu0 0.0
    %766 = vmatpush1.msra.mxu0 0.0
    %767 = vmatprep.subr.mxu0 0.0
    %768 = vmatpush1.msra.mxu0 0.0
    %769 = vmatprep.subr.mxu0 0.0
    %770 = vmatpush1.msra.mxu0 0.0
    %771 = vmatprep.subr.mxu0 0.0
    %772 = vmatpush1.msra.mxu0 0.0
    %773 = vmatprep.subr.mxu0 0.0
    %774 = vmatpush1.msra.mxu0 0.0
    %775 = vmatprep.subr.mxu0 0.0
    %776 = vmatpush1.msra.mxu0 0.0
    %777 = vmatprep.subr.mxu0 0.0
    %778 = vmatpush1.msra.mxu0 0.0
    %779 = vmatprep.subr.mxu0 0.0
    %780 = vmatpush1.msra.mxu0 0.0
    %781 = vmatprep.subr.mxu0 0.0
    %782 = vmatpush1.msra.mxu0 0.0
    %783 = vmatprep.subr.mxu0 0.0
    %784 = vmatpush1.msra.mxu0 0.0
    %785 = vmatprep.subr.mxu0 0.0
    %786 = vmatpush1.msra.mxu0 0.0
    %787 = vmatprep.subr.mxu0 0.0
    %788 = vmatpush1.msra.mxu0 0.0
    %789 = vmatprep.mubr.f32.mxu0 0.0
    %790 = vmatmul.mubr.f32.gmra.mrb[0].mxu0 %v283
    %v791 = vpop.f32.mrb[0].mxu0
    %v792 = vadd.f32 %v687, %v791
    %v793 = vpop.f32.mrb[0].mxu0
    %794 = vmatprep.mubr.f32.mxu0 0.0
    %795 = vmatmul.mubr.f32.gmra.mrb[0].mxu0 %v284
    %v796 = vpop.f32.mrb[0].mxu0
    %v797 = vadd.f32 %v692, %v796
    %v798 = vpop.f32.mrb[0].mxu0
    %799 = vmatprep.mubr.f32.mxu0 0.0
    %800 = vmatmul.mubr.f32.gmra.mrb[0].mxu0 %v285
    %v801 = vpop.f32.mrb[0].mxu0
    %v802 = vadd.f32 %v697, %v801
    %v803 = vpop.f32.mrb[0].mxu0
    %804 = vmatprep.mubr.f32.mxu0 0.0
    %805 = vmatmul.mubr.f32.gmra.mrb[0].mxu0 %v286
    %v806 = vpop.f32.mrb[0].mxu0
    %v807 = vadd.f32 %v702, %v806
    %v808 = vpop.f32.mrb[0].mxu0
    %809 = vmatprep.mubr.f32.mxu0 0.0
    %810 = vmatmul.mubr.f32.gmra.mrb[0].mxu0 %v287
    %v811 = vpop.f32.mrb[0].mxu0
    %v812 = vadd.f32 %v707, %v811
    %v813 = vpop.f32.mrb[0].mxu0
    %814 = vmatprep.mubr.f32.mxu0 0.0
    %815 = vmatmul.mubr.f32.gmra.mrb[0].mxu0 %v288
    %v816 = vpop.f32.mrb[0].mxu0
    %v817 = vadd.f32 %v712, %v816
    %v818 = vpop.f32.mrb[0].mxu0
    %819 = vmatprep.mubr.f32.mxu0 0.0
    %820 = vmatmul.mubr.f32.gmra.mrb[0].mxu0 %v289
    %v821 = vpop.f32.mrb[0].mxu0
    %v822 = vadd.f32 %v717, %v821
    %v823 = vpop.f32.mrb[0].mxu0
    %824 = vmatprep.mubr.f32.mxu0 0.0
    %825 = vmatmul.mubr.f32.gmra.mrb[0].mxu0 %v290
    %v826 = vpop.f32.mrb[0].mxu0
    %v827 = vadd.f32 %v722, %v826
    %v828 = vpop.f32.mrb[0].mxu0
    %829 = vdwg.mxu0
    %v830 = vmax.f32 %v792, 0.0
    %v831 = vmax.f32 %v797, 0.0
    %v832 = vmax.f32 %v802, 0.0
    %v833 = vmax.f32 %v807, 0.0
    %v834 = vmax.f32 %v812, 0.0
    %v835 = vmax.f32 %v817, 0.0
    %v836 = vmax.f32 %v822, 0.0
    %v837 = vmax.f32 %v827, 0.0
    %838 = vst [vmem:[#allocation3] sm:$0xff] 0.0
    %839 = vst [vmem:[#allocation3 + $0x8] sm:$0xff] 0.0
    %840 = vst [vmem:[#allocation3 + $0x10] sm:$0xff] 0.0
    %841 = vst [vmem:[#allocation3 + $0x18] sm:$0xff] 0.0
    %842 = vst [vmem:[#allocation3 + $0x20] sm:$0xff] 0.0
    %843 = vst [vmem:[#allocation3 + $0x28] sm:$0xff] 0.0
    %844 = vst [vmem:[#allocation3 + $0x30] sm:$0xff] 0.0
    %845 = vst [vmem:[#allocation3 + $0x38] sm:$0xff] 0.0
    %846 = vst [vmem:[#allocation3 + $0x40] sm:$0xff] 0.0
    %847 = vst [vmem:[#allocation3 + $0x48] sm:$0xff] 0.0
    %848 = vst [vmem:[#allocation3 + $0x50] sm:$0xff] 0.0
    %849 = vst [vmem:[#allocation3 + $0x58] sm:$0xff] 0.0
    %850 = vst [vmem:[#allocation3 + $0x60] sm:$0xff] 0.0
    %851 = vst [vmem:[#allocation3 + $0x68] sm:$0xff] 0.0
    %852 = vst [vmem:[#allocation3 + $0x70] sm:$0xff] 0.0
    %853 = vst [vmem:[#allocation3 + $0x78] sm:$0xff] 0.0
    %854 = vst [vmem:[#allocation3 + $0x8] sm:$0xff] %v830
    %855 = vst [vmem:[#allocation3 + $0x10] sm:$0xff] %v831
    %856 = vst [vmem:[#allocation3 + $0x28] sm:$0xff] %v832
    %857 = vst [vmem:[#allocation3 + $0x30] sm:$0xff] %v833
    %858 = vst [vmem:[#allocation3 + $0x48] sm:$0xff] %v834
    %859 = vst [vmem:[#allocation3 + $0x50] sm:$0xff] %v835
    %860 = vst [vmem:[#allocation3 + $0x68] sm:$0xff] %v836
    %861 = vst [vmem:[#allocation3 + $0x70] sm:$0xff] %v837
    %v862 = vld [vmem:[#allocation3 + $0x5] sm:$0xff]
    %v863 = vld [vmem:[#allocation3 + $0xd] sm:$0xff]
    %v864 = vld [vmem:[#allocation3 + $0x25] sm:$0xff]
    %v865 = vld [vmem:[#allocation3 + $0x2d] sm:$0xff]
    %v866 = vld [vmem:[#allocation3 + $0x45] sm:$0xff]
    %v867 = vld [vmem:[#allocation3 + $0x4d] sm:$0xff]
    %v868 = vld [vmem:[#allocation3 + $0x65] sm:$0xff]
    %v869 = vld [vmem:[#allocation3 + $0x6d] sm:$0xff]
    %v870 = vld [vmem:[#allocation3 + $0x6] sm:$0xff]
    %v871 = vld [vmem:[#allocation3 + $0xe] sm:$0xff]
    %v872 = vld [vmem:[#allocation3 + $0x26] sm:$0xff]
    %v873 = vld [vmem:[#allocation3 + $0x2e] sm:$0xff]
    %v874 = vld [vmem:[#allocation3 + $0x46] sm:$0xff]
    %v875 = vld [vmem:[#allocation3 + $0x4e] sm:$0xff]
    %v876 = vld [vmem:[#allocation3 + $0x66] sm:$0xff]
    %v877 = vld [vmem:[#allocation3 + $0x6e] sm:$0xff]
    %v878 = vld [vmem:[#allocation3 + $0x7] sm:$0xff]
    %v879 = vld [vmem:[#allocation3 + $0xf] sm:$0xff]
    %v880 = vld [vmem:[#allocation3 + $0x27] sm:$0xff]
    %v881 = vld [vmem:[#allocation3 + $0x2f] sm:$0xff]
    %v882 = vld [vmem:[#allocation3 + $0x47] sm:$0xff]
    %v883 = vld [vmem:[#allocation3 + $0x4f] sm:$0xff]
    %v884 = vld [vmem:[#allocation3 + $0x67] sm:$0xff]
    %v885 = vld [vmem:[#allocation3 + $0x6f] sm:$0xff]
    %v886 = vld [vmem:[#allocation3 + $0x8] sm:$0xff]
    %v887 = vld [vmem:[#allocation3 + $0x10] sm:$0xff]
    %v888 = vld [vmem:[#allocation3 + $0x28] sm:$0xff]
    %v889 = vld [vmem:[#allocation3 + $0x30] sm:$0xff]
    %v890 = vld [vmem:[#allocation3 + $0x48] sm:$0xff]
    %v891 = vld [vmem:[#allocation3 + $0x50] sm:$0xff]
    %v892 = vld [vmem:[#allocation3 + $0x68] sm:$0xff]
    %v893 = vld [vmem:[#allocation3 + $0x70] sm:$0xff]
    %v894 = vld [vmem:[#allocation3 + $0x9] sm:$0xff]
    %v895 = vld [vmem:[#allocation3 + $0x11] sm:$0xff]
    %v896 = vld [vmem:[#allocation3 + $0x29] sm:$0xff]
    %v897 = vld [vmem:[#allocation3 + $0x31] sm:$0xff]
    %v898 = vld [vmem:[#allocation3 + $0x49] sm:$0xff]
    %v899 = vld [vmem:[#allocation3 + $0x51] sm:$0xff]
    %v900 = vld [vmem:[#allocation3 + $0x69] sm:$0xff]
    %v901 = vld [vmem:[#allocation3 + $0x71] sm:$0xff]
    %v902 = vld [vmem:[#allocation3 + $0xa] sm:$0xff]
    %v903 = vld [vmem:[#allocation3 + $0x12] sm:$0xff]
    %v904 = vld [vmem:[#allocation3 + $0x2a] sm:$0xff]
    %v905 = vld [vmem:[#allocation3 + $0x32] sm:$0xff]
    %v906 = vld [vmem:[#allocation3 + $0x4a] sm:$0xff]
    %v907 = vld [vmem:[#allocation3 + $0x52] sm:$0xff]
    %v908 = vld [vmem:[#allocation3 + $0x6a] sm:$0xff]
    %v909 = vld [vmem:[#allocation3 + $0x72] sm:$0xff]
    %v910 = vld [vmem:[#allocation3 + $0xb] sm:$0xff]
    %v911 = vld [vmem:[#allocation3 + $0x13] sm:$0xff]
    %v912 = vld [vmem:[#allocation3 + $0x2b] sm:$0xff]
    %v913 = vld [vmem:[#allocation3 + $0x33] sm:$0xff]
    %v914 = vld [vmem:[#allocation3 + $0x4b] sm:$0xff]
    %v915 = vld [vmem:[#allocation3 + $0x53] sm:$0xff]
    %v916 = vld [vmem:[#allocation3 + $0x6b] sm:$0xff]
    %v917 = vld [vmem:[#allocation3 + $0x73] sm:$0xff]
    %v918 = vld [vmem:[%s5] sm:$0xff]
    %v919 = vld [vmem:[%s5 + $0x8] sm:$0xff]
    %v920 = vld [vmem:[%s5 + $0x10] sm:$0xff]
    %v921 = vld [vmem:[%s5 + $0x18] sm:$0xff]
    %v922 = vld [vmem:[%s5 + $0x20] sm:$0xff]
    %v923 = vld [vmem:[%s5 + $0x28] sm:$0xff]
    %v924 = vld [vmem:[%s5 + $0x30] sm:$0xff]
    %v925 = vld [vmem:[%s5 + $0x38] sm:$0xff]
    %v926 = vld [vmem:[%s5 + $0x40] sm:$0xff]
    %v927 = vld [vmem:[%s5 + $0x48] sm:$0xff]
    %v928 = vld [vmem:[%s5 + $0x50] sm:$0xff]
    %v929 = vld [vmem:[%s5 + $0x58] sm:$0xff]
    %v930 = vld [vmem:[%s5 + $0x60] sm:$0xff]
    %v931 = vld [vmem:[%s5 + $0x68] sm:$0xff]
    %v932 = vld [vmem:[%s5 + $0x70] sm:$0xff]
    %v933 = vld [vmem:[%s5 + $0x78] sm:$0xff]
    %v934 = vld [vmem:[%s5 + $0x80] sm:$0xff]
    %v935 = vld [vmem:[%s5 + $0x88] sm:$0xff]
    %v936 = vld [vmem:[%s5 + $0x90] sm:$0xff]
    %v937 = vld [vmem:[%s5 + $0x98] sm:$0xff]
    %v938 = vld [vmem:[%s5 + $0xa0] sm:$0xff]
    %v939 = vld [vmem:[%s5 + $0xa8] sm:$0xff]
    %v940 = vld [vmem:[%s5 + $0xb0] sm:$0xff]
    %v941 = vld [vmem:[%s5 + $0xb8] sm:$0xff]
    %v942 = vld [vmem:[%s5 + $0xc0] sm:$0xff]
    %v943 = vld [vmem:[%s5 + $0xc8] sm:$0xff]
    %v944 = vld [vmem:[%s5 + $0xd0] sm:$0xff]
    %v945 = vld [vmem:[%s5 + $0xd8] sm:$0xff]
    %v946 = vld [vmem:[%s5 + $0xe0] sm:$0xff]
    %v947 = vld [vmem:[%s5 + $0xe8] sm:$0xff]
    %v948 = vld [vmem:[%s5 + $0xf0] sm:$0xff]
    %v949 = vld [vmem:[%s5 + $0xf8] sm:$0xff]
    %v950 = vld [vmem:[%s5 + $0x100] sm:$0xff]
    %v951 = vld [vmem:[%s5 + $0x108] sm:$0xff]
    %v952 = vld [vmem:[%s5 + $0x110] sm:$0xff]
    %v953 = vld [vmem:[%s5 + $0x118] sm:$0xff]
    %v954 = vld [vmem:[%s5 + $0x120] sm:$0xff]
    %v955 = vld [vmem:[%s5 + $0x128] sm:$0xff]
    %v956 = vld [vmem:[%s5 + $0x130] sm:$0xff]
    %v957 = vld [vmem:[%s5 + $0x138] sm:$0xff]
    %v958 = vld [vmem:[%s5 + $0x140] sm:$0xff]
    %v959 = vld [vmem:[%s5 + $0x148] sm:$0xff]
    %v960 = vld [vmem:[%s5 + $0x150] sm:$0xff]
    %v961 = vld [vmem:[%s5 + $0x158] sm:$0xff]
    %v962 = vld [vmem:[%s5 + $0x160] sm:$0xff]
    %v963 = vld [vmem:[%s5 + $0x168] sm:$0xff]
    %v964 = vld [vmem:[%s5 + $0x170] sm:$0xff]
    %v965 = vld [vmem:[%s5 + $0x178] sm:$0xff]
    %v966 = vld [vmem:[%s5 + $0x180] sm:$0xff]
    %v967 = vld [vmem:[%s5 + $0x188] sm:$0xff]
    %v968 = vld [vmem:[%s5 + $0x190] sm:$0xff]
    %v969 = vld [vmem:[%s5 + $0x198] sm:$0xff]
    %v970 = vld [vmem:[%s5 + $0x1a0] sm:$0xff]
    %v971 = vld [vmem:[%s5 + $0x1a8] sm:$0xff]
    %v972 = vld [vmem:[%s5 + $0x1b0] sm:$0xff]
    %v973 = vld [vmem:[%s5 + $0x1b8] sm:$0xff]
    %v974 = vld [vmem:[%s5 + $0x1c0] sm:$0xff]
    %v975 = vld [vmem:[%s5 + $0x1c8] sm:$0xff]
    %v976 = vld [vmem:[%s5 + $0x1d0] sm:$0xff]
    %v977 = vld [vmem:[%s5 + $0x1d8] sm:$0xff]
    %v978 = vld [vmem:[%s5 + $0x1e0] sm:$0xff]
    %v979 = vld [vmem:[%s5 + $0x1e8] sm:$0xff]
    %v980 = vld [vmem:[%s5 + $0x1f0] sm:$0xff]
    %v981 = vld [vmem:[%s5 + $0x1f8] sm:$0xff]
    %v982 = vld [vmem:[%s5 + $0x200] sm:$0xff]
    %v983 = vld [vmem:[%s5 + $0x208] sm:$0xff]
    %v984 = vld [vmem:[%s5 + $0x210] sm:$0xff]
    %v985 = vld [vmem:[%s5 + $0x218] sm:$0xff]
    %v986 = vld [vmem:[%s5 + $0x220] sm:$0xff]
    %v987 = vld [vmem:[%s5 + $0x228] sm:$0xff]
    %v988 = vld [vmem:[%s5 + $0x230] sm:$0xff]
    %v989 = vld [vmem:[%s5 + $0x238] sm:$0xff]
    %v990 = vld [vmem:[%s5 + $0x240] sm:$0xff]
    %v991 = vld [vmem:[%s5 + $0x248] sm:$0xff]
    %v992 = vld [vmem:[%s5 + $0x250] sm:$0xff]
    %v993 = vld [vmem:[%s5 + $0x258] sm:$0xff]
    %v994 = vld [vmem:[%s5 + $0x260] sm:$0xff]
    %v995 = vld [vmem:[%s5 + $0x268] sm:$0xff]
    %v996 = vld [vmem:[%s5 + $0x270] sm:$0xff]
    %v997 = vld [vmem:[%s5 + $0x278] sm:$0xff]
    %v998 = vld [vmem:[%s5 + $0x280] sm:$0xff]
    %v999 = vld [vmem:[%s5 + $0x288] sm:$0xff]
    %v1000 = vld [vmem:[%s5 + $0x290] sm:$0xff]
    %v1001 = vld [vmem:[%s5 + $0x298] sm:$0xff]
    %v1002 = vld [vmem:[%s5 + $0x2a0] sm:$0xff]
    %v1003 = vld [vmem:[%s5 + $0x2a8] sm:$0xff]
    %v1004 = vld [vmem:[%s5 + $0x2b0] sm:$0xff]
    %v1005 = vld [vmem:[%s5 + $0x2b8] sm:$0xff]
    %v1006 = vld [vmem:[%s5 + $0x2c0] sm:$0xff]
    %v1007 = vld [vmem:[%s5 + $0x2c8] sm:$0xff]
    %v1008 = vld [vmem:[%s5 + $0x2d0] sm:$0xff]
    %v1009 = vld [vmem:[%s5 + $0x2d8] sm:$0xff]
    %v1010 = vld [vmem:[%s5 + $0x2e0] sm:$0xff]
    %v1011 = vld [vmem:[%s5 + $0x2e8] sm:$0xff]
    %v1012 = vld [vmem:[%s5 + $0x2f0] sm:$0xff]
    %v1013 = vld [vmem:[%s5 + $0x2f8] sm:$0xff]
    %v1014 = vld [vmem:[%s5 + $0x300] sm:$0xff]
    %v1015 = vld [vmem:[%s5 + $0x308] sm:$0xff]
    %v1016 = vld [vmem:[%s5 + $0x310] sm:$0xff]
    %v1017 = vld [vmem:[%s5 + $0x318] sm:$0xff]
    %v1018 = vld [vmem:[%s5 + $0x320] sm:$0xff]
    %v1019 = vld [vmem:[%s5 + $0x328] sm:$0xff]
    %v1020 = vld [vmem:[%s5 + $0x330] sm:$0xff]
    %v1021 = vld [vmem:[%s5 + $0x338] sm:$0xff]
    %v1022 = vld [vmem:[%s5 + $0x340] sm:$0xff]
    %v1023 = vld [vmem:[%s5 + $0x348] sm:$0xff]
    %v1024 = vld [vmem:[%s5 + $0x350] sm:$0xff]
    %v1025 = vld [vmem:[%s5 + $0x358] sm:$0xff]
    %v1026 = vld [vmem:[%s5 + $0x360] sm:$0xff]
    %v1027 = vld [vmem:[%s5 + $0x368] sm:$0xff]
    %v1028 = vld [vmem:[%s5 + $0x370] sm:$0xff]
    %v1029 = vld [vmem:[%s5 + $0x378] sm:$0xff]
    %v1030 = vld [vmem:[%s6] sm:$0x1]
    %v1032 = vlaneseq
    %v1033 = vshrl.u32 %v1032, 7
    %v1034 = vsub.s32 0, %v1033
    %v1035 = vrot.slane %v1030, %v1034
    %1037 = vmatprep.subr.mxu0 0.0
    %1038 = vmatpush1.msra.mxu0 %v918
    %1039 = vmatprep.subr.mxu0 0.0
    %1040 = vmatpush1.msra.mxu0 %v919
    %1041 = vmatprep.subr.mxu0 0.0
    %1042 = vmatpush1.msra.mxu0 %v920
    %1043 = vmatprep.subr.mxu0 0.0
    %1044 = vmatpush1.msra.mxu0 %v921
    %1045 = vmatprep.subr.mxu0 0.0
    %1046 = vmatpush1.msra.mxu0 %v922
    %1047 = vmatprep.subr.mxu0 0.0
    %1048 = vmatpush1.msra.mxu0 %v923
    %1049 = vmatprep.subr.mxu0 0.0
    %1050 = vmatpush1.msra.mxu0 %v924
    %1051 = vmatprep.subr.mxu0 0.0
    %1052 = vmatpush1.msra.mxu0 %v925
    %1053 = vmatprep.subr.mxu0 0.0
    %1054 = vmatpush1.msra.mxu0 %v926
    %1055 = vmatprep.subr.mxu0 0.0
    %1056 = vmatpush1.msra.mxu0 %v927
    %1057 = vmatprep.subr.mxu0 0.0
    %1058 = vmatpush1.msra.mxu0 %v928
    %1059 = vmatprep.subr.mxu0 0.0
    %1060 = vmatpush1.msra.mxu0 %v929
    %1061 = vmatprep.subr.mxu0 0.0
    %1062 = vmatpush1.msra.mxu0 %v930
    %1063 = vmatprep.subr.mxu0 0.0
    %1064 = vmatpush1.msra.mxu0 %v931
    %1065 = vmatprep.subr.mxu0 0.0
    %1066 = vmatpush1.msra.mxu0 %v932
    %1067 = vmatprep.subr.mxu0 0.0
    %1068 = vmatpush1.msra.mxu0 %v933
    %1069 = vmatprep.subr.mxu0 0.0
    %1070 = vmatpush1.msra.mxu0 %v934
    %1071 = vmatprep.subr.mxu0 0.0
    %1072 = vmatpush1.msra.mxu0 %v935
    %1073 = vmatprep.subr.mxu0 0.0
    %1074 = vmatpush1.msra.mxu0 %v936
    %1075 = vmatprep.subr.mxu0 0.0
    %1076 = vmatpush1.msra.mxu0 %v937
    %1077 = vmatprep.subr.mxu0 0.0
    %1078 = vmatpush1.msra.mxu0 %v938
    %1079 = vmatprep.subr.mxu0 0.0
    %1080 = vmatpush1.msra.mxu0 %v939
    %1081 = vmatprep.subr.mxu0 0.0
    %1082 = vmatpush1.msra.mxu0 %v940
    %1083 = vmatprep.subr.mxu0 0.0
    %1084 = vmatpush1.msra.mxu0 %v941
    %1085 = vmatprep.subr.mxu0 0.0
    %1086 = vmatpush1.msra.mxu0 %v942
    %1087 = vmatprep.subr.mxu0 0.0
    %1088 = vmatpush1.msra.mxu0 %v943
    %1089 = vmatprep.subr.mxu0 0.0
    %1090 = vmatpush1.msra.mxu0 %v944
    %1091 = vmatprep.subr.mxu0 0.0
    %1092 = vmatpush1.msra.mxu0 %v945
    %1093 = vmatprep.subr.mxu0 0.0
    %1094 = vmatpush1.msra.mxu0 %v946
    %1095 = vmatprep.subr.mxu0 0.0
    %1096 = vmatpush1.msra.mxu0 %v947
    %1097 = vmatprep.subr.mxu0 0.0
    %1098 = vmatpush1.msra.mxu0 %v948
    %1099 = vmatprep.subr.mxu0 0.0
    %1100 = vmatpush1.msra.mxu0 %v949
    %1101 = vmatprep.mubr.f32.mxu0 %v870
    %1102 = vmatmul.mubr.f32.gmra.mrb[0].mxu0 %v862
    %v1103 = vpop.f32.mrb[0].mxu0
    %v1104 = vadd.f32 %v1035, %v1103
    %v1105 = vpop.f32.mrb[0].mxu0
    %1106 = vmatprep.mubr.f32.mxu0 %v871
    %1107 = vmatmul.mubr.f32.gmra.mrb[0].mxu0 %v863
    %v1108 = vpop.f32.mrb[0].mxu0
    %v1109 = vadd.f32 %v1035, %v1108
    %v1110 = vpop.f32.mrb[0].mxu0
    %1111 = vmatprep.mubr.f32.mxu0 %v872
    %1112 = vmatmul.mubr.f32.gmra.mrb[0].mxu0 %v864
    %v1113 = vpop.f32.mrb[0].mxu0
    %v1114 = vadd.f32 %v1035, %v1113
    %v1115 = vpop.f32.mrb[0].mxu0
    %1116 = vmatprep.mubr.f32.mxu0 %v873
    %1117 = vmatmul.mubr.f32.gmra.mrb[0].mxu0 %v865
    %v1118 = vpop.f32.mrb[0].mxu0
    %v1119 = vadd.f32 %v1035, %v1118
    %v1120 = vpop.f32.mrb[0].mxu0
    %1121 = vmatprep.mubr.f32.mxu0 %v874
    %1122 = vmatmul.mubr.f32.gmra.mrb[0].mxu0 %v866
    %v1123 = vpop.f32.mrb[0].mxu0
    %v1124 = vadd.f32 %v1035, %v1123
    %v1125 = vpop.f32.mrb[0].mxu0
    %1126 = vmatprep.mubr.f32.mxu0 %v875
    %1127 = vmatmul.mubr.f32.gmra.mrb[0].mxu0 %v867
    %v1128 = vpop.f32.mrb[0].mxu0
    %v1129 = vadd.f32 %v1035, %v1128
    %v1130 = vpop.f32.mrb[0].mxu0
    %1131 = vmatprep.mubr.f32.mxu0 %v876
    %1132 = vmatmul.mubr.f32.gmra.mrb[0].mxu0 %v868
    %v1133 = vpop.f32.mrb[0].mxu0
    %v1134 = vadd.f32 %v1035, %v1133
    %v1135 = vpop.f32.mrb[0].mxu0
    %1136 = vmatprep.mubr.f32.mxu0 %v877
    %1137 = vmatmul.mubr.f32.gmra.mrb[0].mxu0 %v869
    %v1138 = vpop.f32.mrb[0].mxu0
    %v1139 = vadd.f32 %v1035, %v1138
    %v1140 = vpop.f32.mrb[0].mxu0
    %1141 = vdwg.mxu0
    %1142 = vmatprep.subr.mxu0 0.0
    %1143 = vmatpush1.msra.mxu0 %v950
    %1144 = vmatprep.subr.mxu0 0.0
    %1145 = vmatpush1.msra.mxu0 %v951
    %1146 = vmatprep.subr.mxu0 0.0
    %1147 = vmatpush1.msra.mxu0 %v952
    %1148 = vmatprep.subr.mxu0 0.0
    %1149 = vmatpush1.msra.mxu0 %v953
    %1150 = vmatprep.subr.mxu0 0.0
    %1151 = vmatpush1.msra.mxu0 %v954
    %1152 = vmatprep.subr.mxu0 0.0
    %1153 = vmatpush1.msra.mxu0 %v955
    %1154 = vmatprep.subr.mxu0 0.0
    %1155 = vmatpush1.msra.mxu0 %v956
    %1156 = vmatprep.subr.mxu0 0.0
    %1157 = vmatpush1.msra.mxu0 %v957
    %1158 = vmatprep.subr.mxu0 0.0
    %1159 = vmatpush1.msra.mxu0 %v958
    %1160 = vmatprep.subr.mxu0 0.0
    %1161 = vmatpush1.msra.mxu0 %v959
    %1162 = vmatprep.subr.mxu0 0.0
    %1163 = vmatpush1.msra.mxu0 %v960
    %1164 = vmatprep.subr.mxu0 0.0
    %1165 = vmatpush1.msra.mxu0 %v961
    %1166 = vmatprep.subr.mxu0 0.0
    %1167 = vmatpush1.msra.mxu0 %v962
    %1168 = vmatprep.subr.mxu0 0.0
    %1169 = vmatpush1.msra.mxu0 %v963
    %1170 = vmatprep.subr.mxu0 0.0
    %1171 = vmatpush1.msra.mxu0 %v964
    %1172 = vmatprep.subr.mxu0 0.0
    %1173 = vmatpush1.msra.mxu0 %v965
    %1174 = vmatprep.subr.mxu0 0.0
    %1175 = vmatpush1.msra.mxu0 %v966
    %1176 = vmatprep.subr.mxu0 0.0
    %1177 = vmatpush1.msra.mxu0 %v967
    %1178 = vmatprep.subr.mxu0 0.0
    %1179 = vmatpush1.msra.mxu0 %v968
    %1180 = vmatprep.subr.mxu0 0.0
    %1181 = vmatpush1.msra.mxu0 %v969
    %1182 = vmatprep.subr.mxu0 0.0
    %1183 = vmatpush1.msra.mxu0 %v970
    %1184 = vmatprep.subr.mxu0 0.0
    %1185 = vmatpush1.msra.mxu0 %v971
    %1186 = vmatprep.subr.mxu0 0.0
    %1187 = vmatpush1.msra.mxu0 %v972
    %1188 = vmatprep.subr.mxu0 0.0
    %1189 = vmatpush1.msra.mxu0 %v973
    %1190 = vmatprep.subr.mxu0 0.0
    %1191 = vmatpush1.msra.mxu0 %v974
    %1192 = vmatprep.subr.mxu0 0.0
    %1193 = vmatpush1.msra.mxu0 %v975
    %1194 = vmatprep.subr.mxu0 0.0
    %1195 = vmatpush1.msra.mxu0 %v976
    %1196 = vmatprep.subr.mxu0 0.0
    %1197 = vmatpush1.msra.mxu0 %v977
    %1198 = vmatprep.subr.mxu0 0.0
    %1199 = vmatpush1.msra.mxu0 %v978
    %1200 = vmatprep.subr.mxu0 0.0
    %1201 = vmatpush1.msra.mxu0 %v979
    %1202 = vmatprep.subr.mxu0 0.0
    %1203 = vmatpush1.msra.mxu0 %v980
    %1204 = vmatprep.subr.mxu0 0.0
    %1205 = vmatpush1.msra.mxu0 %v981
    %1206 = vmatprep.mubr.f32.mxu0 %v886
    %1207 = vmatmul.mubr.f32.gmra.mrb[0].mxu0 %v878
    %v1208 = vpop.f32.mrb[0].mxu0
    %v1209 = vadd.f32 %v1104, %v1208
    %v1210 = vpop.f32.mrb[0].mxu0
    %1211 = vmatprep.mubr.f32.mxu0 %v887
    %1212 = vmatmul.mubr.f32.gmra.mrb[0].mxu0 %v879
    %v1213 = vpop.f32.mrb[0].mxu0
    %v1214 = vadd.f32 %v1109, %v1213
    %v1215 = vpop.f32.mrb[0].mxu0
    %1216 = vmatprep.mubr.f32.mxu0 %v888
    %1217 = vmatmul.mubr.f32.gmra.mrb[0].mxu0 %v880
    %v1218 = vpop.f32.mrb[0].mxu0
    %v1219 = vadd.f32 %v1114, %v1218
    %v1220 = vpop.f32.mrb[0].mxu0
    %1221 = vmatprep.mubr.f32.mxu0 %v889
    %1222 = vmatmul.mubr.f32.gmra.mrb[0].mxu0 %v881
    %v1223 = vpop.f32.mrb[0].mxu0
    %v1224 = vadd.f32 %v1119, %v1223
    %v1225 = vpop.f32.mrb[0].mxu0
    %1226 = vmatprep.mubr.f32.mxu0 %v890
    %1227 = vmatmul.mubr.f32.gmra.mrb[0].mxu0 %v882
    %v1228 = vpop.f32.mrb[0].mxu0
    %v1229 = vadd.f32 %v1124, %v1228
    %v1230 = vpop.f32.mrb[0].mxu0
    %1231 = vmatprep.mubr.f32.mxu0 %v891
    %1232 = vmatmul.mubr.f32.gmra.mrb[0].mxu0 %v883
    %v1233 = vpop.f32.mrb[0].mxu0
    %v1234 = vadd.f32 %v1129, %v1233
    %v1235 = vpop.f32.mrb[0].mxu0
    %1236 = vmatprep.mubr.f32.mxu0 %v892
    %1237 = vmatmul.mubr.f32.gmra.mrb[0].mxu0 %v884
    %v1238 = vpop.f32.mrb[0].mxu0
    %v1239 = vadd.f32 %v1134, %v1238
    %v1240 = vpop.f32.mrb[0].mxu0
    %1241 = vmatprep.mubr.f32.mxu0 %v893
    %1242 = vmatmul.mubr.f32.gmra.mrb[0].mxu0 %v885
    %v1243 = vpop.f32.mrb[0].mxu0
    %v1244 = vadd.f32 %v1139, %v1243
    %v1245 = vpop.f32.mrb[0].mxu0
    %1246 = vdwg.mxu0
    %1247 = vmatprep.subr.mxu0 0.0
    %1248 = vmatpush1.msra.mxu0 %v982
    %1249 = vmatprep.subr.mxu0 0.0
    %1250 = vmatpush1.msra.mxu0 %v983
    %1251 = vmatprep.subr.mxu0 0.0
    %1252 = vmatpush1.msra.mxu0 %v984
    %1253 = vmatprep.subr.mxu0 0.0
    %1254 = vmatpush1.msra.mxu0 %v985
    %1255 = vmatprep.subr.mxu0 0.0
    %1256 = vmatpush1.msra.mxu0 %v986
    %1257 = vmatprep.subr.mxu0 0.0
    %1258 = vmatpush1.msra.mxu0 %v987
    %1259 = vmatprep.subr.mxu0 0.0
    %1260 = vmatpush1.msra.mxu0 %v988
    %1261 = vmatprep.subr.mxu0 0.0
    %1262 = vmatpush1.msra.mxu0 %v989
    %1263 = vmatprep.subr.mxu0 0.0
    %1264 = vmatpush1.msra.mxu0 %v990
    %1265 = vmatprep.subr.mxu0 0.0
    %1266 = vmatpush1.msra.mxu0 %v991
    %1267 = vmatprep.subr.mxu0 0.0
    %1268 = vmatpush1.msra.mxu0 %v992
    %1269 = vmatprep.subr.mxu0 0.0
    %1270 = vmatpush1.msra.mxu0 %v993
    %1271 = vmatprep.subr.mxu0 0.0
    %1272 = vmatpush1.msra.mxu0 %v994
    %1273 = vmatprep.subr.mxu0 0.0
    %1274 = vmatpush1.msra.mxu0 %v995
    %1275 = vmatprep.subr.mxu0 0.0
    %1276 = vmatpush1.msra.mxu0 %v996
    %1277 = vmatprep.subr.mxu0 0.0
    %1278 = vmatpush1.msra.mxu0 %v997
    %1279 = vmatprep.subr.mxu0 0.0
    %1280 = vmatpush1.msra.mxu0 %v998
    %1281 = vmatprep.subr.mxu0 0.0
    %1282 = vmatpush1.msra.mxu0 %v999
    %1283 = vmatprep.subr.mxu0 0.0
    %1284 = vmatpush1.msra.mxu0 %v1000
    %1285 = vmatprep.subr.mxu0 0.0
    %1286 = vmatpush1.msra.mxu0 %v1001
    %1287 = vmatprep.subr.mxu0 0.0
    %1288 = vmatpush1.msra.mxu0 %v1002
    %1289 = vmatprep.subr.mxu0 0.0
    %1290 = vmatpush1.msra.mxu0 %v1003
    %1291 = vmatprep.subr.mxu0 0.0
    %1292 = vmatpush1.msra.mxu0 %v1004
    %1293 = vmatprep.subr.mxu0 0.0
    %1294 = vmatpush1.msra.mxu0 %v1005
    %1295 = vmatprep.subr.mxu0 0.0
    %1296 = vmatpush1.msra.mxu0 %v1006
    %1297 = vmatprep.subr.mxu0 0.0
    %1298 = vmatpush1.msra.mxu0 %v1007
    %1299 = vmatprep.subr.mxu0 0.0
    %1300 = vmatpush1.msra.mxu0 %v1008
    %1301 = vmatprep.subr.mxu0 0.0
    %1302 = vmatpush1.msra.mxu0 %v1009
    %1303 = vmatprep.subr.mxu0 0.0
    %1304 = vmatpush1.msra.mxu0 %v1010
    %1305 = vmatprep.subr.mxu0 0.0
    %1306 = vmatpush1.msra.mxu0 %v1011
    %1307 = vmatprep.subr.mxu0 0.0
    %1308 = vmatpush1.msra.mxu0 %v1012
    %1309 = vmatprep.subr.mxu0 0.0
    %1310 = vmatpush1.msra.mxu0 %v1013
    %1311 = vmatprep.mubr.f32.mxu0 %v902
    %1312 = vmatmul.mubr.f32.gmra.mrb[0].mxu0 %v894
    %v1313 = vpop.f32.mrb[0].mxu0
    %v1314 = vadd.f32 %v1209, %v1313
    %v1315 = vpop.f32.mrb[0].mxu0
    %1316 = vmatprep.mubr.f32.mxu0 %v903
    %1317 = vmatmul.mubr.f32.gmra.mrb[0].mxu0 %v895
    %v1318 = vpop.f32.mrb[0].mxu0
    %v1319 = vadd.f32 %v1214, %v1318
    %v1320 = vpop.f32.mrb[0].mxu0
    %1321 = vmatprep.mubr.f32.mxu0 %v904
    %1322 = vmatmul.mubr.f32.gmra.mrb[0].mxu0 %v896
    %v1323 = vpop.f32.mrb[0].mxu0
    %v1324 = vadd.f32 %v1219, %v1323
    %v1325 = vpop.f32.mrb[0].mxu0
    %1326 = vmatprep.mubr.f32.mxu0 %v905
    %1327 = vmatmul.mubr.f32.gmra.mrb[0].mxu0 %v897
    %v1328 = vpop.f32.mrb[0].mxu0
    %v1329 = vadd.f32 %v1224, %v1328
    %v1330 = vpop.f32.mrb[0].mxu0
    %1331 = vmatprep.mubr.f32.mxu0 %v906
    %1332 = vmatmul.mubr.f32.gmra.mrb[0].mxu0 %v898
    %v1333 = vpop.f32.mrb[0].mxu0
    %v1334 = vadd.f32 %v1229, %v1333
    %v1335 = vpop.f32.mrb[0].mxu0
    %1336 = vmatprep.mubr.f32.mxu0 %v907
    %1337 = vmatmul.mubr.f32.gmra.mrb[0].mxu0 %v899
    %v1338 = vpop.f32.mrb[0].mxu0
    %v1339 = vadd.f32 %v1234, %v1338
    %v1340 = vpop.f32.mrb[0].mxu0
    %1341 = vmatprep.mubr.f32.mxu0 %v908
    %1342 = vmatmul.mubr.f32.gmra.mrb[0].mxu0 %v900
    %v1343 = vpop.f32.mrb[0].mxu0
    %v1344 = vadd.f32 %v1239, %v1343
    %v1345 = vpop.f32.mrb[0].mxu0
    %1346 = vmatprep.mubr.f32.mxu0 %v909
    %1347 = vmatmul.mubr.f32.gmra.mrb[0].mxu0 %v901
    %v1348 = vpop.f32.mrb[0].mxu0
    %v1349 = vadd.f32 %v1244, %v1348
    %v1350 = vpop.f32.mrb[0].mxu0
    %1351 = vdwg.mxu0
    %1352 = vmatprep.subr.mxu0 0.0
    %1353 = vmatpush1.msra.mxu0 %v1014
    %1354 = vmatprep.subr.mxu0 0.0
    %1355 = vmatpush1.msra.mxu0 %v1015
    %1356 = vmatprep.subr.mxu0 0.0
    %1357 = vmatpush1.msra.mxu0 %v1016
    %1358 = vmatprep.subr.mxu0 0.0
    %1359 = vmatpush1.msra.mxu0 %v1017
    %1360 = vmatprep.subr.mxu0 0.0
    %1361 = vmatpush1.msra.mxu0 %v1018
    %1362 = vmatprep.subr.mxu0 0.0
    %1363 = vmatpush1.msra.mxu0 %v1019
    %1364 = vmatprep.subr.mxu0 0.0
    %1365 = vmatpush1.msra.mxu0 %v1020
    %1366 = vmatprep.subr.mxu0 0.0
    %1367 = vmatpush1.msra.mxu0 %v1021
    %1368 = vmatprep.subr.mxu0 0.0
    %1369 = vmatpush1.msra.mxu0 %v1022
    %1370 = vmatprep.subr.mxu0 0.0
    %1371 = vmatpush1.msra.mxu0 %v1023
    %1372 = vmatprep.subr.mxu0 0.0
    %1373 = vmatpush1.msra.mxu0 %v1024
    %1374 = vmatprep.subr.mxu0 0.0
    %1375 = vmatpush1.msra.mxu0 %v1025
    %1376 = vmatprep.subr.mxu0 0.0
    %1377 = vmatpush1.msra.mxu0 %v1026
    %1378 = vmatprep.subr.mxu0 0.0
    %1379 = vmatpush1.msra.mxu0 %v1027
    %1380 = vmatprep.subr.mxu0 0.0
    %1381 = vmatpush1.msra.mxu0 %v1028
    %1382 = vmatprep.subr.mxu0 0.0
    %1383 = vmatpush1.msra.mxu0 %v1029
    %1384 = vmatprep.subr.mxu0 0.0
    %1385 = vmatpush1.msra.mxu0 0.0
    %1386 = vmatprep.subr.mxu0 0.0
    %1387 = vmatpush1.msra.mxu0 0.0
    %1388 = vmatprep.subr.mxu0 0.0
    %1389 = vmatpush1.msra.mxu0 0.0
    %1390 = vmatprep.subr.mxu0 0.0
    %1391 = vmatpush1.msra.mxu0 0.0
    %1392 = vmatprep.subr.mxu0 0.0
    %1393 = vmatpush1.msra.mxu0 0.0
    %1394 = vmatprep.subr.mxu0 0.0
    %1395 = vmatpush1.msra.mxu0 0.0
    %1396 = vmatprep.subr.mxu0 0.0
    %1397 = vmatpush1.msra.mxu0 0.0
    %1398 = vmatprep.subr.mxu0 0.0
    %1399 = vmatpush1.msra.mxu0 0.0
    %1400 = vmatprep.subr.mxu0 0.0
    %1401 = vmatpush1.msra.mxu0 0.0
    %1402 = vmatprep.subr.mxu0 0.0
    %1403 = vmatpush1.msra.mxu0 0.0
    %1404 = vmatprep.subr.mxu0 0.0
    %1405 = vmatpush1.msra.mxu0 0.0
    %1406 = vmatprep.subr.mxu0 0.0
    %1407 = vmatpush1.msra.mxu0 0.0
    %1408 = vmatprep.subr.mxu0 0.0
    %1409 = vmatpush1.msra.mxu0 0.0
    %1410 = vmatprep.subr.mxu0 0.0
    %1411 = vmatpush1.msra.mxu0 0.0
    %1412 = vmatprep.subr.mxu0 0.0
    %1413 = vmatpush1.msra.mxu0 0.0
    %1414 = vmatprep.subr.mxu0 0.0
    %1415 = vmatpush1.msra.mxu0 0.0
    %1416 = vmatprep.mubr.f32.mxu0 0.0
    %1417 = vmatmul.mubr.f32.gmra.mrb[0].mxu0 %v910
    %v1418 = vpop.f32.mrb[0].mxu0
    %v1419 = vadd.f32 %v1314, %v1418
    %v1420 = vpop.f32.mrb[0].mxu0
    %1421 = vmatprep.mubr.f32.mxu0 0.0
    %1422 = vmatmul.mubr.f32.gmra.mrb[0].mxu0 %v911
    %v1423 = vpop.f32.mrb[0].mxu0
    %v1424 = vadd.f32 %v1319, %v1423
    %v1425 = vpop.f32.mrb[0].mxu0
    %1426 = vmatprep.mubr.f32.mxu0 0.0
    %1427 = vmatmul.mubr.f32.gmra.mrb[0].mxu0 %v912
    %v1428 = vpop.f32.mrb[0].mxu0
    %v1429 = vadd.f32 %v1324, %v1428
    %v1430 = vpop.f32.mrb[0].mxu0
    %1431 = vmatprep.mubr.f32.mxu0 0.0
    %1432 = vmatmul.mubr.f32.gmra.mrb[0].mxu0 %v913
    %v1433 = vpop.f32.mrb[0].mxu0
    %v1434 = vadd.f32 %v1329, %v1433
    %v1435 = vpop.f32.mrb[0].mxu0
    %1436 = vmatprep.mubr.f32.mxu0 0.0
    %1437 = vmatmul.mubr.f32.gmra.mrb[0].mxu0 %v914
    %v1438 = vpop.f32.mrb[0].mxu0
    %v1439 = vadd.f32 %v1334, %v1438
    %v1440 = vpop.f32.mrb[0].mxu0
    %1441 = vmatprep.mubr.f32.mxu0 0.0
    %1442 = vmatmul.mubr.f32.gmra.mrb[0].mxu0 %v915
    %v1443 = vpop.f32.mrb[0].mxu0
    %v1444 = vadd.f32 %v1339, %v1443
    %v1445 = vpop.f32.mrb[0].mxu0
    %1446 = vmatprep.mubr.f32.mxu0 0.0
    %1447 = vmatmul.mubr.f32.gmra.mrb[0].mxu0 %v916
    %v1448 = vpop.f32.mrb[0].mxu0
    %v1449 = vadd.f32 %v1344, %v1448
    %v1450 = vpop.f32.mrb[0].mxu0
    %1451 = vmatprep.mubr.f32.mxu0 0.0
    %1452 = vmatmul.mubr.f32.gmra.mrb[0].mxu0 %v917
    %v1453 = vpop.f32.mrb[0].mxu0
    %v1454 = vadd.f32 %v1349, %v1453
    %v1455 = vpop.f32.mrb[0].mxu0
    %1456 = vdwg.mxu0
    %v1457 = vmax.f32 %v1419, 0.0
    %v1458 = vmax.f32 %v1424, 0.0
    %v1459 = vmax.f32 %v1429, 0.0
    %v1460 = vmax.f32 %v1434, 0.0
    %v1461 = vmax.f32 %v1439, 0.0
    %v1462 = vmax.f32 %v1444, 0.0
    %v1463 = vmax.f32 %v1449, 0.0
    %v1464 = vmax.f32 %v1454, 0.0
    %v1465 = vadd.f32 %v1457, %v1458
    %v1466 = vrot.slane %v1465, 4
    %v1467 = vadd.f32 %v1465, %v1466
    %v1468 = vrot.slane %v1467, 2
    %v1469 = vadd.f32 %v1467, %v1468
    %v1470 = vrot.slane %v1469, 1
    %v1471 = vadd.f32 %v1469, %v1470
    %v1472 = vadd.f32 %v1459, %v1460
    %v1473 = vrot.slane %v1472, 4
    %v1474 = vadd.f32 %v1472, %v1473
    %v1475 = vrot.slane %v1474, 2
    %v1476 = vadd.f32 %v1474, %v1475
    %v1477 = vrot.slane %v1476, 1
    %v1478 = vadd.f32 %v1476, %v1477
    %v1479 = vadd.f32 %v1461, %v1462
    %v1480 = vrot.slane %v1479, 4
    %v1481 = vadd.f32 %v1479, %v1480
    %v1482 = vrot.slane %v1481, 2
    %v1483 = vadd.f32 %v1481, %v1482
    %v1484 = vrot.slane %v1483, 1
    %v1485 = vadd.f32 %v1483, %v1484
    %v1486 = vadd.f32 %v1463, %v1464
    %v1487 = vrot.slane %v1486, 4
    %v1488 = vadd.f32 %v1486, %v1487
    %v1489 = vrot.slane %v1488, 2
    %v1490 = vadd.f32 %v1488, %v1489
    %v1491 = vrot.slane %v1490, 1
    %v1492 = vadd.f32 %v1490, %v1491
    %v1493 = vrcp.pop 16.0
    %v1494 = vmul.f32 %v1471, %v1493
    %v1495 = vmul.f32 %v1478, %v1493
    %v1496 = vmul.f32 %v1485, %v1493
    %v1497 = vmul.f32 %v1492, %v1493
    %v1498 = vld [vmem:[%s7] sm:$0xff]
    %v1499 = vld [vmem:[%s7 + $0x8] sm:$0xff]
    %v1500 = vld [vmem:[%s7 + $0x10] sm:$0xff]
    %v1501 = vld [vmem:[%s7 + $0x18] sm:$0xff]
    %v1502 = vld [vmem:[%s7 + $0x20] sm:$0xff]
    %v1503 = vld [vmem:[%s7 + $0x28] sm:$0xff]
    %v1504 = vld [vmem:[%s7 + $0x30] sm:$0xff]
    %v1505 = vld [vmem:[%s7 + $0x38] sm:$0xff]
    %v1506 = vld [vmem:[%s7 + $0x40] sm:$0xff]
    %v1507 = vld [vmem:[%s7 + $0x48] sm:$0xff]
    %v1508 = vld [vmem:[%s7 + $0x50] sm:$0xff]
    %v1509 = vld [vmem:[%s7 + $0x58] sm:$0xff]
    %v1510 = vld [vmem:[%s7 + $0x60] sm:$0xff]
    %v1511 = vld [vmem:[%s7 + $0x68] sm:$0xff]
    %v1512 = vld [vmem:[%s7 + $0x70] sm:$0xff]
    %v1513 = vld [vmem:[%s7 + $0x78] sm:$0xff]
    %v1514 = vld [vmem:[%s7 + $0x80] sm:$0xff]
    %v1515 = vld [vmem:[%s7 + $0x88] sm:$0xff]
    %v1516 = vld [vmem:[%s7 + $0x90] sm:$0xff]
    %v1517 = vld [vmem:[%s7 + $0x98] sm:$0xff]
    %v1518 = vld [vmem:[%s7 + $0xa0] sm:$0xff]
    %v1519 = vld [vmem:[%s7 + $0xa8] sm:$0xff]
    %v1520 = vld [vmem:[%s7 + $0xb0] sm:$0xff]
    %v1521 = vld [vmem:[%s7 + $0xb8] sm:$0xff]
    %v1522 = vld [vmem:[%s7 + $0xc0] sm:$0xff]
    %v1523 = vld [vmem:[%s7 + $0xc8] sm:$0xff]
    %v1524 = vld [vmem:[%s7 + $0xd0] sm:$0xff]
    %v1525 = vld [vmem:[%s7 + $0xd8] sm:$0xff]
    %v1526 = vld [vmem:[%s7 + $0xe0] sm:$0xff]
    %v1527 = vld [vmem:[%s7 + $0xe8] sm:$0xff]
    %v1528 = vld [vmem:[%s7 + $0xf0] sm:$0xff]
    %v1529 = vld [vmem:[%s7 + $0xf8] sm:$0xff]
    %v1530 = vld [vmem:[%s8] sm:$0x3]
    %v1532 = vlaneseq
    %v1533 = vshrl.u32 %v1532, 7
    %v1534 = vsub.s32 0, %v1533
    %v1535 = vrot.slane %v1530, %v1534
    %v1536 = vlaneseq
    %v1537 = vshrl.u32 %v1536, 7
    %v1538 = vsub.s32 1, %v1537
    %v1539 = vrot.slane %v1530, %v1538
    %vm1546 = vcmask 1041409
    %v1547 = vsel %vm1546, %v1495, %v1494
    %vm1548 = vcmask 1042434
    %v1549 = vsel %vm1548, %v1496, %v1547
    %vm1550 = vcmask 1043459
    %v1551 = vsel %vm1550, %v1497, %v1549
    %1553 = vmatprep.subr.mxu0 %v1499
    %1554 = vmatpush1.msra.mxu0 %v1498
    %1555 = vmatprep.subr.mxu0 %v1501
    %1556 = vmatpush1.msra.mxu0 %v1500
    %1557 = vmatprep.subr.mxu0 %v1503
    %1558 = vmatpush1.msra.mxu0 %v1502
    %1559 = vmatprep.subr.mxu0 %v1505
    %1560 = vmatpush1.msra.mxu0 %v1504
    %1561 = vmatprep.subr.mxu0 %v1507
    %1562 = vmatpush1.msra.mxu0 %v1506
    %1563 = vmatprep.subr.mxu0 %v1509
    %1564 = vmatpush1.msra.mxu0 %v1508
    %1565 = vmatprep.subr.mxu0 %v1511
    %1566 = vmatpush1.msra.mxu0 %v1510
    %1567 = vmatprep.subr.mxu0 %v1513
    %1568 = vmatpush1.msra.mxu0 %v1512
    %1569 = vmatprep.subr.mxu0 %v1515
    %1570 = vmatpush1.msra.mxu0 %v1514
    %1571 = vmatprep.subr.mxu0 %v1517
    %1572 = vmatpush1.msra.mxu0 %v1516
    %1573 = vmatprep.subr.mxu0 %v1519
    %1574 = vmatpush1.msra.mxu0 %v1518
    %1575 = vmatprep.subr.mxu0 %v1521
    %1576 = vmatpush1.msra.mxu0 %v1520
    %1577 = vmatprep.subr.mxu0 %v1523
    %1578 = vmatpush1.msra.mxu0 %v1522
    %1579 = vmatprep.subr.mxu0 %v1525
    %1580 = vmatpush1.msra.mxu0 %v1524
    %1581 = vmatprep.subr.mxu0 %v1527
    %1582 = vmatpush1.msra.mxu0 %v1526
    %1583 = vmatprep.subr.mxu0 %v1529
    %1584 = vmatpush1.msra.mxu0 %v1528
    %1585 = vmatprep.subr.mxu0 0.0
    %1586 = vmatpush1.msra.mxu0 0.0
    %1587 = vmatprep.subr.mxu0 0.0
    %1588 = vmatpush1.msra.mxu0 0.0
    %1589 = vmatprep.subr.mxu0 0.0
    %1590 = vmatpush1.msra.mxu0 0.0
    %1591 = vmatprep.subr.mxu0 0.0
    %1592 = vmatpush1.msra.mxu0 0.0
    %1593 = vmatprep.subr.mxu0 0.0
    %1594 = vmatpush1.msra.mxu0 0.0
    %1595 = vmatprep.subr.mxu0 0.0
    %1596 = vmatpush1.msra.mxu0 0.0
    %1597 = vmatprep.subr.mxu0 0.0
    %1598 = vmatpush1.msra.mxu0 0.0
    %1599 = vmatprep.subr.mxu0 0.0
    %1600 = vmatpush1.msra.mxu0 0.0
    %1601 = vmatprep.subr.mxu0 0.0
    %1602 = vmatpush1.msra.mxu0 0.0
    %1603 = vmatprep.subr.mxu0 0.0
    %1604 = vmatpush1.msra.mxu0 0.0
    %1605 = vmatprep.subr.mxu0 0.0
    %1606 = vmatpush1.msra.mxu0 0.0
    %1607 = vmatprep.subr.mxu0 0.0
    %1608 = vmatpush1.msra.mxu0 0.0
    %1609 = vmatprep.subr.mxu0 0.0
    %1610 = vmatpush1.msra.mxu0 0.0
    %1611 = vmatprep.subr.mxu0 0.0
    %1612 = vmatpush1.msra.mxu0 0.0
    %1613 = vmatprep.subr.mxu0 0.0
    %1614 = vmatpush1.msra.mxu0 0.0
    %1615 = vmatprep.subr.mxu0 0.0
    %1616 = vmatpush1.msra.mxu0 0.0
    %1617 = vmatprep.mubr.f32.mxu0 0.0
    %1618 = vmatmul.mubr.f32.gmra.mrb[0].mxu0 %v1551
    %v1619 = vpop.f32.mrb[0].mxu0
    %v1620 = vadd.f32 %v1535, %v1619
    %v1621 = vpop.f32.mrb[0].mxu0
    %v1622 = vadd.f32 %v1539, %v1621
    %1623 = vdwg.mxu0
    %v1624 = vmax.f32 %v1620, 0.0
    %v1625 = vmax.f32 %v1622, 0.0
    %v1626 = vld [vmem:[%s9] sm:$0xff]
    %v1627 = vld [vmem:[%s9 + $0x8] sm:$0xff]
    %v1628 = vld [vmem:[%s9 + $0x10] sm:$0xff]
    %v1629 = vld [vmem:[%s9 + $0x18] sm:$0xff]
    %v1630 = vld [vmem:[%s9 + $0x20] sm:$0xff]
    %v1631 = vld [vmem:[%s9 + $0x28] sm:$0xff]
    %v1632 = vld [vmem:[%s9 + $0x30] sm:$0xff]
    %v1633 = vld [vmem:[%s9 + $0x38] sm:$0xff]
    %v1634 = vld [vmem:[%s9 + $0x40] sm:$0xff]
    %v1635 = vld [vmem:[%s9 + $0x48] sm:$0xff]
    %v1636 = vld [vmem:[%s9 + $0x50] sm:$0xff]
    %v1637 = vld [vmem:[%s9 + $0x58] sm:$0xff]
    %v1638 = vld [vmem:[%s9 + $0x60] sm:$0xff]
    %v1639 = vld [vmem:[%s9 + $0x68] sm:$0xff]
    %v1640 = vld [vmem:[%s9 + $0x70] sm:$0xff]
    %v1641 = vld [vmem:[%s9 + $0x78] sm:$0xff]
    %v1642 = vld [vmem:[%s9 + $0x80] sm:$0xff]
    %v1643 = vld [vmem:[%s9 + $0x88] sm:$0xff]
    %v1644 = vld [vmem:[%s9 + $0x90] sm:$0xff]
    %v1645 = vld [vmem:[%s9 + $0x98] sm:$0xff]
    %v1646 = vld [vmem:[%s9 + $0xa0] sm:$0xff]
    %v1647 = vld [vmem:[%s9 + $0xa8] sm:$0xff]
    %v1648 = vld [vmem:[%s9 + $0xb0] sm:$0xff]
    %v1649 = vld [vmem:[%s9 + $0xb8] sm:$0xff]
    %v1650 = vld [vmem:[%s9 + $0xc0] sm:$0xff]
    %v1651 = vld [vmem:[%s9 + $0xc8] sm:$0xff]
    %v1652 = vld [vmem:[%s9 + $0xd0] sm:$0xff]
    %v1653 = vld [vmem:[%s9 + $0xd8] sm:$0xff]
    %v1654 = vld [vmem:[%s9 + $0xe0] sm:$0xff]
    %v1655 = vld [vmem:[%s9 + $0xe8] sm:$0xff]
    %v1656 = vld [vmem:[%s9 + $0xf0] sm:$0xff]
    %v1657 = vld [vmem:[%s9 + $0xf8] sm:$0xff]
    %v1658 = vld [vmem:[%s9 + $0x100] sm:$0xff]
    %v1659 = vld [vmem:[%s9 + $0x108] sm:$0xff]
    %v1660 = vld [vmem:[%s9 + $0x110] sm:$0xff]
    %v1661 = vld [vmem:[%s9 + $0x118] sm:$0xff]
    %v1662 = vld [vmem:[%s9 + $0x120] sm:$0xff]
    %v1663 = vld [vmem:[%s9 + $0x128] sm:$0xff]
    %v1664 = vld [vmem:[%s9 + $0x130] sm:$0xff]
    %v1665 = vld [vmem:[%s9 + $0x138] sm:$0xff]
    %v1666 = vld [vmem:[%s9 + $0x140] sm:$0xff]
    %v1667 = vld [vmem:[%s9 + $0x148] sm:$0xff]
    %v1668 = vld [vmem:[%s9 + $0x150] sm:$0xff]
    %v1669 = vld [vmem:[%s9 + $0x158] sm:$0xff]
    %v1670 = vld [vmem:[%s9 + $0x160] sm:$0xff]
    %v1671 = vld [vmem:[%s9 + $0x168] sm:$0xff]
    %v1672 = vld [vmem:[%s9 + $0x170] sm:$0xff]
    %v1673 = vld [vmem:[%s9 + $0x178] sm:$0xff]
    %v1674 = vld [vmem:[%s9 + $0x180] sm:$0xff]
    %v1675 = vld [vmem:[%s9 + $0x188] sm:$0xff]
    %v1676 = vld [vmem:[%s9 + $0x190] sm:$0xff]
    %v1677 = vld [vmem:[%s9 + $0x198] sm:$0xff]
    %v1678 = vld [vmem:[%s9 + $0x1a0] sm:$0xff]
    %v1679 = vld [vmem:[%s9 + $0x1a8] sm:$0xff]
    %v1680 = vld [vmem:[%s9 + $0x1b0] sm:$0xff]
    %v1681 = vld [vmem:[%s9 + $0x1b8] sm:$0xff]
    %v1682 = vld [vmem:[%s9 + $0x1c0] sm:$0xff]
    %v1683 = vld [vmem:[%s9 + $0x1c8] sm:$0xff]
    %v1684 = vld [vmem:[%s9 + $0x1d0] sm:$0xff]
    %v1685 = vld [vmem:[%s9 + $0x1d8] sm:$0xff]
    %v1686 = vld [vmem:[%s9 + $0x1e0] sm:$0xff]
    %v1687 = vld [vmem:[%s9 + $0x1e8] sm:$0xff]
    %v1688 = vld [vmem:[%s9 + $0x1f0] sm:$0xff]
    %v1689 = vld [vmem:[%s9 + $0x1f8] sm:$0xff]
    %v1690 = vld [vmem:[%s10] sm:$0x3]
    %v1692 = vlaneseq
    %v1693 = vshrl.u32 %v1692, 7
    %v1694 = vsub.s32 0, %v1693
    %v1695 = vrot.slane %v1690, %v1694
    %v1696 = vlaneseq
    %v1697 = vshrl.u32 %v1696, 7
    %v1698 = vsub.s32 1, %v1697
    %v1699 = vrot.slane %v1690, %v1698
    %1702 = vmatprep.subr.mxu0 %v1627
    %1703 = vmatpush1.msra.mxu0 %v1626
    %1704 = vmatprep.subr.mxu0 %v1629
    %1705 = vmatpush1.msra.mxu0 %v1628
    %1706 = vmatprep.subr.mxu0 %v1631
    %1707 = vmatpush1.msra.mxu0 %v1630
    %1708 = vmatprep.subr.mxu0 %v1633
    %1709 = vmatpush1.msra.mxu0 %v1632
    %1710 = vmatprep.subr.mxu0 %v1635
    %1711 = vmatpush1.msra.mxu0 %v1634
    %1712 = vmatprep.subr.mxu0 %v1637
    %1713 = vmatpush1.msra.mxu0 %v1636
    %1714 = vmatprep.subr.mxu0 %v1639
    %1715 = vmatpush1.msra.mxu0 %v1638
    %1716 = vmatprep.subr.mxu0 %v1641
    %1717 = vmatpush1.msra.mxu0 %v1640
    %1718 = vmatprep.subr.mxu0 %v1643
    %1719 = vmatpush1.msra.mxu0 %v1642
    %1720 = vmatprep.subr.mxu0 %v1645
    %1721 = vmatpush1.msra.mxu0 %v1644
    %1722 = vmatprep.subr.mxu0 %v1647
    %1723 = vmatpush1.msra.mxu0 %v1646
    %1724 = vmatprep.subr.mxu0 %v1649
    %1725 = vmatpush1.msra.mxu0 %v1648
    %1726 = vmatprep.subr.mxu0 %v1651
    %1727 = vmatpush1.msra.mxu0 %v1650
    %1728 = vmatprep.subr.mxu0 %v1653
    %1729 = vmatpush1.msra.mxu0 %v1652
    %1730 = vmatprep.subr.mxu0 %v1655
    %1731 = vmatpush1.msra.mxu0 %v1654
    %1732 = vmatprep.subr.mxu0 %v1657
    %1733 = vmatpush1.msra.mxu0 %v1656
    %1734 = vmatprep.subr.mxu0 %v1659
    %1735 = vmatpush1.msra.mxu0 %v1658
    %1736 = vmatprep.subr.mxu0 %v1661
    %1737 = vmatpush1.msra.mxu0 %v1660
    %1738 = vmatprep.subr.mxu0 %v1663
    %1739 = vmatpush1.msra.mxu0 %v1662
    %1740 = vmatprep.subr.mxu0 %v1665
    %1741 = vmatpush1.msra.mxu0 %v1664
    %1742 = vmatprep.subr.mxu0 %v1667
    %1743 = vmatpush1.msra.mxu0 %v1666
    %1744 = vmatprep.subr.mxu0 %v1669
    %1745 = vmatpush1.msra.mxu0 %v1668
    %1746 = vmatprep.subr.mxu0 %v1671
    %1747 = vmatpush1.msra.mxu0 %v1670
    %1748 = vmatprep.subr.mxu0 %v1673
    %1749 = vmatpush1.msra.mxu0 %v1672
    %1750 = vmatprep.subr.mxu0 %v1675
    %1751 = vmatpush1.msra.mxu0 %v1674
    %1752 = vmatprep.subr.mxu0 %v1677
    %1753 = vmatpush1.msra.mxu0 %v1676
    %1754 = vmatprep.subr.mxu0 %v1679
    %1755 = vmatpush1.msra.mxu0 %v1678
    %1756 = vmatprep.subr.mxu0 %v1681
    %1757 = vmatpush1.msra.mxu0 %v1680
    %1758 = vmatprep.subr.mxu0 %v1683
    %1759 = vmatpush1.msra.mxu0 %v1682
    %1760 = vmatprep.subr.mxu0 %v1685
    %1761 = vmatpush1.msra.mxu0 %v1684
    %1762 = vmatprep.subr.mxu0 %v1687
    %1763 = vmatpush1.msra.mxu0 %v1686
    %1764 = vmatprep.subr.mxu0 %v1689
    %1765 = vmatpush1.msra.mxu0 %v1688
    %1766 = vmatprep.mubr.f32.mxu0 %v1625
    %1767 = vmatmul.mubr.f32.gmra.mrb[0].mxu0 %v1624
    %v1768 = vpop.f32.mrb[0].mxu0
    %v1769 = vadd.f32 %v1695, %v1768
    %v1770 = vpop.f32.mrb[0].mxu0
    %v1771 = vadd.f32 %v1699, %v1770
    %1772 = vdwg.mxu0
    %v1773 = vmax.f32 %v1769, 0.0
    %v1774 = vmax.f32 %v1771, 0.0
    %v1775 = vld [vmem:[%s11] sm:$0xff]
    %v1776 = vld [vmem:[%s11 + $0x8] sm:$0xff]
    %v1777 = vld [vmem:[%s11 + $0x10] sm:$0xff]
    %v1778 = vld [vmem:[%s11 + $0x18] sm:$0xff]
    %v1779 = vld [vmem:[%s11 + $0x20] sm:$0xff]
    %v1780 = vld [vmem:[%s11 + $0x28] sm:$0xff]
    %v1781 = vld [vmem:[%s11 + $0x30] sm:$0xff]
    %v1782 = vld [vmem:[%s11 + $0x38] sm:$0xff]
    %v1783 = vld [vmem:[%s11 + $0x40] sm:$0xff]
    %v1784 = vld [vmem:[%s11 + $0x48] sm:$0xff]
    %v1785 = vld [vmem:[%s11 + $0x50] sm:$0xff]
    %v1786 = vld [vmem:[%s11 + $0x58] sm:$0xff]
    %v1787 = vld [vmem:[%s11 + $0x60] sm:$0xff]
    %v1788 = vld [vmem:[%s11 + $0x68] sm:$0xff]
    %v1789 = vld [vmem:[%s11 + $0x70] sm:$0xff]
    %v1790 = vld [vmem:[%s11 + $0x78] sm:$0xff]
    %v1791 = vld [vmem:[%s11 + $0x80] sm:$0xff]
    %v1792 = vld [vmem:[%s11 + $0x88] sm:$0xff]
    %v1793 = vld [vmem:[%s11 + $0x90] sm:$0xff]
    %v1794 = vld [vmem:[%s11 + $0x98] sm:$0xff]
    %v1795 = vld [vmem:[%s11 + $0xa0] sm:$0xff]
    %v1796 = vld [vmem:[%s11 + $0xa8] sm:$0xff]
    %v1797 = vld [vmem:[%s11 + $0xb0] sm:$0xff]
    %v1798 = vld [vmem:[%s11 + $0xb8] sm:$0xff]
    %v1799 = vld [vmem:[%s11 + $0xc0] sm:$0xff]
    %v1800 = vld [vmem:[%s11 + $0xc8] sm:$0xff]
    %v1801 = vld [vmem:[%s11 + $0xd0] sm:$0xff]
    %v1802 = vld [vmem:[%s11 + $0xd8] sm:$0xff]
    %v1803 = vld [vmem:[%s11 + $0xe0] sm:$0xff]
    %v1804 = vld [vmem:[%s11 + $0xe8] sm:$0xff]
    %v1805 = vld [vmem:[%s11 + $0xf0] sm:$0xff]
    %v1806 = vld [vmem:[%s11 + $0xf8] sm:$0xff]
    %v1807 = vld [vmem:[%s11 + $0x100] sm:$0xff]
    %v1808 = vld [vmem:[%s11 + $0x108] sm:$0xff]
    %v1809 = vld [vmem:[%s11 + $0x110] sm:$0xff]
    %v1810 = vld [vmem:[%s11 + $0x118] sm:$0xff]
    %v1811 = vld [vmem:[%s11 + $0x120] sm:$0xff]
    %v1812 = vld [vmem:[%s11 + $0x128] sm:$0xff]
    %v1813 = vld [vmem:[%s11 + $0x130] sm:$0xff]
    %v1814 = vld [vmem:[%s11 + $0x138] sm:$0xff]
    %v1815 = vld [vmem:[%s11 + $0x140] sm:$0xff]
    %v1816 = vld [vmem:[%s11 + $0x148] sm:$0xff]
    %v1817 = vld [vmem:[%s11 + $0x150] sm:$0xff]
    %v1818 = vld [vmem:[%s11 + $0x158] sm:$0xff]
    %v1819 = vld [vmem:[%s11 + $0x160] sm:$0xff]
    %v1820 = vld [vmem:[%s11 + $0x168] sm:$0xff]
    %v1821 = vld [vmem:[%s11 + $0x170] sm:$0xff]
    %v1822 = vld [vmem:[%s11 + $0x178] sm:$0xff]
    %v1823 = vld [vmem:[%s11 + $0x180] sm:$0xff]
    %v1824 = vld [vmem:[%s11 + $0x188] sm:$0xff]
    %v1825 = vld [vmem:[%s11 + $0x190] sm:$0xff]
    %v1826 = vld [vmem:[%s11 + $0x198] sm:$0xff]
    %v1827 = vld [vmem:[%s11 + $0x1a0] sm:$0xff]
    %v1828 = vld [vmem:[%s11 + $0x1a8] sm:$0xff]
    %v1829 = vld [vmem:[%s11 + $0x1b0] sm:$0xff]
    %v1830 = vld [vmem:[%s11 + $0x1b8] sm:$0xff]
    %v1831 = vld [vmem:[%s11 + $0x1c0] sm:$0xff]
    %v1832 = vld [vmem:[%s11 + $0x1c8] sm:$0xff]
    %v1833 = vld [vmem:[%s11 + $0x1d0] sm:$0xff]
    %v1834 = vld [vmem:[%s11 + $0x1d8] sm:$0xff]
    %v1835 = vld [vmem:[%s11 + $0x1e0] sm:$0xff]
    %v1836 = vld [vmem:[%s11 + $0x1e8] sm:$0xff]
    %v1837 = vld [vmem:[%s11 + $0x1f0] sm:$0xff]
    %v1838 = vld [vmem:[%s11 + $0x1f8] sm:$0xff]
    %v1839 = vld [vmem:[%s12] sm:$0x3]
    %v1841 = vlaneseq
    %v1842 = vshrl.u32 %v1841, 7
    %v1843 = vsub.s32 0, %v1842
    %v1844 = vrot.slane %v1839, %v1843
    %v1845 = vlaneseq
    %v1846 = vshrl.u32 %v1845, 7
    %v1847 = vsub.s32 1, %v1846
    %v1848 = vrot.slane %v1839, %v1847
    %1851 = vmatprep.subr.mxu0 %v1776
    %1852 = vmatpush1.msra.mxu0 %v1775
    %1853 = vmatprep.subr.mxu0 %v1778
    %1854 = vmatpush1.msra.mxu0 %v1777
    %1855 = vmatprep.subr.mxu0 %v1780
    %1856 = vmatpush1.msra.mxu0 %v1779
    %1857 = vmatprep.subr.mxu0 %v1782
    %1858 = vmatpush1.msra.mxu0 %v1781
    %1859 = vmatprep.subr.mxu0 %v1784
    %1860 = vmatpush1.msra.mxu0 %v1783
    %1861 = vmatprep.subr.mxu0 %v1786
    %1862 = vmatpush1.msra.mxu0 %v1785
    %1863 = vmatprep.subr.mxu0 %v1788
    %1864 = vmatpush1.msra.mxu0 %v1787
    %1865 = vmatprep.subr.mxu0 %v1790
    %1866 = vmatpush1.msra.mxu0 %v1789
    %1867 = vmatprep.subr.mxu0 %v1792
    %1868 = vmatpush1.msra.mxu0 %v1791
    %1869 = vmatprep.subr.mxu0 %v1794
    %1870 = vmatpush1.msra.mxu0 %v1793
    %1871 = vmatprep.subr.mxu0 %v1796
    %1872 = vmatpush1.msra.mxu0 %v1795
    %1873 = vmatprep.subr.mxu0 %v1798
    %1874 = vmatpush1.msra.mxu0 %v1797
    %1875 = vmatprep.subr.mxu0 %v1800
    %1876 = vmatpush1.msra.mxu0 %v1799
    %1877 = vmatprep.subr.mxu0 %v1802
    %1878 = vmatpush1.msra.mxu0 %v1801
    %1879 = vmatprep.subr.mxu0 %v1804
    %1880 = vmatpush1.msra.mxu0 %v1803
    %1881 = vmatprep.subr.mxu0 %v1806
    %1882 = vmatpush1.msra.mxu0 %v1805
    %1883 = vmatprep.subr.mxu0 %v1808
    %1884 = vmatpush1.msra.mxu0 %v1807
    %1885 = vmatprep.subr.mxu0 %v1810
    %1886 = vmatpush1.msra.mxu0 %v1809
    %1887 = vmatprep.subr.mxu0 %v1812
    %1888 = vmatpush1.msra.mxu0 %v1811
    %1889 = vmatprep.subr.mxu0 %v1814
    %1890 = vmatpush1.msra.mxu0 %v1813
    %1891 = vmatprep.subr.mxu0 %v1816
    %1892 = vmatpush1.msra.mxu0 %v1815
    %1893 = vmatprep.subr.mxu0 %v1818
    %1894 = vmatpush1.msra.mxu0 %v1817
    %1895 = vmatprep.subr.mxu0 %v1820
    %1896 = vmatpush1.msra.mxu0 %v1819
    %1897 = vmatprep.subr.mxu0 %v1822
    %1898 = vmatpush1.msra.mxu0 %v1821
    %1899 = vmatprep.subr.mxu0 %v1824
    %1900 = vmatpush1.msra.mxu0 %v1823
    %1901 = vmatprep.subr.mxu0 %v1826
    %1902 = vmatpush1.msra.mxu0 %v1825
    %1903 = vmatprep.subr.mxu0 %v1828
    %1904 = vmatpush1.msra.mxu0 %v1827
    %1905 = vmatprep.subr.mxu0 %v1830
    %1906 = vmatpush1.msra.mxu0 %v1829
    %1907 = vmatprep.subr.mxu0 %v1832
    %1908 = vmatpush1.msra.mxu0 %v1831
    %1909 = vmatprep.subr.mxu0 %v1834
    %1910 = vmatpush1.msra.mxu0 %v1833
    %1911 = vmatprep.subr.mxu0 %v1836
    %1912 = vmatpush1.msra.mxu0 %v1835
    %1913 = vmatprep.subr.mxu0 %v1838
    %1914 = vmatpush1.msra.mxu0 %v1837
    %1915 = vmatprep.mubr.f32.mxu0 %v1774
    %1916 = vmatmul.mubr.f32.gmra.mrb[0].mxu0 %v1773
    %v1917 = vpop.f32.mrb[0].mxu0
    %v1918 = vadd.f32 %v1844, %v1917
    %v1919 = vpop.f32.mrb[0].mxu0
    %v1920 = vadd.f32 %v1848, %v1919
    %1921 = vdwg.mxu0
    %v1924 = vcombine.low %v1918, %v1920
    %1926 = vst [vmem:[#allocation4] sm:$0xff] %v1924
    // Predicated region
    $region54: #{vicreg_forward.3} parent=1 // pred_check
      _
    $region55: #{vicreg_forward.3} parent=1 // pred_check_branch
      %1928 = sbr.rel (0) target = $region57
    $region56: #{vicreg_forward.3} parent=1 // pred_region
      %s1930 = ssub.s32 128, 128
      %1931 = vsyncadd [#allocation5], %s1930
      %s1933 = sshll.u32 [#allocation4], 4
      %s1934 = int_to_ptr.vmem [resolvable:$true] %s1933
      %1936 = dma.vmem_to_hbm [thread:$0]  %s1934, 128, %s13, [#allocation5]
    $region57: #{vicreg_forward.3} parent=1 // pred_fallthru
      _
    // Predicated region
    $region58: #{vicreg_forward.3} parent=1 // pred_check
      _
    $region59: #{vicreg_forward.3} parent=1 // pred_check_branch
      %1938 = sbr.rel (0) target = $region61
    $region60: #{vicreg_forward.3} parent=1 // pred_region
      %1939 = dma.done [#allocation5], 128
    $region61: #{vicreg_forward.3} parent=1 // pred_fallthru
      _
    %1940 = vsyncpa [#allocation5], 1

</llo_original>
